<compile_context>
chip_gen: v7x
topology: tpu7x:2x2x1
jax: 0.10.0
libtpu: 0.0.40
codegen_flags: <defaults>
</compile_context>

<pallas_src>
import functools

import jax
import jax.numpy as jnp
from jax import lax
from jax.experimental import pallas as pl
from jax.experimental.pallas import tpu as pltpu


# Conservative (v7x-safe) scoped-VMEM limit.
# TODO(synk): make this generation-aware (64-96 MiB on v5e/v6e) via get_tpu_info.
_VMEM_LIMIT = 32 * 1024 * 1024


# ------------------------------ tiling helpers ------------------------------

def _round_up(x, m):
    return (x + m - 1) // m * m


def _tile_rows(n, pref=256):
    """Largest divisor of n that is <= pref and a multiple of 8 (else n itself)."""
    if n <= pref:
        return n
    for t in range(pref - pref % 8, 7, -8):
        if n % t == 0:
            return t
    return n  # TODO(synk): pad + mask instead of a full-dim fallback (v7x VMEM).


def _tile_last(n, pref=512):
    """Largest divisor of n that is <= pref and a multiple of 128 (else n itself)."""
    if n <= pref:
        return n
    for t in range(pref - pref % 128, 127, -128):
        if n % t == 0:
            return t
    return n


# ----------------------------- Pallas kernels -------------------------------

def _ln_rows_kernel(x_ref, g_ref, b_ref, o_ref, *, eps):
    x = x_ref[...].astype(jnp.float32)                         # (tm, F)
    mean = jnp.mean(x, axis=-1, keepdims=True)
    var = jnp.mean(jnp.square(x - mean), axis=-1, keepdims=True)
    y = (x - mean) * lax.rsqrt(var + eps)
    o_ref[...] = (y * g_ref[...] + b_ref[...]).astype(o_ref.dtype)


def layernorm_rows(x2d, gamma, beta, eps, out_dtype=jnp.float32):
    M, F = x2d.shape
    tm = _tile_rows(M, 512)
    return pl.pallas_call(
        functools.partial(_ln_rows_kernel, eps=eps),
        out_shape=jax.ShapeDtypeStruct((M, F), out_dtype),
        grid=(M // tm,),
        in_specs=[
            pl.BlockSpec((tm, F), lambda i: (i, 0)),
            pl.BlockSpec((1, F), lambda i: (0, 0)),
            pl.BlockSpec((1, F), lambda i: (0, 0)),
        ],
        out_specs=pl.BlockSpec((tm, F), lambda i: (i, 0)),
        compiler_params=pltpu.CompilerParams(
            dimension_semantics=("parallel",), vmem_limit_bytes=_VMEM_LIMIT),
    )(x2d, gamma.reshape(1, F), beta.reshape(1, F))


def _embed_kernel(x_ref, w_ref, b_ref, mrow_ref, memb_ref, h_ref, hm_ref):
    # stack-4 embed matmul + bias; also emits the mask_emb-replaced copy so the
    # standalone jnp.where over [B, T', D] never hits HBM as a separate op.
    h = jnp.dot(x_ref[...], w_ref[...],
                preferred_element_type=jnp.float32) + b_ref[...]
    h_ref[...] = h.astype(h_ref.dtype)
    hm_ref[...] = jnp.where(mrow_ref[...] > 0.5, memb_ref[...], h).astype(hm_ref.dtype)


def embed_project(stacked, w, b, mask_rows, mask_emb):
    M, K = stacked.shape
    D = w.shape[1]
    tm = _tile_rows(M, 256)
    # Weight/bias/mask_emb index maps are constant -> fetched once, resident.
    return pl.pallas_call(
        _embed_kernel,
        out_shape=(jax.ShapeDtypeStruct((M, D), jnp.bfloat16),
                   jax.ShapeDtypeStruct((M, D), jnp.bfloat16)),
        grid=(M // tm,),
        in_specs=[
            pl.BlockSpec((tm, K), lambda i: (i, 0)),
            pl.BlockSpec((K, D), lambda i: (0, 0)),
            pl.BlockSpec((1, D), lambda i: (0, 0)),
            pl.BlockSpec((tm, 1), lambda i: (i, 0)),
            pl.BlockSpec((1, D), lambda i: (0, 0)),
        ],
        out_specs=(pl.BlockSpec((tm, D), lambda i: (i, 0)),
                   pl.BlockSpec((tm, D), lambda i: (i, 0))),
        compiler_params=pltpu.CompilerParams(
            dimension_semantics=("parallel",), vmem_limit_bytes=_VMEM_LIMIT),
    )(stacked, w, b.reshape(1, -1), mask_rows, mask_emb.reshape(1, -1))


def _ln_mm_kernel(x_ref, g_ref, bt_ref, w_ref, bias_ref, o_ref, *, eps, relu):
    # pre-LN prologue (f32) + bf16 matmul + bias (+ ReLU) epilogue.
    x = x_ref[...].astype(jnp.float32)
    mean = jnp.mean(x, axis=-1, keepdims=True)
    var = jnp.mean(jnp.square(x - mean), axis=-1, keepdims=True)
    y = (x - mean) * lax.rsqrt(var + eps) * g_ref[...] + bt_ref[...]
    acc = jnp.dot(y.astype(jnp.bfloat16), w_ref[...],
                  preferred_element_type=jnp.float32) + bias_ref[...]
    if relu:
        acc = jnp.maximum(acc, 0.0)
    o_ref[...] = acc.astype(o_ref.dtype)


def ln_matmul(x2d, g, b, w, bias, eps, relu=True, out_dtype=jnp.bfloat16):
    M, D = x2d.shape
    N = w.shape[1]
    tm = _tile_rows(M, 256)
    # (D, N) bf16 weight is small for this model -> keep it resident in VMEM
    # (constant index map) instead of re-streaming it per M tile.
    return pl.pallas_call(
        functools.partial(_ln_mm_kernel, eps=eps, relu=relu),
        out_shape=jax.ShapeDtypeStruct((M, N), out_dtype),
        grid=(M // tm,),
        in_specs=[
            pl.BlockSpec((tm, D), lambda i: (i, 0)),
            pl.BlockSpec((1, D), lambda i: (0, 0)),
            pl.BlockSpec((1, D), lambda i: (0, 0)),
            pl.BlockSpec((D, N), lambda i: (0, 0)),
            pl.BlockSpec((1, N), lambda i: (0, 0)),
        ],
        out_specs=pl.BlockSpec((tm, N), lambda i: (i, 0)),
        compiler_params=pltpu.CompilerParams(
            dimension_semantics=("parallel",), vmem_limit_bytes=_VMEM_LIMIT),
    )(x2d, g.reshape(1, -1), b.reshape(1, -1), w, bias.reshape(1, -1))


def _mm_res_kernel(h_ref, w_ref, b_ref, r_ref, o_ref):
    acc = jnp.dot(h_ref[...], w_ref[...], preferred_element_type=jnp.float32)
    o_ref[...] = (acc + b_ref[...] + r_ref[...].astype(jnp.float32)).astype(o_ref.dtype)


def matmul_residual(h2d, w, bias, res2d):
    # Full-K, full-N resident weight (K = 2*D fits VMEM for this model), so no
    # K grid axis / accumulator scratch is needed; bias + residual fused.
    M, K = h2d.shape
    N = w.shape[1]
    tm = _tile_rows(M, 256)
    return pl.pallas_call(
        _mm_res_kernel,
        out_shape=jax.ShapeDtypeStruct((M, N), jnp.float32),
        grid=(M // tm,),
        in_specs=[
            pl.BlockSpec((tm, K), lambda i: (i, 0)),
            pl.BlockSpec((K, N), lambda i: (0, 0)),
            pl.BlockSpec((1, N), lambda i: (0, 0)),
            pl.BlockSpec((tm, N), lambda i: (i, 0)),
        ],
        out_specs=pl.BlockSpec((tm, N), lambda i: (i, 0)),
        compiler_params=pltpu.CompilerParams(
            dimension_semantics=("parallel",), vmem_limit_bytes=_VMEM_LIMIT),
    )(h2d, w, bias.reshape(1, -1), res2d)


def _nearest_kernel(h_ref, dm_ref, p_ref, e_ref, esq_ref, idx_ref,
                    proj_sc, bd_ref, bi_ref, *, v_tile, v_total, inv_keep):
    # fused: dropout (precomputed keep-mask) + frozen random projection prologue
    # (hoisted to v == 0) + V-tiled nearest-codebook argmin with running
    # (min-dist, argmin) accumulators.  ||x||^2 is argmin-invariant and omitted;
    # codebook squared norms arrive precomputed via esq_ref.
    v = pl.program_id(3)

    @pl.when(v == 0)
    def _prologue():
        x = h_ref[0].astype(jnp.float32) * dm_ref[0].astype(jnp.float32) * inv_keep
        proj_sc[...] = jnp.dot(x.astype(jnp.bfloat16), p_ref[...],
                               preferred_element_type=jnp.float32).astype(jnp.bfloat16)
        bd_ref[...] = jnp.full_like(bd_ref, jnp.inf)
        bi_ref[...] = jnp.zeros_like(bi_ref)

    dot = jnp.dot(proj_sc[...], e_ref[0], preferred_element_type=jnp.float32)
    d = esq_ref[0] - 2.0 * dot                                  # (tT, tv)
    iota = lax.broadcasted_iota(jnp.int32, d.shape, 1)          # local lane iota
    dmin = jnp.min(d, axis=-1, keepdims=True)                   # (tT, 1)
    amin = jnp.min(jnp.where(d == dmin, iota, v_total), axis=-1,
                   keepdims=True) + v * v_tile
    take = dmin < bd_ref[...]                                   # first occurrence wins
    bi_ref[...] = jnp.where(take, amin, bi_ref[...])
    bd_ref[...] = jnp.where(take, dmin, bd_ref[...])

    @pl.when(v == pl.num_programs(3) - 1)
    def _fin():
        idx_ref[0, 0] = bi_ref[...]


def nearest_embeddings(h3, dropmask3, projection, emb, emb_sq, keep_prob, t_tile):
    B, Tp, D = h3.shape
    ncb, E, V = emb.shape
    tv = _tile_last(V, 4096)
    return pl.pallas_call(
        functools.partial(_nearest_kernel, v_tile=tv, v_total=V,
                          inv_keep=float(1.0 / keep_prob)),
        out_shape=jax.ShapeDtypeStruct((B, ncb, Tp, 1), jnp.int32),
        grid=(B, Tp // t_tile, ncb, V // tv),
        in_specs=[
            pl.BlockSpec((1, t_tile, D), lambda b, t, c, v: (b, t, 0)),
            pl.BlockSpec((1, t_tile, D), lambda b, t, c, v: (b, t, 0)),
            pl.BlockSpec((D, E), lambda b, t, c, v: (0, 0)),
            pl.BlockSpec((1, E, tv), lambda b, t, c, v: (c, 0, v)),
            pl.BlockSpec((1, 1, tv), lambda b, t, c, v: (c, 0, v)),
        ],
        out_specs=pl.BlockSpec((1, 1, t_tile, 1), lambda b, t, c, v: (b, c, t, 0)),
        scratch_shapes=[pltpu.VMEM((t_tile, E), jnp.bfloat16),
                        pltpu.VMEM((t_tile, 1), jnp.float32),
                        pltpu.VMEM((t_tile, 1), jnp.int32)],
        compiler_params=pltpu.CompilerParams(
            dimension_semantics=("parallel", "parallel", "parallel", "arbitrary"),
            vmem_limit_bytes=_VMEM_LIMIT),
    )(h3, dropmask3, projection, emb, emb_sq)


def _ce_fused_kernel(x_ref, g_ref, b_ref, w_ref, t_ref, ent_ref, corr_ref,
                     y_sc, m_ref, l_ref, tl_ref, bi_ref, *, eps, v_tile, v_total):
    # fused: after_norm prologue (hoisted to v == 0 into bf16 scratch) +
    # (T',D)@(D,V) logits block + online LSE / target-logit / running-argmax
    # accumulators.  The [B, ncb, T', V] logits tensor never reaches HBM.
    v = pl.program_id(3)

    @pl.when(v == 0)
    def _prologue():
        x = x_ref[0].astype(jnp.float32)
        mean = jnp.mean(x, axis=-1, keepdims=True)
        var = jnp.mean(jnp.square(x - mean), axis=-1, keepdims=True)
        y = (x - mean) * lax.rsqrt(var + eps) * g_ref[...] + b_ref[...]
        y_sc[...] = y.astype(jnp.bfloat16)
        m_ref[...] = jnp.full_like(m_ref, -jnp.inf)
        l_ref[...] = jnp.zeros_like(l_ref)
        tl_ref[...] = jnp.zeros_like(tl_ref)
        bi_ref[...] = jnp.zeros_like(bi_ref)

    s = jnp.dot(y_sc[...], w_ref[0], preferred_element_type=jnp.float32)  # (tT, tv)

    tgt = t_ref[0, 0]                                           # (tT, 1) int32
    iota = lax.broadcasted_iota(jnp.int32, s.shape, 1)          # single local iota
    tloc = tgt - v * v_tile                                     # local target column

    m_blk = jnp.max(s, axis=-1, keepdims=True)                  # (tT, 1)
    m_old = m_ref[...]
    # running argmax (first occurrence across V)
    a_blk = jnp.min(jnp.where(s == m_blk, iota, v_total), axis=-1, keepdims=True)
    bi_ref[...] = jnp.where(m_blk > m_old, a_blk + v * v_tile, bi_ref[...])
    # online logsumexp (all in f32)
    m_new = jnp.maximum(m_old, m_blk)
    l_ref[...] = l_ref[...] * jnp.exp(m_old - m_new) + \
        jnp.sum(jnp.exp(s - m_new), axis=-1, keepdims=True)
    m_ref[...] = m_new
    # target logit accumulation (local-index compare, same pass)
    tl_ref[...] += jnp.sum(jnp.where(iota == tloc, s, 0.0), axis=-1, keepdims=True)

    @pl.when(v == pl.num_programs(3) - 1)
    def _fin():
        ent_ref[0, 0] = m_ref[...] + jnp.log(l_ref[...]) - tl_ref[...]
        corr_ref[0, 0] = (bi_ref[...] == tgt).astype(jnp.float32)


def ce_topn_fused(x3, gamma, beta, w, targets4, eps, t_tile):
    B, Tp, D = x3.shape
    ncb, _, V = w.shape
    tv = _tile_last(V, 2048)
    return pl.pallas_call(
        functools.partial(_ce_fused_kernel, eps=eps, v_tile=tv, v_total=V),
        out_shape=(jax.ShapeDtypeStruct((B, ncb, Tp, 1), jnp.float32),
                   jax.ShapeDtypeStruct((B, ncb, Tp, 1), jnp.float32)),
        grid=(B, Tp // t_tile, ncb, V // tv),
        in_specs=[
            pl.BlockSpec((1, t_tile, D), lambda b, t, c, v: (b, t, 0)),
            pl.BlockSpec((1, D), lambda b, t, c, v: (0, 0)),
            pl.BlockSpec((1, D), lambda b, t, c, v: (0, 0)),
            pl.BlockSpec((1, D, tv), lambda b, t, c, v: (c, 0, v)),
            pl.BlockSpec((1, 1, t_tile, 1), lambda b, t, c, v: (b, c, t, 0)),
        ],
        out_specs=(pl.BlockSpec((1, 1, t_tile, 1), lambda b, t, c, v: (b, c, t, 0)),
                   pl.BlockSpec((1, 1, t_tile, 1), lambda b, t, c, v: (b, c, t, 0))),
        scratch_shapes=[pltpu.VMEM((t_tile, D), jnp.bfloat16),
                        pltpu.VMEM((t_tile, 1), jnp.float32),
                        pltpu.VMEM((t_tile, 1), jnp.float32),
                        pltpu.VMEM((t_tile, 1), jnp.float32),
                        pltpu.VMEM((t_tile, 1), jnp.int32)],
        compiler_params=pltpu.CompilerParams(
            dimension_semantics=("parallel", "parallel", "parallel", "arbitrary"),
            vmem_limit_bytes=_VMEM_LIMIT),
    )(x3, gamma.reshape(1, -1), beta.reshape(1, -1), w, targets4)


# -------------------------------- glue (JAX) --------------------------------

def compute_mask_indices(key, B, T, mask_prob, mask_length, min_masks):
    # jit-safe span sampling (fixed max span count, active-span masking).
    # TODO(synk): wenet's compute_mask_indices has slightly different randomness.
    mask_length = min(mask_length, T)
    est = mask_prob * T / float(mask_length)
    max_spans = max(min_masks, int(est) + 1)
    max_spans = max(1, min(max_spans, T // mask_length))
    k1, k2 = jax.random.split(key)
    eps = jax.random.uniform(k1, ())
    num_spans = jnp.clip(jnp.floor(est + eps).astype(jnp.int32),
                         min(min_masks, max_spans), max_spans)
    starts = jax.random.randint(k2, (B, max_spans), 0, max(1, T - mask_length + 1))
    active = jnp.arange(max_spans)[None, :, None] < num_spans
    pos = jnp.arange(T)[None, None, :]
    span = (pos >= starts[:, :, None]) & (pos < starts[:, :, None] + mask_length) & active
    return jnp.any(span, axis=1)                               # [B, T] bool


def bestrq_forward(params, cfg, xs, xs_lens, rng):
    eps = cfg['norm_epsilon']
    ncb = cfg['num_codebooks']
    V = cfg['num_embeddings']
    D = cfg['input_dim']
    F = cfg['num_mel_bins']
    sub = cfg['subsampling_rate']

    B, T, _ = xs.shape
    Tp = T // sub
    # Pad T' so it is tile aligned; 256-row time tiles fill v6e/v7x's 256x256 MXU.
    Tp_pad = _round_up(Tp, 8) if Tp <= 256 else _round_up(Tp, 256)
    t_tile = Tp_pad if Tp_pad <= 256 else 256

    # crop to a multiple of the subsampling rate, pad time so T' is tile-aligned.
    xs = xs[:, :Tp * sub, :]
    if Tp_pad > Tp:
        xs = jnp.pad(xs, ((0, 0), (0, (Tp_pad - Tp) * sub), (0, 0)))

    # 1) input LayerNorm over mel bins (row-tiled, bf16 output feeds the MXU).
    xs_n = layernorm_rows(xs.reshape(B * Tp_pad * sub, F),
                          params['input_ln_g'], params['input_ln_b'],
                          eps, out_dtype=jnp.bfloat16)

    # 2) random span mask + length mask.
    k_mask, k_drop = jax.random.split(rng)
    masked_masks = compute_mask_indices(k_mask, B, Tp_pad, cfg['mask_prob'],
                                        cfg['mask_length'], cfg['min_masks'])
    new_lens = jnp.minimum(xs_lens // sub, Tp)
    len_mask = jnp.arange(Tp_pad)[None, :] < new_lens[:, None]            # [B, T']

    # 3) stack-4 "embed" matmul + bias, mask_emb replacement fused in the epilogue.
    stacked = xs_n.reshape(B * Tp_pad, sub * F)
    h2d, masked2d = embed_project(stacked, params['embed_w'], params['embed_b'],
                                  masked_masks.reshape(-1, 1).astype(jnp.float32),
                                  params['mask_emb'])

    # 4) targets: dropout + frozen projection + V-tiled nearest-codebook argmin,
    #    all in one kernel.  Keep mask is generated with jax.random (no in-kernel
    #    PRNG -> interpret-mode / CPU safe).  Output is [B, ncb, T', 1] int32.
    keep_prob = 1.0 - cfg['dropout_rate']
    dropmask = jax.random.bernoulli(k_drop, keep_prob,
                                    (B, Tp_pad, D)).astype(jnp.bfloat16)
    target_ids = nearest_embeddings(h2d.reshape(B, Tp_pad, D), dropmask,
                                    params['projection'], params['embeddings'],
                                    params['embeddings_sq'], keep_prob, t_tile)

    # 5) synthetic encoder: pre-LN FFN blocks (LN fused as matmul prologue,
    #    bias/ReLU and bias/residual fused as epilogues, weights VMEM-resident).
    # TODO(synk): the real wenet encoder (self-attention / conv / pos-emb) is an
    # external module; FFN-only blocks stand in for it here.
    out2d = masked2d
    for lp in params['layers']:
        hid = ln_matmul(out2d, lp['ln_g'], lp['ln_b'], lp['w1'], lp['b1'],
                        eps, relu=True, out_dtype=jnp.bfloat16)
        out2d = matmul_residual(hid, lp['w2'], lp['b2'], out2d)

    # 6+7) fused after_norm + out @ encoder_top_n_out + masked CE / accuracy.
    ent4, corr4 = ce_topn_fused(out2d.reshape(B, Tp_pad, D),
                                params['after_ln_g'], params['after_ln_b'],
                                params['encoder_top_n_out'], target_ids,
                                eps, t_tile)
    ent = ent4[..., 0]                                                     # [B,ncb,T']
    corr = corr4[..., 0]

    final_mask = jnp.logical_and(len_mask, masked_masks).astype(jnp.float32)
    denom = final_mask.sum() * ncb
    loss = (ent * final_mask[:, None, :]).sum() / denom
    codes_acc = (corr * final_mask[:, None, :]).sum() / denom
    num_codes = denom

    # uniq_num_codes: jit-safe fixed-size bincount of (target_ids * mask), which
    # matches the reference's torch.unique(target_ids * masks) semantics
    # (masked-out positions conflate with code 0, exactly like the reference).
    tids = target_ids[..., 0]
    vals = (tids * final_mask[:, None, :].astype(tids.dtype)).reshape(-1)
    uniq = (jnp.bincount(vals, length=V) > 0).sum().astype(jnp.int32)

    return {'codes_acc': codes_acc, 'loss': loss,
            'num_codes': num_codes, 'uniq_num_codes': uniq}


# -------------------------- deterministic param init ------------------------

def init_params(key, cfg):
    F = cfg['num_mel_bins']
    D = cfg['input_dim']
    E = cfg['embedding_dim']
    V = cfg['num_embeddings']
    ncb = cfg['num_codebooks']
    L = cfg['num_layers']
    sub = cfg['subsampling_rate']
    ks = jax.random.split(key, 5 + 2 * L)

    bf = jnp.bfloat16  # MXU-side weights are pre-cast once; LN/bias stay f32.
    p = {}
    p['input_ln_g'] = jnp.ones((F,), jnp.float32)
    p['input_ln_b'] = jnp.zeros((F,), jnp.float32)
    p['mask_emb'] = 0.1 * jax.random.truncated_normal(ks[0], -2.0, 2.0, (D,), jnp.float32)
    p['encoder_top_n_out'] = (0.02 * jax.random.normal(ks[1], (ncb, D, V), jnp.float32)).astype(bf)
    limit = (6.0 / (D + E)) ** 0.5                                        # xavier_uniform
    p['projection'] = jax.random.uniform(ks[2], (D, E), jnp.float32, -limit, limit).astype(bf)
    p['embeddings'] = jax.random.normal(ks[3], (ncb, E, V), jnp.float32).astype(bf)
    # codebook squared norms precomputed once (frozen buffer, [ncb, 1, V] f32).
    p['embeddings_sq'] = jnp.sum(jnp.square(p['embeddings'].astype(jnp.float32)),
                                 axis=1, keepdims=True)
    p['embed_w'] = (0.02 * jax.random.normal(ks[4], (sub * F, D), jnp.float32)).astype(bf)
    p['embed_b'] = jnp.zeros((D,), jnp.float32)
    p['after_ln_g'] = jnp.ones((D,), jnp.float32)
    p['after_ln_b'] = jnp.zeros((D,), jnp.float32)
    layers = []
    for i in range(L):
        k1, k2 = ks[5 + 2 * i], ks[6 + 2 * i]
        layers.append(dict(
            ln_g=jnp.ones((D,), jnp.float32), ln_b=jnp.zeros((D,), jnp.float32),
            w1=(0.02 * jax.random.normal(k1, (D, 2 * D), jnp.float32)).astype(bf),
            b1=jnp.zeros((2 * D,), jnp.float32),
            w2=(0.02 * jax.random.normal(k2, (2 * D, D), jnp.float32)).astype(bf),
            b2=jnp.zeros((D,), jnp.float32)))
    p['layers'] = layers
    return p


if __name__ == "__main__":
    cfg = dict(
        num_mel_bins=16,      # small stand-in for 80
        input_dim=32,         # == encoder output_size()
        embedding_dim=16,
        num_embeddings=128,   # small stand-in for 8192
        num_codebooks=2,
        mask_prob=0.01,
        mask_length=3,
        min_masks=2,
        norm_epsilon=1e-5,
        dropout_rate=0.1,
        num_layers=2,
        subsampling_rate=4,
    )
    key = jax.random.PRNGKey(0)
    kp, kx, kr = jax.random.split(key, 3)
    params = init_params(kp, cfg)

    B, T = 2, 32
    xs = jax.random.normal(kx, (B, T, cfg['num_mel_bins']), jnp.float32)
    xs_lens = jnp.array([T, T - 4], jnp.int32)

    fwd = jax.jit(lambda p, x, l, r: bestrq_forward(p, cfg, x, l, r))
    out = fwd(params, xs, xs_lens, kr)
    jax.block_until_ready(out['loss'])
    jax.block_until_ready(out['codes_acc'])
    jax.block_until_ready(out['num_codes'])
    jax.block_until_ready(out['uniq_num_codes'])
    assert bool(jnp.isfinite(out['loss'])) and bool(jnp.isfinite(out['codes_acc']))
    print("KERNEL_OK")
</pallas_src>

<mosaic_0001>
module attributes {stable_mosaic.version = 11 : i64} {
  func.func private @main(%arg0: i32) attributes {dimension_semantics = [#tpu.dimension_semantics<core_parallel>], iteration_bounds = array<i64: 2>, tpu.core_type = #tpu.core_type<sc_scalar_subcore>, window_params = []} {
    return
  }
}

module attributes {stable_mosaic.version = 11 : i64} {
  func.func private @main(%arg0: i32) attributes {dimension_semantics = [#tpu.dimension_semantics<core_parallel>], iteration_bounds = array<i64: 2>, tpu.core_type = #tpu.core_type<sc_scalar_subcore>, window_params = []} {
    return
  }
}

module attributes {stable_mosaic.version = 11 : i64} {
  func.func @_ln_rows_kernel(%arg0: i32, %arg1: memref<64x16xf32, #tpu.memory_space<vmem>>, %arg2: memref<1x16xf32, #tpu.memory_space<vmem>>, %arg3: memref<1x16xf32, #tpu.memory_space<vmem>>, %arg4: memref<64x16xbf16, #tpu.memory_space<vmem>>) attributes {dimension_semantics = [#tpu.dimension_semantics<parallel>], iteration_bounds = array<i64: 1>, scalar_prefetch = 0 : i64, scratch_operands = 0 : i64, tpu.core_type = #tpu.core_type<tc>, window_params = [{transform_indices = @transform_0, window_bounds = array<i64: 64, 16>}, {pipeline_mode = #tpu.pipeline_mode<synchronous>, transform_indices = @transform_1, window_bounds = array<i64: 1, 16>}, {pipeline_mode = #tpu.pipeline_mode<synchronous>, transform_indices = @transform_2, window_bounds = array<i64: 1, 16>}, {transform_indices = @transform_3, window_bounds = array<i64: 64, 16>}]} {
    %c0 = arith.constant 0 : index
    %c0_0 = arith.constant 0 : index
    %0 = vector.load %arg1[%c0, %c0_0] : memref<64x16xf32, #tpu.memory_space<vmem>>, vector<64x16xf32>
    %cst = arith.constant dense<0.000000e+00> : vector<64xf32>
    %1 = vector.multi_reduction <add>, %0, %cst [1] : vector<64x16xf32> to vector<64xf32>
    %2 = vector.shape_cast %1 : vector<64xf32> to vector<64x1xf32>
    %cst_1 = arith.constant 1.600000e+01 : f32
    %3 = vector.broadcast %cst_1 : f32 to vector<64x1xf32>
    %4 = arith.divf %2, %3 : vector<64x1xf32>
    %5 = vector.broadcast %4 : vector<64x1xf32> to vector<64x16xf32>
    %6 = arith.subf %0, %5 : vector<64x16xf32>
    %7 = arith.mulf %6, %6 : vector<64x16xf32>
    %cst_2 = arith.constant dense<0.000000e+00> : vector<64xf32>
    %8 = vector.multi_reduction <add>, %7, %cst_2 [1] : vector<64x16xf32> to vector<64xf32>
    %9 = vector.shape_cast %8 : vector<64xf32> to vector<64x1xf32>
    %cst_3 = arith.constant 1.600000e+01 : f32
    %10 = vector.broadcast %cst_3 : f32 to vector<64x1xf32>
    %11 = arith.divf %9, %10 : vector<64x1xf32>
    %12 = vector.broadcast %4 : vector<64x1xf32> to vector<64x16xf32>
    %13 = arith.subf %0, %12 : vector<64x16xf32>
    %cst_4 = arith.constant 9.99999974E-6 : f32
    %14 = vector.broadcast %cst_4 : f32 to vector<64x1xf32>
    %15 = arith.addf %11, %14 : vector<64x1xf32>
    %16 = math.rsqrt %15 : vector<64x1xf32>
    %17 = vector.broadcast %16 : vector<64x1xf32> to vector<64x16xf32>
    %18 = arith.mulf %13, %17 : vector<64x16xf32>
    %c0_5 = arith.constant 0 : index
    %c0_6 = arith.constant 0 : index
    %19 = vector.load %arg2[%c0_5, %c0_6] : memref<1x16xf32, #tpu.memory_space<vmem>>, vector<1x16xf32>
    %20 = vector.broadcast %19 : vector<1x16xf32> to vector<64x16xf32>
    %21 = arith.mulf %18, %20 : vector<64x16xf32>
    %c0_7 = arith.constant 0 : index
    %c0_8 = arith.constant 0 : index
    %22 = vector.load %arg3[%c0_7, %c0_8] : memref<1x16xf32, #tpu.memory_space<vmem>>, vector<1x16xf32>
    %23 = vector.broadcast %22 : vector<1x16xf32> to vector<64x16xf32>
    %24 = arith.addf %21, %23 : vector<64x16xf32>
    %25 = arith.truncf %24 : vector<64x16xf32> to vector<64x16xbf16>
    %c0_9 = arith.constant 0 : index
    %c0_10 = arith.constant 0 : index
    %26 = vector.load %arg4[%c0_9, %c0_10] : memref<64x16xbf16, #tpu.memory_space<vmem>>, vector<64x16xbf16>
    tpu.vector_store %arg4[%c0_9, %c0_10], %25 {strides = array<i32>} : memref<64x16xbf16, #tpu.memory_space<vmem>>, vector<64x16xbf16>,
    return
  }
  func.func @transform_0(%arg0: i32) -> (i32, i32) {
    %c0_i32 = arith.constant 0 : i32
    %c0_i32_0 = arith.constant 0 : i32
    return %arg0, %c0_i32 : i32, i32
  }
  func.func @transform_1(%arg0: i32) -> (i32, i32) {
    %c0_i32 = arith.constant 0 : i32
    %c0_i32_0 = arith.constant 0 : i32
    %c0_i32_1 = arith.constant 0 : i32
    return %c0_i32, %c0_i32_0 : i32, i32
  }
  func.func @transform_2(%arg0: i32) -> (i32, i32) {
    %c0_i32 = arith.constant 0 : i32
    %c0_i32_0 = arith.constant 0 : i32
    %c0_i32_1 = arith.constant 0 : i32
    return %c0_i32, %c0_i32_0 : i32, i32
  }
  func.func @transform_3(%arg0: i32) -> (i32, i32) {
    %c0_i32 = arith.constant 0 : i32
    %c0_i32_0 = arith.constant 0 : i32
    return %arg0, %c0_i32 : i32, i32
  }
}

module attributes {stable_mosaic.version = 11 : i64} {
  func.func @_embed_kernel(%arg0: i32, %arg1: memref<16x64xbf16, #tpu.memory_space<vmem>>, %arg2: memref<64x32xbf16, #tpu.memory_space<vmem>>, %arg3: memref<1x32xf32, #tpu.memory_space<vmem>>, %arg4: memref<16x1xf32, #tpu.memory_space<vmem>>, %arg5: memref<1x32xf32, #tpu.memory_space<vmem>>, %arg6: memref<16x32xbf16, #tpu.memory_space<vmem>>, %arg7: memref<16x32xbf16, #tpu.memory_space<vmem>>) attributes {dimension_semantics = [#tpu.dimension_semantics<parallel>], iteration_bounds = array<i64: 1>, scalar_prefetch = 0 : i64, scratch_operands = 0 : i64, tpu.core_type = #tpu.core_type<tc>, window_params = [{transform_indices = @transform_0, window_bounds = array<i64: 16, 64>}, {pipeline_mode = #tpu.pipeline_mode<synchronous>, transform_indices = @transform_1, window_bounds = array<i64: 64, 32>}, {pipeline_mode = #tpu.pipeline_mode<synchronous>, transform_indices = @transform_2, window_bounds = array<i64: 1, 32>}, {transform_indices = @transform_3, window_bounds = array<i64: 16, 1>}, {pipeline_mode = #tpu.pipeline_mode<synchronous>, transform_indices = @transform_4, window_bounds = array<i64: 1, 32>}, {transform_indices = @transform_5, window_bounds = array<i64: 16, 32>}, {transform_indices = @transform_6, window_bounds = array<i64: 16, 32>}]} {
    %c0 = arith.constant 0 : index
    %c0_0 = arith.constant 0 : index
    %0 = vector.load %arg1[%c0, %c0_0] : memref<16x64xbf16, #tpu.memory_space<vmem>>, vector<16x64xbf16>
    %c0_1 = arith.constant 0 : index
    %c0_2 = arith.constant 0 : index
    %1 = vector.load %arg2[%c0_1, %c0_2] : memref<64x32xbf16, #tpu.memory_space<vmem>>, vector<64x32xbf16>
    %cst = arith.constant dense<0.000000e+00> : vector<16x32xf32>
    %2 = tpu.matmul %0, %1, %cst {dimension_numbers = #tpu.dot_dimension_numbers<[1], [0], [0], [1], [0, 0, 1, 1], [], []>} : vector<16x64xbf16>, vector<64x32xbf16>, vector<16x32xf32> -> vector<16x32xf32>
    %c0_3 = arith.constant 0 : index
    %c0_4 = arith.constant 0 : index
    %3 = vector.load %arg3[%c0_3, %c0_4] : memref<1x32xf32, #tpu.memory_space<vmem>>, vector<1x32xf32>
    %4 = vector.broadcast %3 : vector<1x32xf32> to vector<16x32xf32>
    %5 = arith.addf %2, %4 : vector<16x32xf32>
    %6 = arith.truncf %5 : vector<16x32xf32> to vector<16x32xbf16>
    %c0_5 = arith.constant 0 : index
    %c0_6 = arith.constant 0 : index
    %7 = vector.load %arg6[%c0_5, %c0_6] : memref<16x32xbf16, #tpu.memory_space<vmem>>, vector<16x32xbf16>
    tpu.vector_store %arg6[%c0_5, %c0_6], %6 {strides = array<i32>} : memref<16x32xbf16, #tpu.memory_space<vmem>>, vector<16x32xbf16>,
    %c0_7 = arith.constant 0 : index
    %c0_8 = arith.constant 0 : index
    %8 = vector.load %arg4[%c0_7, %c0_8] : memref<16x1xf32, #tpu.memory_space<vmem>>, vector<16x1xf32>
    %cst_9 = arith.constant 5.000000e-01 : f32
    %9 = vector.broadcast %cst_9 : f32 to vector<16x1xf32>
    %10 = arith.cmpf ogt, %8, %9 : vector<16x1xf32>
    %c0_10 = arith.constant 0 : index
    %c0_11 = arith.constant 0 : index
    %11 = vector.load %arg5[%c0_10, %c0_11] : memref<1x32xf32, #tpu.memory_space<vmem>>, vector<1x32xf32>
    %12 = vector.shape_cast %10 : vector<16x1xi1> to vector<16x1xi1>
    %13 = vector.broadcast %12 : vector<16x1xi1> to vector<16x32xi1>
    %14 = vector.shape_cast %11 : vector<1x32xf32> to vector<1x32xf32>
    %15 = vector.broadcast %14 : vector<1x32xf32> to vector<16x32xf32>
    %16 = arith.select %13, %15, %5 : vector<16x32xi1>, vector<16x32xf32>
    %17 = arith.truncf %16 : vector<16x32xf32> to vector<16x32xbf16>
    %c0_12 = arith.constant 0 : index
    %c0_13 = arith.constant 0 : index
    %18 = vector.load %arg7[%c0_12, %c0_13] : memref<16x32xbf16, #tpu.memory_space<vmem>>, vector<16x32xbf16>
    tpu.vector_store %arg7[%c0_12, %c0_13], %17 {strides = array<i32>} : memref<16x32xbf16, #tpu.memory_space<vmem>>, vector<16x32xbf16>,
    return
  }
  func.func @transform_0(%arg0: i32) -> (i32, i32) {
    %c0_i32 = arith.constant 0 : i32
    %c0_i32_0 = arith.constant 0 : i32
    return %arg0, %c0_i32 : i32, i32
  }
  func.func @transform_1(%arg0: i32) -> (i32, i32) {
    %c0_i32 = arith.constant 0 : i32
    %c0_i32_0 = arith.constant 0 : i32
    %c0_i32_1 = arith.constant 0 : i32
    return %c0_i32, %c0_i32_0 : i32, i32
  }
  func.func @transform_2(%arg0: i32) -> (i32, i32) {
    %c0_i32 = arith.constant 0 : i32
    %c0_i32_0 = arith.constant 0 : i32
    %c0_i32_1 = arith.constant 0 : i32
    return %c0_i32, %c0_i32_0 : i32, i32
  }
  func.func @transform_3(%arg0: i32) -> (i32, i32) {
    %c0_i32 = arith.constant 0 : i32
    %c0_i32_0 = arith.constant 0 : i32
    return %arg0, %c0_i32 : i32, i32
  }
  func.func @transform_4(%arg0: i32) -> (i32, i32) {
    %c0_i32 = arith.constant 0 : i32
    %c0_i32_0 = arith.constant 0 : i32
    %c0_i32_1 = arith.constant 0 : i32
    return %c0_i32, %c0_i32_0 : i32, i32
  }
  func.func @transform_5(%arg0: i32) -> (i32, i32) {
    %c0_i32 = arith.constant 0 : i32
    %c0_i32_0 = arith.constant 0 : i32
    return %arg0, %c0_i32 : i32, i32
  }
  func.func @transform_6(%arg0: i32) -> (i32, i32) {
    %c0_i32 = arith.constant 0 : i32
    %c0_i32_0 = arith.constant 0 : i32
    return %arg0, %c0_i32 : i32, i32
  }
}

module attributes {stable_mosaic.version = 11 : i64} {
  func.func @_mm_res_kernel(%arg0: i32, %arg1: memref<16x64xbf16, #tpu.memory_space<vmem>>, %arg2: memref<64x32xbf16, #tpu.memory_space<vmem>>, %arg3: memref<1x32xf32, #tpu.memory_space<vmem>>, %arg4: memref<16x32xbf16, #tpu.memory_space<vmem>>, %arg5: memref<16x32xf32, #tpu.memory_space<vmem>>) attributes {dimension_semantics = [#tpu.dimension_semantics<parallel>], iteration_bounds = array<i64: 1>, scalar_prefetch = 0 : i64, scratch_operands = 0 : i64, tpu.core_type = #tpu.core_type<tc>, window_params = [{transform_indices = @transform_0, window_bounds = array<i64: 16, 64>}, {pipeline_mode = #tpu.pipeline_mode<synchronous>, transform_indices = @transform_1, window_bounds = array<i64: 64, 32>}, {pipeline_mode = #tpu.pipeline_mode<synchronous>, transform_indices = @transform_2, window_bounds = array<i64: 1, 32>}, {transform_indices = @transform_3, window_bounds = array<i64: 16, 32>}, {transform_indices = @transform_4, window_bounds = array<i64: 16, 32>}]} {
    %c0 = arith.constant 0 : index
    %c0_0 = arith.constant 0 : index
    %0 = vector.load %arg1[%c0, %c0_0] : memref<16x64xbf16, #tpu.memory_space<vmem>>, vector<16x64xbf16>
    %c0_1 = arith.constant 0 : index
    %c0_2 = arith.constant 0 : index
    %1 = vector.load %arg2[%c0_1, %c0_2] : memref<64x32xbf16, #tpu.memory_space<vmem>>, vector<64x32xbf16>
    %cst = arith.constant dense<0.000000e+00> : vector<16x32xf32>
    %2 = tpu.matmul %0, %1, %cst {dimension_numbers = #tpu.dot_dimension_numbers<[1], [0], [0], [1], [0, 0, 1, 1], [], []>} : vector<16x64xbf16>, vector<64x32xbf16>, vector<16x32xf32> -> vector<16x32xf32>
    %c0_3 = arith.constant 0 : index
    %c0_4 = arith.constant 0 : index
    %3 = vector.load %arg3[%c0_3, %c0_4] : memref<1x32xf32, #tpu.memory_space<vmem>>, vector<1x32xf32>
    %4 = vector.broadcast %3 : vector<1x32xf32> to vector<16x32xf32>
    %5 = arith.addf %2, %4 : vector<16x32xf32>
    %c0_5 = arith.constant 0 : index
    %c0_6 = arith.constant 0 : index
    %6 = vector.load %arg4[%c0_5, %c0_6] : memref<16x32xbf16, #tpu.memory_space<vmem>>, vector<16x32xbf16>
    %7 = arith.extf %6 : vector<16x32xbf16> to vector<16x32xf32>
    %8 = arith.addf %5, %7 : vector<16x32xf32>
    %c0_7 = arith.constant 0 : index
    %c0_8 = arith.constant 0 : index
    %9 = vector.load %arg5[%c0_7, %c0_8] : memref<16x32xf32, #tpu.memory_space<vmem>>, vector<16x32xf32>
    tpu.vector_store %arg5[%c0_7, %c0_8], %8 {strides = array<i32>} : memref<16x32xf32, #tpu.memory_space<vmem>>, vector<16x32xf32>,
    return
  }
  func.func @transform_0(%arg0: i32) -> (i32, i32) {
    %c0_i32 = arith.constant 0 : i32
    %c0_i32_0 = arith.constant 0 : i32
    return %arg0, %c0_i32 : i32, i32
  }
  func.func @transform_1(%arg0: i32) -> (i32, i32) {
    %c0_i32 = arith.constant 0 : i32
    %c0_i32_0 = arith.constant 0 : i32
    %c0_i32_1 = arith.constant 0 : i32
    return %c0_i32, %c0_i32_0 : i32, i32
  }
  func.func @transform_2(%arg0: i32) -> (i32, i32) {
    %c0_i32 = arith.constant 0 : i32
    %c0_i32_0 = arith.constant 0 : i32
    %c0_i32_1 = arith.constant 0 : i32
    return %c0_i32, %c0_i32_0 : i32, i32
  }
  func.func @transform_3(%arg0: i32) -> (i32, i32) {
    %c0_i32 = arith.constant 0 : i32
    %c0_i32_0 = arith.constant 0 : i32
    return %arg0, %c0_i32 : i32, i32
  }
  func.func @transform_4(%arg0: i32) -> (i32, i32) {
    %c0_i32 = arith.constant 0 : i32
    %c0_i32_0 = arith.constant 0 : i32
    return %arg0, %c0_i32 : i32, i32
  }
}

module attributes {stable_mosaic.version = 11 : i64} {
  func.func @_ln_mm_kernel(%arg0: i32, %arg1: memref<16x32xbf16, #tpu.memory_space<vmem>>, %arg2: memref<1x32xf32, #tpu.memory_space<vmem>>, %arg3: memref<1x32xf32, #tpu.memory_space<vmem>>, %arg4: memref<32x64xbf16, #tpu.memory_space<vmem>>, %arg5: memref<1x64xf32, #tpu.memory_space<vmem>>, %arg6: memref<16x64xbf16, #tpu.memory_space<vmem>>) attributes {dimension_semantics = [#tpu.dimension_semantics<parallel>], iteration_bounds = array<i64: 1>, scalar_prefetch = 0 : i64, scratch_operands = 0 : i64, tpu.core_type = #tpu.core_type<tc>, window_params = [{transform_indices = @transform_0, window_bounds = array<i64: 16, 32>}, {pipeline_mode = #tpu.pipeline_mode<synchronous>, transform_indices = @transform_1, window_bounds = array<i64: 1, 32>}, {pipeline_mode = #tpu.pipeline_mode<synchronous>, transform_indices = @transform_2, window_bounds = array<i64: 1, 32>}, {pipeline_mode = #tpu.pipeline_mode<synchronous>, transform_indices = @transform_3, window_bounds = array<i64: 32, 64>}, {pipeline_mode = #tpu.pipeline_mode<synchronous>, transform_indices = @transform_4, window_bounds = array<i64: 1, 64>}, {transform_indices = @transform_5, window_bounds = array<i64: 16, 64>}]} {
    %c0 = arith.constant 0 : index
    %c0_0 = arith.constant 0 : index
    %0 = vector.load %arg1[%c0, %c0_0] : memref<16x32xbf16, #tpu.memory_space<vmem>>, vector<16x32xbf16>
    %1 = arith.extf %0 : vector<16x32xbf16> to vector<16x32xf32>
    %cst = arith.constant dense<0.000000e+00> : vector<16xf32>
    %2 = vector.multi_reduction <add>, %1, %cst [1] : vector<16x32xf32> to vector<16xf32>
    %3 = vector.shape_cast %2 : vector<16xf32> to vector<16x1xf32>
    %cst_1 = arith.constant 3.200000e+01 : f32
    %4 = vector.broadcast %cst_1 : f32 to vector<16x1xf32>
    %5 = arith.divf %3, %4 : vector<16x1xf32>
    %6 = vector.broadcast %5 : vector<16x1xf32> to vector<16x32xf32>
    %7 = arith.subf %1, %6 : vector<16x32xf32>
    %8 = arith.mulf %7, %7 : vector<16x32xf32>
    %cst_2 = arith.constant dense<0.000000e+00> : vector<16xf32>
    %9 = vector.multi_reduction <add>, %8, %cst_2 [1] : vector<16x32xf32> to vector<16xf32>
    %10 = vector.shape_cast %9 : vector<16xf32> to vector<16x1xf32>
    %cst_3 = arith.constant 3.200000e+01 : f32
    %11 = vector.broadcast %cst_3 : f32 to vector<16x1xf32>
    %12 = arith.divf %10, %11 : vector<16x1xf32>
    %13 = vector.broadcast %5 : vector<16x1xf32> to vector<16x32xf32>
    %14 = arith.subf %1, %13 : vector<16x32xf32>
    %cst_4 = arith.constant 9.99999974E-6 : f32
    %15 = vector.broadcast %cst_4 : f32 to vector<16x1xf32>
    %16 = arith.addf %12, %15 : vector<16x1xf32>
    %17 = math.rsqrt %16 : vector<16x1xf32>
    %18 = vector.broadcast %17 : vector<16x1xf32> to vector<16x32xf32>
    %19 = arith.mulf %14, %18 : vector<16x32xf32>
    %c0_5 = arith.constant 0 : index
    %c0_6 = arith.constant 0 : index
    %20 = vector.load %arg2[%c0_5, %c0_6] : memref<1x32xf32, #tpu.memory_space<vmem>>, vector<1x32xf32>
    %21 = vector.broadcast %20 : vector<1x32xf32> to vector<16x32xf32>
    %22 = arith.mulf %19, %21 : vector<16x32xf32>
    %c0_7 = arith.constant 0 : index
    %c0_8 = arith.constant 0 : index
    %23 = vector.load %arg3[%c0_7, %c0_8] : memref<1x32xf32, #tpu.memory_space<vmem>>, vector<1x32xf32>
    %24 = vector.broadcast %23 : vector<1x32xf32> to vector<16x32xf32>
    %25 = arith.addf %22, %24 : vector<16x32xf32>
    %26 = arith.truncf %25 : vector<16x32xf32> to vector<16x32xbf16>
    %c0_9 = arith.constant 0 : index
    %c0_10 = arith.constant 0 : index
    %27 = vector.load %arg4[%c0_9, %c0_10] : memref<32x64xbf16, #tpu.memory_space<vmem>>, vector<32x64xbf16>
    %cst_11 = arith.constant dense<0.000000e+00> : vector<16x64xf32>
    %28 = tpu.matmul %26, %27, %cst_11 {dimension_numbers = #tpu.dot_dimension_numbers<[1], [0], [0], [1], [0, 0, 1, 1], [], []>} : vector<16x32xbf16>, vector<32x64xbf16>, vector<16x64xf32> -> vector<16x64xf32>
    %c0_12 = arith.constant 0 : index
    %c0_13 = arith.constant 0 : index
    %29 = vector.load %arg5[%c0_12, %c0_13] : memref<1x64xf32, #tpu.memory_space<vmem>>, vector<1x64xf32>
    %30 = vector.broadcast %29 : vector<1x64xf32> to vector<16x64xf32>
    %31 = arith.addf %28, %30 : vector<16x64xf32>
    %cst_14 = arith.constant 0.000000e+00 : f32
    %32 = vector.broadcast %cst_14 : f32 to vector<16x64xf32>
    %33 = arith.maximumf %31, %32 : vector<16x64xf32>
    %34 = arith.truncf %33 : vector<16x64xf32> to vector<16x64xbf16>
    %c0_15 = arith.constant 0 : index
    %c0_16 = arith.constant 0 : index
    %35 = vector.load %arg6[%c0_15, %c0_16] : memref<16x64xbf16, #tpu.memory_space<vmem>>, vector<16x64xbf16>
    tpu.vector_store %arg6[%c0_15, %c0_16], %34 {strides = array<i32>} : memref<16x64xbf16, #tpu.memory_space<vmem>>, vector<16x64xbf16>,
    return
  }
  func.func @transform_0(%arg0: i32) -> (i32, i32) {
    %c0_i32 = arith.constant 0 : i32
    %c0_i32_0 = arith.constant 0 : i32
    return %arg0, %c0_i32 : i32, i32
  }
  func.func @transform_1(%arg0: i32) -> (i32, i32) {
    %c0_i32 = arith.constant 0 : i32
    %c0_i32_0 = arith.constant 0 : i32
    %c0_i32_1 = arith.constant 0 : i32
    return %c0_i32, %c0_i32_0 : i32, i32
  }
  func.func @transform_2(%arg0: i32) -> (i32, i32) {
    %c0_i32 = arith.constant 0 : i32
    %c0_i32_0 = arith.constant 0 : i32
    %c0_i32_1 = arith.constant 0 : i32
    return %c0_i32, %c0_i32_0 : i32, i32
  }
  func.func @transform_3(%arg0: i32) -> (i32, i32) {
    %c0_i32 = arith.constant 0 : i32
    %c0_i32_0 = arith.constant 0 : i32
    %c0_i32_1 = arith.constant 0 : i32
    return %c0_i32, %c0_i32_0 : i32, i32
  }
  func.func @transform_4(%arg0: i32) -> (i32, i32) {
    %c0_i32 = arith.constant 0 : i32
    %c0_i32_0 = arith.constant 0 : i32
    %c0_i32_1 = arith.constant 0 : i32
    return %c0_i32, %c0_i32_0 : i32, i32
  }
  func.func @transform_5(%arg0: i32) -> (i32, i32) {
    %c0_i32 = arith.constant 0 : i32
    %c0_i32_0 = arith.constant 0 : i32
    return %arg0, %c0_i32 : i32, i32
  }
}

module attributes {stable_mosaic.version = 11 : i64} {
  func.func @_ln_mm_kernel(%arg0: i32, %arg1: memref<16x32xf32, #tpu.memory_space<vmem>>, %arg2: memref<1x32xf32, #tpu.memory_space<vmem>>, %arg3: memref<1x32xf32, #tpu.memory_space<vmem>>, %arg4: memref<32x64xbf16, #tpu.memory_space<vmem>>, %arg5: memref<1x64xf32, #tpu.memory_space<vmem>>, %arg6: memref<16x64xbf16, #tpu.memory_space<vmem>>) attributes {dimension_semantics = [#tpu.dimension_semantics<parallel>], iteration_bounds = array<i64: 1>, scalar_prefetch = 0 : i64, scratch_operands = 0 : i64, tpu.core_type = #tpu.core_type<tc>, window_params = [{transform_indices = @transform_0, window_bounds = array<i64: 16, 32>}, {pipeline_mode = #tpu.pipeline_mode<synchronous>, transform_indices = @transform_1, window_bounds = array<i64: 1, 32>}, {pipeline_mode = #tpu.pipeline_mode<synchronous>, transform_indices = @transform_2, window_bounds = array<i64: 1, 32>}, {pipeline_mode = #tpu.pipeline_mode<synchronous>, transform_indices = @transform_3, window_bounds = array<i64: 32, 64>}, {pipeline_mode = #tpu.pipeline_mode<synchronous>, transform_indices = @transform_4, window_bounds = array<i64: 1, 64>}, {transform_indices = @transform_5, window_bounds = array<i64: 16, 64>}]} {
    %c0 = arith.constant 0 : index
    %c0_0 = arith.constant 0 : index
    %0 = vector.load %arg1[%c0, %c0_0] : memref<16x32xf32, #tpu.memory_space<vmem>>, vector<16x32xf32>
    %cst = arith.constant dense<0.000000e+00> : vector<16xf32>
    %1 = vector.multi_reduction <add>, %0, %cst [1] : vector<16x32xf32> to vector<16xf32>
    %2 = vector.shape_cast %1 : vector<16xf32> to vector<16x1xf32>
    %cst_1 = arith.constant 3.200000e+01 : f32
    %3 = vector.broadcast %cst_1 : f32 to vector<16x1xf32>
    %4 = arith.divf %2, %3 : vector<16x1xf32>
    %5 = vector.broadcast %4 : vector<16x1xf32> to vector<16x32xf32>
    %6 = arith.subf %0, %5 : vector<16x32xf32>
    %7 = arith.mulf %6, %6 : vector<16x32xf32>
    %cst_2 = arith.constant dense<0.000000e+00> : vector<16xf32>
    %8 = vector.multi_reduction <add>, %7, %cst_2 [1] : vector<16x32xf32> to vector<16xf32>
    %9 = vector.shape_cast %8 : vector<16xf32> to vector<16x1xf32>
    %cst_3 = arith.constant 3.200000e+01 : f32
    %10 = vector.broadcast %cst_3 : f32 to vector<16x1xf32>
    %11 = arith.divf %9, %10 : vector<16x1xf32>
    %12 = vector.broadcast %4 : vector<16x1xf32> to vector<16x32xf32>
    %13 = arith.subf %0, %12 : vector<16x32xf32>
    %cst_4 = arith.constant 9.99999974E-6 : f32
    %14 = vector.broadcast %cst_4 : f32 to vector<16x1xf32>
    %15 = arith.addf %11, %14 : vector<16x1xf32>
    %16 = math.rsqrt %15 : vector<16x1xf32>
    %17 = vector.broadcast %16 : vector<16x1xf32> to vector<16x32xf32>
    %18 = arith.mulf %13, %17 : vector<16x32xf32>
    %c0_5 = arith.constant 0 : index
    %c0_6 = arith.constant 0 : index
    %19 = vector.load %arg2[%c0_5, %c0_6] : memref<1x32xf32, #tpu.memory_space<vmem>>, vector<1x32xf32>
    %20 = vector.broadcast %19 : vector<1x32xf32> to vector<16x32xf32>
    %21 = arith.mulf %18, %20 : vector<16x32xf32>
    %c0_7 = arith.constant 0 : index
    %c0_8 = arith.constant 0 : index
    %22 = vector.load %arg3[%c0_7, %c0_8] : memref<1x32xf32, #tpu.memory_space<vmem>>, vector<1x32xf32>
    %23 = vector.broadcast %22 : vector<1x32xf32> to vector<16x32xf32>
    %24 = arith.addf %21, %23 : vector<16x32xf32>
    %25 = arith.truncf %24 : vector<16x32xf32> to vector<16x32xbf16>
    %c0_9 = arith.constant 0 : index
    %c0_10 = arith.constant 0 : index
    %26 = vector.load %arg4[%c0_9, %c0_10] : memref<32x64xbf16, #tpu.memory_space<vmem>>, vector<32x64xbf16>
    %cst_11 = arith.constant dense<0.000000e+00> : vector<16x64xf32>
    %27 = tpu.matmul %25, %26, %cst_11 {dimension_numbers = #tpu.dot_dimension_numbers<[1], [0], [0], [1], [0, 0, 1, 1], [], []>} : vector<16x32xbf16>, vector<32x64xbf16>, vector<16x64xf32> -> vector<16x64xf32>
    %c0_12 = arith.constant 0 : index
    %c0_13 = arith.constant 0 : index
    %28 = vector.load %arg5[%c0_12, %c0_13] : memref<1x64xf32, #tpu.memory_space<vmem>>, vector<1x64xf32>
    %29 = vector.broadcast %28 : vector<1x64xf32> to vector<16x64xf32>
    %30 = arith.addf %27, %29 : vector<16x64xf32>
    %cst_14 = arith.constant 0.000000e+00 : f32
    %31 = vector.broadcast %cst_14 : f32 to vector<16x64xf32>
    %32 = arith.maximumf %30, %31 : vector<16x64xf32>
    %33 = arith.truncf %32 : vector<16x64xf32> to vector<16x64xbf16>
    %c0_15 = arith.constant 0 : index
    %c0_16 = arith.constant 0 : index
    %34 = vector.load %arg6[%c0_15, %c0_16] : memref<16x64xbf16, #tpu.memory_space<vmem>>, vector<16x64xbf16>
    tpu.vector_store %arg6[%c0_15, %c0_16], %33 {strides = array<i32>} : memref<16x64xbf16, #tpu.memory_space<vmem>>, vector<16x64xbf16>,
    return
  }
  func.func @transform_0(%arg0: i32) -> (i32, i32) {
    %c0_i32 = arith.constant 0 : i32
    %c0_i32_0 = arith.constant 0 : i32
    return %arg0, %c0_i32 : i32, i32
  }
  func.func @transform_1(%arg0: i32) -> (i32, i32) {
    %c0_i32 = arith.constant 0 : i32
    %c0_i32_0 = arith.constant 0 : i32
    %c0_i32_1 = arith.constant 0 : i32
    return %c0_i32, %c0_i32_0 : i32, i32
  }
  func.func @transform_2(%arg0: i32) -> (i32, i32) {
    %c0_i32 = arith.constant 0 : i32
    %c0_i32_0 = arith.constant 0 : i32
    %c0_i32_1 = arith.constant 0 : i32
    return %c0_i32, %c0_i32_0 : i32, i32
  }
  func.func @transform_3(%arg0: i32) -> (i32, i32) {
    %c0_i32 = arith.constant 0 : i32
    %c0_i32_0 = arith.constant 0 : i32
    %c0_i32_1 = arith.constant 0 : i32
    return %c0_i32, %c0_i32_0 : i32, i32
  }
  func.func @transform_4(%arg0: i32) -> (i32, i32) {
    %c0_i32 = arith.constant 0 : i32
    %c0_i32_0 = arith.constant 0 : i32
    %c0_i32_1 = arith.constant 0 : i32
    return %c0_i32, %c0_i32_0 : i32, i32
  }
  func.func @transform_5(%arg0: i32) -> (i32, i32) {
    %c0_i32 = arith.constant 0 : i32
    %c0_i32_0 = arith.constant 0 : i32
    return %arg0, %c0_i32 : i32, i32
  }
}

module attributes {stable_mosaic.version = 11 : i64} {
  func.func @_mm_res_kernel(%arg0: i32, %arg1: memref<16x64xbf16, #tpu.memory_space<vmem>>, %arg2: memref<64x32xbf16, #tpu.memory_space<vmem>>, %arg3: memref<1x32xf32, #tpu.memory_space<vmem>>, %arg4: memref<16x32xf32, #tpu.memory_space<vmem>>, %arg5: memref<16x32xf32, #tpu.memory_space<vmem>>) attributes {dimension_semantics = [#tpu.dimension_semantics<parallel>], iteration_bounds = array<i64: 1>, scalar_prefetch = 0 : i64, scratch_operands = 0 : i64, tpu.core_type = #tpu.core_type<tc>, window_params = [{transform_indices = @transform_0, window_bounds = array<i64: 16, 64>}, {pipeline_mode = #tpu.pipeline_mode<synchronous>, transform_indices = @transform_1, window_bounds = array<i64: 64, 32>}, {pipeline_mode = #tpu.pipeline_mode<synchronous>, transform_indices = @transform_2, window_bounds = array<i64: 1, 32>}, {transform_indices = @transform_3, window_bounds = array<i64: 16, 32>}, {transform_indices = @transform_4, window_bounds = array<i64: 16, 32>}]} {
    %c0 = arith.constant 0 : index
    %c0_0 = arith.constant 0 : index
    %0 = vector.load %arg1[%c0, %c0_0] : memref<16x64xbf16, #tpu.memory_space<vmem>>, vector<16x64xbf16>
    %c0_1 = arith.constant 0 : index
    %c0_2 = arith.constant 0 : index
    %1 = vector.load %arg2[%c0_1, %c0_2] : memref<64x32xbf16, #tpu.memory_space<vmem>>, vector<64x32xbf16>
    %cst = arith.constant dense<0.000000e+00> : vector<16x32xf32>
    %2 = tpu.matmul %0, %1, %cst {dimension_numbers = #tpu.dot_dimension_numbers<[1], [0], [0], [1], [0, 0, 1, 1], [], []>} : vector<16x64xbf16>, vector<64x32xbf16>, vector<16x32xf32> -> vector<16x32xf32>
    %c0_3 = arith.constant 0 : index
    %c0_4 = arith.constant 0 : index
    %3 = vector.load %arg3[%c0_3, %c0_4] : memref<1x32xf32, #tpu.memory_space<vmem>>, vector<1x32xf32>
    %4 = vector.broadcast %3 : vector<1x32xf32> to vector<16x32xf32>
    %5 = arith.addf %2, %4 : vector<16x32xf32>
    %c0_5 = arith.constant 0 : index
    %c0_6 = arith.constant 0 : index
    %6 = vector.load %arg4[%c0_5, %c0_6] : memref<16x32xf32, #tpu.memory_space<vmem>>, vector<16x32xf32>
    %7 = arith.addf %5, %6 : vector<16x32xf32>
    %c0_7 = arith.constant 0 : index
    %c0_8 = arith.constant 0 : index
    %8 = vector.load %arg5[%c0_7, %c0_8] : memref<16x32xf32, #tpu.memory_space<vmem>>, vector<16x32xf32>
    tpu.vector_store %arg5[%c0_7, %c0_8], %7 {strides = array<i32>} : memref<16x32xf32, #tpu.memory_space<vmem>>, vector<16x32xf32>,
    return
  }
  func.func @transform_0(%arg0: i32) -> (i32, i32) {
    %c0_i32 = arith.constant 0 : i32
    %c0_i32_0 = arith.constant 0 : i32
    return %arg0, %c0_i32 : i32, i32
  }
  func.func @transform_1(%arg0: i32) -> (i32, i32) {
    %c0_i32 = arith.constant 0 : i32
    %c0_i32_0 = arith.constant 0 : i32
    %c0_i32_1 = arith.constant 0 : i32
    return %c0_i32, %c0_i32_0 : i32, i32
  }
  func.func @transform_2(%arg0: i32) -> (i32, i32) {
    %c0_i32 = arith.constant 0 : i32
    %c0_i32_0 = arith.constant 0 : i32
    %c0_i32_1 = arith.constant 0 : i32
    return %c0_i32, %c0_i32_0 : i32, i32
  }
  func.func @transform_3(%arg0: i32) -> (i32, i32) {
    %c0_i32 = arith.constant 0 : i32
    %c0_i32_0 = arith.constant 0 : i32
    return %arg0, %c0_i32 : i32, i32
  }
  func.func @transform_4(%arg0: i32) -> (i32, i32) {
    %c0_i32 = arith.constant 0 : i32
    %c0_i32_0 = arith.constant 0 : i32
    return %arg0, %c0_i32 : i32, i32
  }
}

module attributes {stable_mosaic.version = 11 : i64} {
  func.func @_ce_fused_kernel(%arg0: i32, %arg1: i32, %arg2: i32, %arg3: i32, %arg4: memref<1x8x32xf32, #tpu.memory_space<vmem>>, %arg5: memref<1x32xf32, #tpu.memory_space<vmem>>, %arg6: memref<1x32xf32, #tpu.memory_space<vmem>>, %arg7: memref<1x32x128xbf16, #tpu.memory_space<vmem>>, %arg8: memref<1x1x8x1xi32, #tpu.memory_space<vmem>>, %arg9: memref<1x1x8x1xf32, #tpu.memory_space<vmem>>, %arg10: memref<1x1x8x1xf32, #tpu.memory_space<vmem>>, %arg11: memref<8x32xbf16, #tpu.memory_space<vmem>>, %arg12: memref<8x1xf32, #tpu.memory_space<vmem>>, %arg13: memref<8x1xf32, #tpu.memory_space<vmem>>, %arg14: memref<8x1xf32, #tpu.memory_space<vmem>>, %arg15: memref<8x1xi32, #tpu.memory_space<vmem>>) attributes {dimension_semantics = [#tpu.dimension_semantics<parallel>, #tpu.dimension_semantics<parallel>, #tpu.dimension_semantics<parallel>, #tpu.dimension_semantics<arbitrary>], iteration_bounds = array<i64: 2, 1, 2, 1>, scalar_prefetch = 0 : i64, scratch_operands = 5 : i64, tpu.core_type = #tpu.core_type<tc>, window_params = [{transform_indices = @transform_0, window_bounds = array<i64: 1, 8, 32>}, {pipeline_mode = #tpu.pipeline_mode<synchronous>, transform_indices = @transform_1, window_bounds = array<i64: 1, 32>}, {pipeline_mode = #tpu.pipeline_mode<synchronous>, transform_indices = @transform_2, window_bounds = array<i64: 1, 32>}, {transform_indices = @transform_3, window_bounds = array<i64: 1, 32, 128>}, {transform_indices = @transform_4, window_bounds = array<i64: 1, 1, 8, 1>}, {transform_indices = @transform_5, window_bounds = array<i64: 1, 1, 8, 1>}, {transform_indices = @transform_6, window_bounds = array<i64: 1, 1, 8, 1>}]} {
    %c0_i32 = arith.constant 0 : i32
    %0 = arith.cmpi eq, %arg3, %c0_i32 : i32
    %1 = arith.extui %0 : i1 to i32
    %c0_i32_0 = arith.constant 0 : i32
    %2 = arith.cmpi ne, %1, %c0_i32_0 : i32
    scf.if %2 {
      %c0_34 = arith.constant 0 : index
      %c0_35 = arith.constant 0 : index
      %c0_36 = arith.constant 0 : index
      %54 = vector.load %arg4[%c0_34, %c0_35, %c0_36] : memref<1x8x32xf32, #tpu.memory_space<vmem>>, vector<1x8x32xf32>
      %55 = vector.shape_cast %54 : vector<1x8x32xf32> to vector<8x32xf32>
      %cst_37 = arith.constant dense<0.000000e+00> : vector<8xf32>
      %56 = vector.multi_reduction <add>, %55, %cst_37 [1] : vector<8x32xf32> to vector<8xf32>
      %57 = vector.shape_cast %56 : vector<8xf32> to vector<8x1xf32>
      %cst_38 = arith.constant 3.200000e+01 : f32
      %58 = vector.broadcast %cst_38 : f32 to vector<8x1xf32>
      %59 = arith.divf %57, %58 : vector<8x1xf32>
      %60 = vector.broadcast %59 : vector<8x1xf32> to vector<8x32xf32>
      %61 = arith.subf %55, %60 : vector<8x32xf32>
      %62 = arith.mulf %61, %61 : vector<8x32xf32>
      %cst_39 = arith.constant dense<0.000000e+00> : vector<8xf32>
      %63 = vector.multi_reduction <add>, %62, %cst_39 [1] : vector<8x32xf32> to vector<8xf32>
      %64 = vector.shape_cast %63 : vector<8xf32> to vector<8x1xf32>
      %cst_40 = arith.constant 3.200000e+01 : f32
      %65 = vector.broadcast %cst_40 : f32 to vector<8x1xf32>
      %66 = arith.divf %64, %65 : vector<8x1xf32>
      %67 = vector.broadcast %59 : vector<8x1xf32> to vector<8x32xf32>
      %68 = arith.subf %55, %67 : vector<8x32xf32>
      %cst_41 = arith.constant 9.99999974E-6 : f32
      %69 = vector.broadcast %cst_41 : f32 to vector<8x1xf32>
      %70 = arith.addf %66, %69 : vector<8x1xf32>
      %71 = math.rsqrt %70 : vector<8x1xf32>
      %72 = vector.broadcast %71 : vector<8x1xf32> to vector<8x32xf32>
      %73 = arith.mulf %68, %72 : vector<8x32xf32>
      %c0_42 = arith.constant 0 : index
      %c0_43 = arith.constant 0 : index
      %74 = vector.load %arg5[%c0_42, %c0_43] : memref<1x32xf32, #tpu.memory_space<vmem>>, vector<1x32xf32>
      %75 = vector.broadcast %74 : vector<1x32xf32> to vector<8x32xf32>
      %76 = arith.mulf %73, %75 : vector<8x32xf32>
      %c0_44 = arith.constant 0 : index
      %c0_45 = arith.constant 0 : index
      %77 = vector.load %arg6[%c0_44, %c0_45] : memref<1x32xf32, #tpu.memory_space<vmem>>, vector<1x32xf32>
      %78 = vector.broadcast %77 : vector<1x32xf32> to vector<8x32xf32>
      %79 = arith.addf %76, %78 : vector<8x32xf32>
      %80 = arith.truncf %79 : vector<8x32xf32> to vector<8x32xbf16>
      %c0_46 = arith.constant 0 : index
      %c0_47 = arith.constant 0 : index
      %81 = vector.load %arg11[%c0_46, %c0_47] : memref<8x32xbf16, #tpu.memory_space<vmem>>, vector<8x32xbf16>
      tpu.vector_store %arg11[%c0_46, %c0_47], %80 {strides = array<i32>} : memref<8x32xbf16, #tpu.memory_space<vmem>>, vector<8x32xbf16>,
      %cst_48 = arith.constant 0xFF800000 : f32
      %82 = vector.broadcast %cst_48 : f32 to vector<8x1xf32>
      %c0_49 = arith.constant 0 : index
      %c0_50 = arith.constant 0 : index
      %83 = vector.load %arg12[%c0_49, %c0_50] : memref<8x1xf32, #tpu.memory_space<vmem>>, vector<8x1xf32>
      tpu.vector_store %arg12[%c0_49, %c0_50], %82 {strides = array<i32>} : memref<8x1xf32, #tpu.memory_space<vmem>>, vector<8x1xf32>,
      %cst_51 = arith.constant 0.000000e+00 : f32
      %84 = vector.broadcast %cst_51 : f32 to vector<8x1xf32>
      %c0_52 = arith.constant 0 : index
      %c0_53 = arith.constant 0 : index
      %85 = vector.load %arg13[%c0_52, %c0_53] : memref<8x1xf32, #tpu.memory_space<vmem>>, vector<8x1xf32>
      tpu.vector_store %arg13[%c0_52, %c0_53], %84 {strides = array<i32>} : memref<8x1xf32, #tpu.memory_space<vmem>>, vector<8x1xf32>,
      %cst_54 = arith.constant 0.000000e+00 : f32
      %86 = vector.broadcast %cst_54 : f32 to vector<8x1xf32>
      %c0_55 = arith.constant 0 : index
      %c0_56 = arith.constant 0 : index
      %87 = vector.load %arg14[%c0_55, %c0_56] : memref<8x1xf32, #tpu.memory_space<vmem>>, vector<8x1xf32>
      tpu.vector_store %arg14[%c0_55, %c0_56], %86 {strides = array<i32>} : memref<8x1xf32, #tpu.memory_space<vmem>>, vector<8x1xf32>,
      %c0_i32_57 = arith.constant 0 : i32
      %88 = vector.broadcast %c0_i32_57 : i32 to vector<8x1xi32>
      %c0_58 = arith.constant 0 : index
      %c0_59 = arith.constant 0 : index
      %89 = vector.load %arg15[%c0_58, %c0_59] : memref<8x1xi32, #tpu.memory_space<vmem>>, vector<8x1xi32>
      tpu.vector_store %arg15[%c0_58, %c0_59], %88 {strides = array<i32>} : memref<8x1xi32, #tpu.memory_space<vmem>>, vector<8x1xi32>,
    } else {
    }
    %c0 = arith.constant 0 : index
    %c0_1 = arith.constant 0 : index
    %3 = vector.load %arg11[%c0, %c0_1] : memref<8x32xbf16, #tpu.memory_space<vmem>>, vector<8x32xbf16>
    %c0_2 = arith.constant 0 : index
    %c0_3 = arith.constant 0 : index
    %c0_4 = arith.constant 0 : index
    %4 = vector.load %arg7[%c0_2, %c0_3, %c0_4] : memref<1x32x128xbf16, #tpu.memory_space<vmem>>, vector<1x32x128xbf16>
    %5 = vector.shape_cast %4 : vector<1x32x128xbf16> to vector<32x128xbf16>
    %cst = arith.constant dense<0.000000e+00> : vector<8x128xf32>
    %6 = tpu.matmul %3, %5, %cst {dimension_numbers = #tpu.dot_dimension_numbers<[1], [0], [0], [1], [0, 0, 1, 1], [], []>} : vector<8x32xbf16>, vector<32x128xbf16>, vector<8x128xf32> -> vector<8x128xf32>
    %c0_5 = arith.constant 0 : index
    %c0_6 = arith.constant 0 : index
    %c0_7 = arith.constant 0 : index
    %c0_8 = arith.constant 0 : index
    %7 = vector.load %arg8[%c0_5, %c0_6, %c0_7, %c0_8] : memref<1x1x8x1xi32, #tpu.memory_space<vmem>>, vector<1x1x8x1xi32>
    %8 = vector.shape_cast %7 : vector<1x1x8x1xi32> to vector<8x1xi32>
    %9 = tpu.iota {dimensions = array<i32: 1>} : vector<8x128xi32>
    %c128_i32 = arith.constant 128 : i32
    %10 = arith.muli %arg3, %c128_i32 : i32
    %11 = vector.broadcast %10 : i32 to vector<8x1xi32>
    %12 = arith.subi %8, %11 : vector<8x1xi32>
    %cst_9 = arith.constant dense<0xFF800000> : vector<8xf32>
    %13 = vector.multi_reduction <maximumf>, %6, %cst_9 [1] : vector<8x128xf32> to vector<8xf32>
    %14 = vector.shape_cast %13 : vector<8xf32> to vector<8x1xf32>
    %c0_10 = arith.constant 0 : index
    %c0_11 = arith.constant 0 : index
    %15 = vector.load %arg12[%c0_10, %c0_11] : memref<8x1xf32, #tpu.memory_space<vmem>>, vector<8x1xf32>
    %16 = vector.broadcast %14 : vector<8x1xf32> to vector<8x128xf32>
    %17 = arith.cmpf oeq, %6, %16 : vector<8x128xf32>
    %c128_i32_12 = arith.constant 128 : i32
    %18 = vector.broadcast %c128_i32_12 : i32 to vector<8x128xi32>
    %19 = arith.select %17, %9, %18 : vector<8x128xi1>, vector<8x128xi32>
    %cst_13 = arith.constant dense<2147483647> : vector<8xi32>
    %20 = vector.multi_reduction <minsi>, %19, %cst_13 [1] : vector<8x128xi32> to vector<8xi32>
    %21 = vector.shape_cast %20 : vector<8xi32> to vector<8x1xi32>
    %22 = arith.cmpf ogt, %14, %15 : vector<8x1xf32>
    %c128_i32_14 = arith.constant 128 : i32
    %23 = arith.muli %arg3, %c128_i32_14 : i32
    %24 = vector.broadcast %23 : i32 to vector<8x1xi32>
    %25 = arith.addi %21, %24 : vector<8x1xi32>
    %c0_15 = arith.constant 0 : index
    %c0_16 = arith.constant 0 : index
    %26 = vector.load %arg15[%c0_15, %c0_16] : memref<8x1xi32, #tpu.memory_space<vmem>>, vector<8x1xi32>
    %27 = arith.select %22, %25, %26 : vector<8x1xi1>, vector<8x1xi32>
    %c0_17 = arith.constant 0 : index
    %c0_18 = arith.constant 0 : index
    %28 = vector.load %arg15[%c0_17, %c0_18] : memref<8x1xi32, #tpu.memory_space<vmem>>, vector<8x1xi32>
    tpu.vector_store %arg15[%c0_17, %c0_18], %27 {strides = array<i32>} : memref<8x1xi32, #tpu.memory_space<vmem>>, vector<8x1xi32>,
    %29 = arith.maximumf %15, %14 : vector<8x1xf32>
    %c0_19 = arith.constant 0 : index
    %c0_20 = arith.constant 0 : index
    %30 = vector.load %arg13[%c0_19, %c0_20] : memref<8x1xf32, #tpu.memory_space<vmem>>, vector<8x1xf32>
    %31 = arith.subf %15, %29 : vector<8x1xf32>
    %32 = math.exp %31 : vector<8x1xf32>
    %33 = arith.mulf %30, %32 : vector<8x1xf32>
    %34 = vector.broadcast %29 : vector<8x1xf32> to vector<8x128xf32>
    %35 = arith.subf %6, %34 : vector<8x128xf32>
    %36 = math.exp %35 : vector<8x128xf32>
    %cst_21 = arith.constant dense<0.000000e+00> : vector<8xf32>
    %37 = vector.multi_reduction <add>, %36, %cst_21 [1] : vector<8x128xf32> to vector<8xf32>
    %38 = vector.shape_cast %37 : vector<8xf32> to vector<8x1xf32>
    %39 = arith.addf %33, %38 : vector<8x1xf32>
    %c0_22 = arith.constant 0 : index
    %c0_23 = arith.constant 0 : index
    %40 = vector.load %arg13[%c0_22, %c0_23] : memref<8x1xf32, #tpu.memory_space<vmem>>, vector<8x1xf32>
    tpu.vector_store %arg13[%c0_22, %c0_23], %39 {strides = array<i32>} : memref<8x1xf32, #tpu.memory_space<vmem>>, vector<8x1xf32>,
    %c0_24 = arith.constant 0 : index
    %c0_25 = arith.constant 0 : index
    %41 = vector.load %arg12[%c0_24, %c0_25] : memref<8x1xf32, #tpu.memory_space<vmem>>, vector<8x1xf32>
    tpu.vector_store %arg12[%c0_24, %c0_25], %29 {strides = array<i32>} : memref<8x1xf32, #tpu.memory_space<vmem>>, vector<8x1xf32>,
    %c0_26 = arith.constant 0 : index
    %c0_27 = arith.constant 0 : index
    %42 = vector.load %arg14[%c0_26, %c0_27] : memref<8x1xf32, #tpu.memory_space<vmem>>, vector<8x1xf32>
    %43 = vector.broadcast %12 : vector<8x1xi32> to vector<8x128xi32>
    %44 = arith.cmpi eq, %9, %43 : vector<8x128xi32>
    %cst_28 = arith.constant 0.000000e+00 : f32
    %45 = vector.broadcast %cst_28 : f32 to vector<8x128xf32>
    %46 = arith.select %44, %6, %45 : vector<8x128xi1>, vector<8x128xf32>
    %cst_29 = arith.constant dense<0.000000e+00> : vector<8xf32>
    %47 = vector.multi_reduction <add>, %46, %cst_29 [1] : vector<8x128xf32> to vector<8xf32>
    %48 = vector.shape_cast %47 : vector<8xf32> to vector<8x1xf32>
    %49 = arith.addf %42, %48 : vector<8x1xf32>
    %c0_30 = arith.constant 0 : index
    %c0_31 = arith.constant 0 : index
    %50 = vector.load %arg14[%c0_30, %c0_31] : memref<8x1xf32, #tpu.memory_space<vmem>>, vector<8x1xf32>
    tpu.vector_store %arg14[%c0_30, %c0_31], %49 {strides = array<i32>} : memref<8x1xf32, #tpu.memory_space<vmem>>, vector<8x1xf32>,
    %c0_i32_32 = arith.constant 0 : i32
    %51 = arith.cmpi eq, %arg3, %c0_i32_32 : i32
    %52 = arith.extui %51 : i1 to i32
    %c0_i32_33 = arith.constant 0 : i32
    %53 = arith.cmpi ne, %52, %c0_i32_33 : i32
    scf.if %53 {
      %c0_34 = arith.constant 0 : index
      %c0_35 = arith.constant 0 : index
      %54 = vector.load %arg12[%c0_34, %c0_35] : memref<8x1xf32, #tpu.memory_space<vmem>>, vector<8x1xf32>
      %c0_36 = arith.constant 0 : index
      %c0_37 = arith.constant 0 : index
      %55 = vector.load %arg13[%c0_36, %c0_37] : memref<8x1xf32, #tpu.memory_space<vmem>>, vector<8x1xf32>
      %56 = math.log %55 : vector<8x1xf32>
      %57 = arith.addf %54, %56 : vector<8x1xf32>
      %c0_38 = arith.constant 0 : index
      %c0_39 = arith.constant 0 : index
      %58 = vector.load %arg14[%c0_38, %c0_39] : memref<8x1xf32, #tpu.memory_space<vmem>>, vector<8x1xf32>
      %59 = arith.subf %57, %58 : vector<8x1xf32>
      %c0_40 = arith.constant 0 : index
      %c0_41 = arith.constant 0 : index
      %c0_42 = arith.constant 0 : index
      %c0_43 = arith.constant 0 : index
      %60 = vector.load %arg9[%c0_40, %c0_41, %c0_42, %c0_43] : memref<1x1x8x1xf32, #tpu.memory_space<vmem>>, vector<1x1x8x1xf32>
      %61 = vector.shape_cast %60 : vector<1x1x8x1xf32> to vector<8x1xf32>
      %62 = vector.shape_cast %59 : vector<8x1xf32> to vector<1x1x8x1xf32>
      tpu.vector_store %arg9[%c0_40, %c0_41, %c0_42, %c0_43], %62 {strides = array<i32>} : memref<1x1x8x1xf32, #tpu.memory_space<vmem>>, vector<1x1x8x1xf32>,
      %c0_44 = arith.constant 0 : index
      %c0_45 = arith.constant 0 : index
      %63 = vector.load %arg15[%c0_44, %c0_45] : memref<8x1xi32, #tpu.memory_space<vmem>>, vector<8x1xi32>
      %64 = arith.cmpi eq, %63, %8 : vector<8x1xi32>
      %65 = arith.extui %64 : vector<8x1xi1> to vector<8x1xi32>
      %66 = arith.sitofp %65 : vector<8x1xi32> to vector<8x1xf32>
      %c0_46 = arith.constant 0 : index
      %c0_47 = arith.constant 0 : index
      %c0_48 = arith.constant 0 : index
      %c0_49 = arith.constant 0 : index
      %67 = vector.load %arg10[%c0_46, %c0_47, %c0_48, %c0_49] : memref<1x1x8x1xf32, #tpu.memory_space<vmem>>, vector<1x1x8x1xf32>
      %68 = vector.shape_cast %67 : vector<1x1x8x1xf32> to vector<8x1xf32>
      %69 = vector.shape_cast %66 : vector<8x1xf32> to vector<1x1x8x1xf32>
      tpu.vector_store %arg10[%c0_46, %c0_47, %c0_48, %c0_49], %69 {strides = array<i32>} : memref<1x1x8x1xf32, #tpu.memory_space<vmem>>, vector<1x1x8x1xf32>,
    } else {
    }
    return
  }
  func.func @transform_0(%arg0: i32, %arg1: i32, %arg2: i32, %arg3: i32) -> (i32, i32, i32) {
    %c0_i32 = arith.constant 0 : i32
    %c0_i32_0 = arith.constant 0 : i32
    return %arg0, %arg1, %c0_i32 : i32, i32, i32
  }
  func.func @transform_1(%arg0: i32, %arg1: i32, %arg2: i32, %arg3: i32) -> (i32, i32) {
    %c0_i32 = arith.constant 0 : i32
    %c0_i32_0 = arith.constant 0 : i32
    %c0_i32_1 = arith.constant 0 : i32
    return %c0_i32, %c0_i32_0 : i32, i32
  }
  func.func @transform_2(%arg0: i32, %arg1: i32, %arg2: i32, %arg3: i32) -> (i32, i32) {
    %c0_i32 = arith.constant 0 : i32
    %c0_i32_0 = arith.constant 0 : i32
    %c0_i32_1 = arith.constant 0 : i32
    return %c0_i32, %c0_i32_0 : i32, i32
  }
  func.func @transform_3(%arg0: i32, %arg1: i32, %arg2: i32, %arg3: i32) -> (i32, i32, i32) {
    %c0_i32 = arith.constant 0 : i32
    %c0_i32_0 = arith.constant 0 : i32
    return %arg2, %c0_i32, %arg3 : i32, i32, i32
  }
  func.func @transform_4(%arg0: i32, %arg1: i32, %arg2: i32, %arg3: i32) -> (i32, i32, i32, i32) {
    %c0_i32 = arith.constant 0 : i32
    %c0_i32_0 = arith.constant 0 : i32
    return %arg0, %arg2, %arg1, %c0_i32 : i32, i32, i32, i32
  }
  func.func @transform_5(%arg0: i32, %arg1: i32, %arg2: i32, %arg3: i32) -> (i32, i32, i32, i32) {
    %c0_i32 = arith.constant 0 : i32
    %c0_i32_0 = arith.constant 0 : i32
    return %arg0, %arg2, %arg1, %c0_i32 : i32, i32, i32, i32
  }
  func.func @transform_6(%arg0: i32, %arg1: i32, %arg2: i32, %arg3: i32) -> (i32, i32, i32, i32) {
    %c0_i32 = arith.constant 0 : i32
    %c0_i32_0 = arith.constant 0 : i32
    return %arg0, %arg2, %arg1, %c0_i32 : i32, i32, i32, i32
  }
}

module attributes {stable_mosaic.version = 11 : i64} {
  func.func @_nearest_kernel(%arg0: i32, %arg1: i32, %arg2: i32, %arg3: i32, %arg4: memref<1x8x32xbf16, #tpu.memory_space<vmem>>, %arg5: memref<1x8x32xbf16, #tpu.memory_space<vmem>>, %arg6: memref<32x16xbf16, #tpu.memory_space<vmem>>, %arg7: memref<1x16x128xbf16, #tpu.memory_space<vmem>>, %arg8: memref<1x1x128xf32, #tpu.memory_space<vmem>>, %arg9: memref<1x1x8x1xi32, #tpu.memory_space<vmem>>, %arg10: memref<8x16xbf16, #tpu.memory_space<vmem>>, %arg11: memref<8x1xf32, #tpu.memory_space<vmem>>, %arg12: memref<8x1xi32, #tpu.memory_space<vmem>>) attributes {dimension_semantics = [#tpu.dimension_semantics<parallel>, #tpu.dimension_semantics<parallel>, #tpu.dimension_semantics<parallel>, #tpu.dimension_semantics<arbitrary>], iteration_bounds = array<i64: 2, 1, 2, 1>, scalar_prefetch = 0 : i64, scratch_operands = 3 : i64, tpu.core_type = #tpu.core_type<tc>, window_params = [{transform_indices = @transform_0, window_bounds = array<i64: 1, 8, 32>}, {transform_indices = @transform_1, window_bounds = array<i64: 1, 8, 32>}, {pipeline_mode = #tpu.pipeline_mode<synchronous>, transform_indices = @transform_2, window_bounds = array<i64: 32, 16>}, {transform_indices = @transform_3, window_bounds = array<i64: 1, 16, 128>}, {transform_indices = @transform_4, window_bounds = array<i64: 1, 1, 128>}, {transform_indices = @transform_5, window_bounds = array<i64: 1, 1, 8, 1>}]} {
    %c0_i32 = arith.constant 0 : i32
    %0 = arith.cmpi eq, %arg3, %c0_i32 : i32
    %1 = arith.extui %0 : i1 to i32
    %c0_i32_0 = arith.constant 0 : i32
    %2 = arith.cmpi ne, %1, %c0_i32_0 : i32
    scf.if %2 {
      %c0_24 = arith.constant 0 : index
      %c0_25 = arith.constant 0 : index
      %c0_26 = arith.constant 0 : index
      %36 = vector.load %arg4[%c0_24, %c0_25, %c0_26] : memref<1x8x32xbf16, #tpu.memory_space<vmem>>, vector<1x8x32xbf16>
      %37 = vector.shape_cast %36 : vector<1x8x32xbf16> to vector<8x32xbf16>
      %38 = arith.extf %37 : vector<8x32xbf16> to vector<8x32xf32>
      %c0_27 = arith.constant 0 : index
      %c0_28 = arith.constant 0 : index
      %c0_29 = arith.constant 0 : index
      %39 = vector.load %arg5[%c0_27, %c0_28, %c0_29] : memref<1x8x32xbf16, #tpu.memory_space<vmem>>, vector<1x8x32xbf16>
      %40 = vector.shape_cast %39 : vector<1x8x32xbf16> to vector<8x32xbf16>
      %41 = arith.extf %40 : vector<8x32xbf16> to vector<8x32xf32>
      %42 = arith.mulf %38, %41 : vector<8x32xf32>
      %cst_30 = arith.constant 1.11111116 : f32
      %43 = vector.broadcast %cst_30 : f32 to vector<8x32xf32>
      %44 = arith.mulf %42, %43 : vector<8x32xf32>
      %45 = arith.truncf %44 : vector<8x32xf32> to vector<8x32xbf16>
      %c0_31 = arith.constant 0 : index
      %c0_32 = arith.constant 0 : index
      %46 = vector.load %arg6[%c0_31, %c0_32] : memref<32x16xbf16, #tpu.memory_space<vmem>>, vector<32x16xbf16>
      %cst_33 = arith.constant dense<0.000000e+00> : vector<8x16xf32>
      %47 = tpu.matmul %45, %46, %cst_33 {dimension_numbers = #tpu.dot_dimension_numbers<[1], [0], [0], [1], [0, 0, 1, 1], [], []>} : vector<8x32xbf16>, vector<32x16xbf16>, vector<8x16xf32> -> vector<8x16xf32>
      %48 = arith.truncf %47 : vector<8x16xf32> to vector<8x16xbf16>
      %c0_34 = arith.constant 0 : index
      %c0_35 = arith.constant 0 : index
      %49 = vector.load %arg10[%c0_34, %c0_35] : memref<8x16xbf16, #tpu.memory_space<vmem>>, vector<8x16xbf16>
      tpu.vector_store %arg10[%c0_34, %c0_35], %48 {strides = array<i32>} : memref<8x16xbf16, #tpu.memory_space<vmem>>, vector<8x16xbf16>,
      %cst_36 = arith.constant 0x7F800000 : f32
      %50 = vector.broadcast %cst_36 : f32 to vector<8x1xf32>
      %c0_37 = arith.constant 0 : index
      %c0_38 = arith.constant 0 : index
      %51 = vector.load %arg11[%c0_37, %c0_38] : memref<8x1xf32, #tpu.memory_space<vmem>>, vector<8x1xf32>
      tpu.vector_store %arg11[%c0_37, %c0_38], %50 {strides = array<i32>} : memref<8x1xf32, #tpu.memory_space<vmem>>, vector<8x1xf32>,
      %c0_i32_39 = arith.constant 0 : i32
      %52 = vector.broadcast %c0_i32_39 : i32 to vector<8x1xi32>
      %c0_40 = arith.constant 0 : index
      %c0_41 = arith.constant 0 : index
      %53 = vector.load %arg12[%c0_40, %c0_41] : memref<8x1xi32, #tpu.memory_space<vmem>>, vector<8x1xi32>
      tpu.vector_store %arg12[%c0_40, %c0_41], %52 {strides = array<i32>} : memref<8x1xi32, #tpu.memory_space<vmem>>, vector<8x1xi32>,
    } else {
    }
    %c0 = arith.constant 0 : index
    %c0_1 = arith.constant 0 : index
    %3 = vector.load %arg10[%c0, %c0_1] : memref<8x16xbf16, #tpu.memory_space<vmem>>, vector<8x16xbf16>
    %c0_2 = arith.constant 0 : index
    %c0_3 = arith.constant 0 : index
    %c0_4 = arith.constant 0 : index
    %4 = vector.load %arg7[%c0_2, %c0_3, %c0_4] : memref<1x16x128xbf16, #tpu.memory_space<vmem>>, vector<1x16x128xbf16>
    %5 = vector.shape_cast %4 : vector<1x16x128xbf16> to vector<16x128xbf16>
    %cst = arith.constant dense<0.000000e+00> : vector<8x128xf32>
    %6 = tpu.matmul %3, %5, %cst {dimension_numbers = #tpu.dot_dimension_numbers<[1], [0], [0], [1], [0, 0, 1, 1], [], []>} : vector<8x16xbf16>, vector<16x128xbf16>, vector<8x128xf32> -> vector<8x128xf32>
    %c0_5 = arith.constant 0 : index
    %c0_6 = arith.constant 0 : index
    %c0_7 = arith.constant 0 : index
    %7 = vector.load %arg8[%c0_5, %c0_6, %c0_7] : memref<1x1x128xf32, #tpu.memory_space<vmem>>, vector<1x1x128xf32>
    %8 = vector.shape_cast %7 : vector<1x1x128xf32> to vector<1x128xf32>
    %cst_8 = arith.constant 2.000000e+00 : f32
    %9 = vector.broadcast %cst_8 : f32 to vector<8x128xf32>
    %10 = arith.mulf %9, %6 : vector<8x128xf32>
    %11 = vector.broadcast %8 : vector<1x128xf32> to vector<8x128xf32>
    %12 = arith.subf %11, %10 : vector<8x128xf32>
    %13 = tpu.iota {dimensions = array<i32: 1>} : vector<8x128xi32>
    %cst_9 = arith.constant dense<0x7F800000> : vector<8xf32>
    %14 = vector.multi_reduction <minimumf>, %12, %cst_9 [1] : vector<8x128xf32> to vector<8xf32>
    %15 = vector.shape_cast %14 : vector<8xf32> to vector<8x1xf32>
    %16 = vector.broadcast %15 : vector<8x1xf32> to vector<8x128xf32>
    %17 = arith.cmpf oeq, %12, %16 : vector<8x128xf32>
    %c128_i32 = arith.constant 128 : i32
    %18 = vector.broadcast %c128_i32 : i32 to vector<8x128xi32>
    %19 = arith.select %17, %13, %18 : vector<8x128xi1>, vector<8x128xi32>
    %cst_10 = arith.constant dense<2147483647> : vector<8xi32>
    %20 = vector.multi_reduction <minsi>, %19, %cst_10 [1] : vector<8x128xi32> to vector<8xi32>
    %21 = vector.shape_cast %20 : vector<8xi32> to vector<8x1xi32>
    %c128_i32_11 = arith.constant 128 : i32
    %22 = arith.muli %arg3, %c128_i32_11 : i32
    %23 = vector.broadcast %22 : i32 to vector<8x1xi32>
    %24 = arith.addi %21, %23 : vector<8x1xi32>
    %c0_12 = arith.constant 0 : index
    %c0_13 = arith.constant 0 : index
    %25 = vector.load %arg11[%c0_12, %c0_13] : memref<8x1xf32, #tpu.memory_space<vmem>>, vector<8x1xf32>
    %26 = arith.cmpf olt, %15, %25 : vector<8x1xf32>
    %c0_14 = arith.constant 0 : index
    %c0_15 = arith.constant 0 : index
    %27 = vector.load %arg12[%c0_14, %c0_15] : memref<8x1xi32, #tpu.memory_space<vmem>>, vector<8x1xi32>
    %28 = arith.select %26, %24, %27 : vector<8x1xi1>, vector<8x1xi32>
    %c0_16 = arith.constant 0 : index
    %c0_17 = arith.constant 0 : index
    %29 = vector.load %arg12[%c0_16, %c0_17] : memref<8x1xi32, #tpu.memory_space<vmem>>, vector<8x1xi32>
    tpu.vector_store %arg12[%c0_16, %c0_17], %28 {strides = array<i32>} : memref<8x1xi32, #tpu.memory_space<vmem>>, vector<8x1xi32>,
    %c0_18 = arith.constant 0 : index
    %c0_19 = arith.constant 0 : index
    %30 = vector.load %arg11[%c0_18, %c0_19] : memref<8x1xf32, #tpu.memory_space<vmem>>, vector<8x1xf32>
    %31 = arith.select %26, %15, %30 : vector<8x1xi1>, vector<8x1xf32>
    %c0_20 = arith.constant 0 : index
    %c0_21 = arith.constant 0 : index
    %32 = vector.load %arg11[%c0_20, %c0_21] : memref<8x1xf32, #tpu.memory_space<vmem>>, vector<8x1xf32>
    tpu.vector_store %arg11[%c0_20, %c0_21], %31 {strides = array<i32>} : memref<8x1xf32, #tpu.memory_space<vmem>>, vector<8x1xf32>,
    %c0_i32_22 = arith.constant 0 : i32
    %33 = arith.cmpi eq, %arg3, %c0_i32_22 : i32
    %34 = arith.extui %33 : i1 to i32
    %c0_i32_23 = arith.constant 0 : i32
    %35 = arith.cmpi ne, %34, %c0_i32_23 : i32
    scf.if %35 {
      %c0_24 = arith.constant 0 : index
      %c0_25 = arith.constant 0 : index
      %36 = vector.load %arg12[%c0_24, %c0_25] : memref<8x1xi32, #tpu.memory_space<vmem>>, vector<8x1xi32>
      %c0_26 = arith.constant 0 : index
      %c0_27 = arith.constant 0 : index
      %c0_28 = arith.constant 0 : index
      %c0_29 = arith.constant 0 : index
      %37 = vector.load %arg9[%c0_26, %c0_27, %c0_28, %c0_29] : memref<1x1x8x1xi32, #tpu.memory_space<vmem>>, vector<1x1x8x1xi32>
      %38 = vector.shape_cast %37 : vector<1x1x8x1xi32> to vector<8x1xi32>
      %39 = vector.shape_cast %36 : vector<8x1xi32> to vector<1x1x8x1xi32>
      tpu.vector_store %arg9[%c0_26, %c0_27, %c0_28, %c0_29], %39 {strides = array<i32>} : memref<1x1x8x1xi32, #tpu.memory_space<vmem>>, vector<1x1x8x1xi32>,
    } else {
    }
    return
  }
  func.func @transform_0(%arg0: i32, %arg1: i32, %arg2: i32, %arg3: i32) -> (i32, i32, i32) {
    %c0_i32 = arith.constant 0 : i32
    %c0_i32_0 = arith.constant 0 : i32
    return %arg0, %arg1, %c0_i32 : i32, i32, i32
  }
  func.func @transform_1(%arg0: i32, %arg1: i32, %arg2: i32, %arg3: i32) -> (i32, i32, i32) {
    %c0_i32 = arith.constant 0 : i32
    %c0_i32_0 = arith.constant 0 : i32
    return %arg0, %arg1, %c0_i32 : i32, i32, i32
  }
  func.func @transform_2(%arg0: i32, %arg1: i32, %arg2: i32, %arg3: i32) -> (i32, i32) {
    %c0_i32 = arith.constant 0 : i32
    %c0_i32_0 = arith.constant 0 : i32
    %c0_i32_1 = arith.constant 0 : i32
    return %c0_i32, %c0_i32_0 : i32, i32
  }
  func.func @transform_3(%arg0: i32, %arg1: i32, %arg2: i32, %arg3: i32) -> (i32, i32, i32) {
    %c0_i32 = arith.constant 0 : i32
    %c0_i32_0 = arith.constant 0 : i32
    return %arg2, %c0_i32, %arg3 : i32, i32, i32
  }
  func.func @transform_4(%arg0: i32, %arg1: i32, %arg2: i32, %arg3: i32) -> (i32, i32, i32) {
    %c0_i32 = arith.constant 0 : i32
    %c0_i32_0 = arith.constant 0 : i32
    return %arg2, %c0_i32, %arg3 : i32, i32, i32
  }
  func.func @transform_5(%arg0: i32, %arg1: i32, %arg2: i32, %arg3: i32) -> (i32, i32, i32, i32) {
    %c0_i32 = arith.constant 0 : i32
    %c0_i32_0 = arith.constant 0 : i32
    return %arg0, %arg2, %arg1, %c0_i32 : i32, i32, i32, i32
  }
}

</mosaic_0001>

<llo_original>
// kernel: _lambda_.8
$region0: #{_lambda_.8}
  #allocation0 [shape = 'u32[]', space=smem, size = 0x4, offset = 0x4, fixed_abs, tag = 'smem constant byte address 0x4 - core index']
  #allocation1 [shape = 'u32[144,128]{1,0:T(1,128)}', space=vmem, size = 0x12000, scoped, tag = 'internal scratch']
  %s0 = inlined_call_operand.vmem [shape: f32[64,16], index: 0, kind: input, shape index: {}]
  %s1 = inlined_call_operand.vmem [shape: f32[1,16], index: 1, kind: input, shape index: {}]
  %s2 = inlined_call_operand.vmem [shape: f32[1,16], index: 2, kind: input, shape index: {}]
  %s3 = inlined_call_operand.vmem [shape: bf16[64,16], index: 3, kind: output, shape index: {}]
  %s4 = sld [smem:[#allocation0]]
  $region22: #{_lambda_.8} parent=0
    _
  %s6 = ssub.s32 1, %s4
  %s7 = scalar_select 0, %s6, %s4
  // Predicated region
  $region2: #{_lambda_.8} parent=0 // pred_check
    _
  $region3: #{_lambda_.8} parent=0 // pred_check_branch
    %9 = sbr.rel (0) target = $region5
  $region4: #{_lambda_.8} parent=0 // pred_region
    _
  $region5: #{_lambda_.8} parent=0 // pred_fallthru
    _
  // Predicated region
  $region6: #{_lambda_.8} parent=0 // pred_check
    _
  $region7: #{_lambda_.8} parent=0 // pred_check_branch
    %11 = sbr.rel (0) target = $region9
  $region8: #{_lambda_.8} parent=0 // pred_region
    _
  $region9: #{_lambda_.8} parent=0 // pred_fallthru
    _
  // Predicated region
  $region10: #{_lambda_.8} parent=0 // pred_check
    _
  $region11: #{_lambda_.8} parent=0 // pred_check_branch
    %13 = sbr.rel (0) target = $region13
  $region12: #{_lambda_.8} parent=0 // pred_region
    _
  $region13: #{_lambda_.8} parent=0 // pred_fallthru
    _
  %v14 = vld [vmem:[%s0] sm:$0xff]
  %v15 = vld [vmem:[%s0 + $0x8] sm:$0xff]
  %v16 = vld [vmem:[%s0 + $0x10] sm:$0xff]
  %v17 = vld [vmem:[%s0 + $0x18] sm:$0xff]
  %v18 = vld [vmem:[%s0 + $0x20] sm:$0xff]
  %v19 = vld [vmem:[%s0 + $0x28] sm:$0xff]
  %v20 = vld [vmem:[%s0 + $0x30] sm:$0xff]
  %v21 = vld [vmem:[%s0 + $0x38] sm:$0xff]
  %vm22 = vcmask 130048
  %v23 = vsel %vm22, %v14, 0.0
  %24 = vadd.xlane.f32.xlu0 %v23
  %v25 = vpop.xlane.xlu0 %24
  %v26 = vsel %vm22, %v15, 0.0
  %27 = vadd.xlane.f32.xlu0 %v26
  %v28 = vpop.xlane.xlu0 %27
  %v29 = vsel %vm22, %v16, 0.0
  %30 = vadd.xlane.f32.xlu0 %v29
  %v31 = vpop.xlane.xlu0 %30
  %v32 = vsel %vm22, %v17, 0.0
  %33 = vadd.xlane.f32.xlu0 %v32
  %v34 = vpop.xlane.xlu0 %33
  %v35 = vsel %vm22, %v18, 0.0
  %36 = vadd.xlane.f32.xlu0 %v35
  %v37 = vpop.xlane.xlu0 %36
  %v38 = vsel %vm22, %v19, 0.0
  %39 = vadd.xlane.f32.xlu0 %v38
  %v40 = vpop.xlane.xlu0 %39
  %v41 = vsel %vm22, %v20, 0.0
  %42 = vadd.xlane.f32.xlu0 %v41
  %v43 = vpop.xlane.xlu0 %42
  %v44 = vsel %vm22, %v21, 0.0
  %45 = vadd.xlane.f32.xlu0 %v44
  %v46 = vpop.xlane.xlu0 %45
  %v47 = vrcp.pop 16.0
  %v48 = vmul.f32 %v25, %v47
  %v49 = vmul.f32 %v28, %v47
  %v50 = vmul.f32 %v31, %v47
  %v51 = vmul.f32 %v34, %v47
  %v52 = vmul.f32 %v37, %v47
  %v53 = vmul.f32 %v40, %v47
  %v54 = vmul.f32 %v43, %v47
  %v55 = vmul.f32 %v46, %v47
  %v56 = vsub.f32 %v14, %v48
  %v57 = vsub.f32 %v15, %v49
  %v58 = vsub.f32 %v16, %v50
  %v59 = vsub.f32 %v17, %v51
  %v60 = vsub.f32 %v18, %v52
  %v61 = vsub.f32 %v19, %v53
  %v62 = vsub.f32 %v20, %v54
  %v63 = vsub.f32 %v21, %v55
  %v64 = vmul.f32 %v56, %v56
  %v65 = vmul.f32 %v57, %v57
  %v66 = vmul.f32 %v58, %v58
  %v67 = vmul.f32 %v59, %v59
  %v68 = vmul.f32 %v60, %v60
  %v69 = vmul.f32 %v61, %v61
  %v70 = vmul.f32 %v62, %v62
  %v71 = vmul.f32 %v63, %v63
  %v72 = vsel %vm22, %v64, 0.0
  %73 = vadd.xlane.f32.xlu0 %v72
  %v74 = vpop.xlane.xlu0 %73
  %v75 = vsel %vm22, %v65, 0.0
  %76 = vadd.xlane.f32.xlu0 %v75
  %v77 = vpop.xlane.xlu0 %76
  %v78 = vsel %vm22, %v66, 0.0
  %79 = vadd.xlane.f32.xlu0 %v78
  %v80 = vpop.xlane.xlu0 %79
  %v81 = vsel %vm22, %v67, 0.0
  %82 = vadd.xlane.f32.xlu0 %v81
  %v83 = vpop.xlane.xlu0 %82
  %v84 = vsel %vm22, %v68, 0.0
  %85 = vadd.xlane.f32.xlu0 %v84
  %v86 = vpop.xlane.xlu0 %85
  %v87 = vsel %vm22, %v69, 0.0
  %88 = vadd.xlane.f32.xlu0 %v87
  %v89 = vpop.xlane.xlu0 %88
  %v90 = vsel %vm22, %v70, 0.0
  %91 = vadd.xlane.f32.xlu0 %v90
  %v92 = vpop.xlane.xlu0 %91
  %v93 = vsel %vm22, %v71, 0.0
  %94 = vadd.xlane.f32.xlu0 %v93
  %v95 = vpop.xlane.xlu0 %94
  %v96 = vmul.f32 %v74, %v47
  %v97 = vmul.f32 %v77, %v47
  %v98 = vmul.f32 %v80, %v47
  %v99 = vmul.f32 %v83, %v47
  %v100 = vmul.f32 %v86, %v47
  %v101 = vmul.f32 %v89, %v47
  %v102 = vmul.f32 %v92, %v47
  %v103 = vmul.f32 %v95, %v47
  %v104 = vadd.f32 %v96, 1e-05
  %v105 = vadd.f32 %v97, 1e-05
  %v106 = vadd.f32 %v98, 1e-05
  %v107 = vadd.f32 %v99, 1e-05
  %v108 = vadd.f32 %v100, 1e-05
  %v109 = vadd.f32 %v101, 1e-05
  %v110 = vadd.f32 %v102, 1e-05
  %v111 = vadd.f32 %v103, 1e-05
  %v112 = vrsqrt.pop %v104
  %v113 = vrsqrt.pop %v105
  %v114 = vrsqrt.pop %v106
  %v115 = vrsqrt.pop %v107
  %v116 = vrsqrt.pop %v108
  %v117 = vrsqrt.pop %v109
  %v118 = vrsqrt.pop %v110
  %v119 = vrsqrt.pop %v111
  %v120 = vmul.f32 %v56, %v112
  %v121 = vmul.f32 %v57, %v113
  %v122 = vmul.f32 %v58, %v114
  %v123 = vmul.f32 %v59, %v115
  %v124 = vmul.f32 %v60, %v116
  %v125 = vmul.f32 %v61, %v117
  %v126 = vmul.f32 %v62, %v118
  %v127 = vmul.f32 %v63, %v119
  %v128 = vld [vmem:[%s1] sm:$0x1]
  %v130 = vlaneseq
  %v131 = vshrl.u32 %v130, 7
  %v132 = vsub.s32 0, %v131
  %v133 = vrot.slane %v128, %v132
  %v135 = vmul.f32 %v120, %v133
  %v136 = vmul.f32 %v121, %v133
  %v137 = vmul.f32 %v122, %v133
  %v138 = vmul.f32 %v123, %v133
  %v139 = vmul.f32 %v124, %v133
  %v140 = vmul.f32 %v125, %v133
  %v141 = vmul.f32 %v126, %v133
  %v142 = vmul.f32 %v127, %v133
  %v143 = vld [vmem:[%s2] sm:$0x1]
  %v145 = vlaneseq
  %v146 = vshrl.u32 %v145, 7
  %v147 = vsub.s32 0, %v146
  %v148 = vrot.slane %v143, %v147
  %v150 = vadd.f32 %v135, %v148
  %v151 = vadd.f32 %v136, %v148
  %v152 = vadd.f32 %v137, %v148
  %v153 = vadd.f32 %v138, %v148
  %v154 = vadd.f32 %v139, %v148
  %v155 = vadd.f32 %v140, %v148
  %v156 = vadd.f32 %v141, %v148
  %v157 = vadd.f32 %v142, %v148
  %v158 = vpack.c.bf16 %v151, %v150
  %v159 = vpack.c.bf16 %v153, %v152
  %v160 = vpack.c.bf16 %v155, %v154
  %v161 = vpack.c.bf16 %v157, %v156
  %v166 = vunpack.c.l.b16 %v158
  %v167 = vunpack.c.h.b16 %v158
  %v168 = vunpack.c.l.b16 %v159
  %v169 = vunpack.c.h.b16 %v159
  %v170 = vunpack.c.l.b16 %v160
  %v171 = vunpack.c.h.b16 %v160
  %v172 = vunpack.c.l.b16 %v161
  %v173 = vunpack.c.h.b16 %v161
  %v174 = vpack.c.b16 %v166, %v166
  %v175 = vpack.c.b16 %v167, %v167
  %v176 = vpack.c.b16 %v168, %v168
  %v177 = vpack.c.b16 %v169, %v169
  %v178 = vpack.c.b16 %v170, %v170
  %v179 = vpack.c.b16 %v171, %v171
  %v180 = vpack.c.b16 %v172, %v172
  %v181 = vpack.c.b16 %v173, %v173
  %vm190 = vcmask 125952
  %191 = vst.msk [vmem:[%s3] sm:$0xf] %vm190, %v174
  %192 = vst.msk [vmem:[%s3 + $0x4] sm:$0xf] %vm190, %v175
  %193 = vst.msk [vmem:[%s3 + $0x8] sm:$0xf] %vm190, %v176
  %194 = vst.msk [vmem:[%s3 + $0xc] sm:$0xf] %vm190, %v177
  %195 = vst.msk [vmem:[%s3 + $0x10] sm:$0xf] %vm190, %v178
  %196 = vst.msk [vmem:[%s3 + $0x14] sm:$0xf] %vm190, %v179
  %197 = vst.msk [vmem:[%s3 + $0x18] sm:$0xf] %vm190, %v180
  %198 = vst.msk [vmem:[%s3 + $0x1c] sm:$0xf] %vm190, %v181
  // Predicated region
  $region14: #{_lambda_.8} parent=0 // pred_check
    _
  $region15: #{_lambda_.8} parent=0 // pred_check_branch
    %200 = sbr.rel (0) target = $region17
  $region16: #{_lambda_.8} parent=0 // pred_region
    _
  $region17: #{_lambda_.8} parent=0 // pred_fallthru
    _
  // Predicated region
  $region18: #{_lambda_.8} parent=0 // pred_check
    _
  $region19: #{_lambda_.8} parent=0 // pred_check_branch
    %202 = sbr.rel (0) target = $region21
  $region20: #{_lambda_.8} parent=0 // pred_region
    _
  $region21: #{_lambda_.8} parent=0 // pred_fallthru
    _

// kernel: _lambda_.9
$region0: #{_lambda_.9}
  #allocation0 [shape = 'u32[]', space=smem, size = 0x4, offset = 0x4, fixed_abs, tag = 'smem constant byte address 0x4 - core index']
  #allocation1 [shape = 'u32[144,128]{1,0:T(1,128)}', space=vmem, size = 0x12000, scoped, tag = 'internal scratch']
  %s0 = inlined_call_operand.vmem [shape: bf16[16,64], index: 0, kind: input, shape index: {}]
  %s1 = inlined_call_operand.vmem [shape: bf16[64,32], index: 1, kind: input, shape index: {}]
  %s2 = inlined_call_operand.vmem [shape: f32[1,32], index: 2, kind: input, shape index: {}]
  %s3 = inlined_call_operand.vmem [shape: f32[16,1], index: 3, kind: input, shape index: {}]
  %s4 = inlined_call_operand.vmem [shape: f32[1,32], index: 4, kind: input, shape index: {}]
  %s5 = inlined_call_operand.vmem [shape: bf16[16,32], index: 5, kind: output, shape index: {0}]
  %s6 = inlined_call_operand.vmem [shape: bf16[16,32], index: 6, kind: output, shape index: {1}]
  %7 = xla_tuple %s5, %s6
  %s8 = sld [smem:[#allocation0]]
  $region38: #{_lambda_.9} parent=0
    _
  %s10 = ssub.s32 1, %s8
  %s11 = scalar_select 0, %s10, %s8
  // Predicated region
  $region2: #{_lambda_.9} parent=0 // pred_check
    _
  $region3: #{_lambda_.9} parent=0 // pred_check_branch
    %13 = sbr.rel (0) target = $region5
  $region4: #{_lambda_.9} parent=0 // pred_region
    _
  $region5: #{_lambda_.9} parent=0 // pred_fallthru
    _
  // Predicated region
  $region6: #{_lambda_.9} parent=0 // pred_check
    _
  $region7: #{_lambda_.9} parent=0 // pred_check_branch
    %15 = sbr.rel (0) target = $region9
  $region8: #{_lambda_.9} parent=0 // pred_region
    _
  $region9: #{_lambda_.9} parent=0 // pred_fallthru
    _
  // Predicated region
  $region10: #{_lambda_.9} parent=0 // pred_check
    _
  $region11: #{_lambda_.9} parent=0 // pred_check_branch
    %17 = sbr.rel (0) target = $region13
  $region12: #{_lambda_.9} parent=0 // pred_region
    _
  $region13: #{_lambda_.9} parent=0 // pred_fallthru
    _
  // Predicated region
  $region14: #{_lambda_.9} parent=0 // pred_check
    _
  $region15: #{_lambda_.9} parent=0 // pred_check_branch
    %19 = sbr.rel (0) target = $region17
  $region16: #{_lambda_.9} parent=0 // pred_region
    _
  $region17: #{_lambda_.9} parent=0 // pred_fallthru
    _
  // Predicated region
  $region18: #{_lambda_.9} parent=0 // pred_check
    _
  $region19: #{_lambda_.9} parent=0 // pred_check_branch
    %21 = sbr.rel (0) target = $region21
  $region20: #{_lambda_.9} parent=0 // pred_region
    _
  $region21: #{_lambda_.9} parent=0 // pred_fallthru
    _
  %v23 = vld [vmem:[%s0] sm:$0xf]
  %v24 = vld [vmem:[%s0 + $0x4] sm:$0xf]
  %v25 = vld [vmem:[%s1] sm:$0xf]
  %v26 = vld [vmem:[%s1 + $0x4] sm:$0xf]
  %v27 = vld [vmem:[%s1 + $0x8] sm:$0xf]
  %v28 = vld [vmem:[%s1 + $0xc] sm:$0xf]
  %v29 = vld [vmem:[%s1 + $0x10] sm:$0xf]
  %v30 = vld [vmem:[%s1 + $0x14] sm:$0xf]
  %v31 = vld [vmem:[%s1 + $0x18] sm:$0xf]
  %v32 = vld [vmem:[%s1 + $0x1c] sm:$0xf]
  %v33 = vld [vmem:[%s2] sm:$0x1]
  %v35 = vlaneseq
  %v36 = vshrl.u32 %v35, 7
  %v37 = vsub.s32 0, %v36
  %v38 = vrot.slane %v33, %v37
  %v42 = vunpack.c.l.b16 %v23
  %v43 = vunpack.c.l.b16 %v24
  %v44 = vpack.c.b16 %v43, %v42
  %v53 = vunpack.c.l.b16 %v25
  %v54 = vunpack.c.l.b16 %v26
  %v55 = vunpack.c.l.b16 %v27
  %v56 = vunpack.c.l.b16 %v28
  %v57 = vunpack.c.l.b16 %v29
  %v58 = vunpack.c.l.b16 %v30
  %v59 = vunpack.c.l.b16 %v31
  %v60 = vunpack.c.l.b16 %v32
  %v61 = vpack.c.b16 %v54, %v53
  %v62 = vpack.c.b16 %v56, %v55
  %v63 = vpack.c.b16 %v58, %v57
  %v64 = vpack.c.b16 %v60, %v59
  %vm69 = vcmask 523264
  %v71 = vsel %vm69, %v44, 0
  %73 = vmatprep.subr.bf16.mxu0 0
  %74 = vmatpush1.bf16.msra.mxu0 %v61
  %75 = vmatprep.subr.bf16.mxu0 0
  %76 = vmatpush1.bf16.msra.mxu0 %v62
  %77 = vmatprep.subr.bf16.mxu0 0
  %78 = vmatpush1.bf16.msra.mxu0 %v63
  %79 = vmatprep.subr.bf16.mxu0 0
  %80 = vmatpush1.bf16.msra.mxu0 %v64
  %81 = vmatprep.subr.bf16.mxu0 0
  %82 = vmatpush1.bf16.msra.mxu0 0
  %83 = vmatprep.subr.bf16.mxu0 0
  %84 = vmatpush1.bf16.msra.mxu0 0
  %85 = vmatprep.subr.bf16.mxu0 0
  %86 = vmatpush1.bf16.msra.mxu0 0
  %87 = vmatprep.subr.bf16.mxu0 0
  %88 = vmatpush1.bf16.msra.mxu0 0
  %89 = vmatprep.subr.bf16.mxu0 0
  %90 = vmatpush1.bf16.msra.mxu0 0
  %91 = vmatprep.subr.bf16.mxu0 0
  %92 = vmatpush1.bf16.msra.mxu0 0
  %93 = vmatprep.subr.bf16.mxu0 0
  %94 = vmatpush1.bf16.msra.mxu0 0
  %95 = vmatprep.subr.bf16.mxu0 0
  %96 = vmatpush1.bf16.msra.mxu0 0
  %97 = vmatprep.subr.bf16.mxu0 0
  %98 = vmatpush1.bf16.msra.mxu0 0
  %99 = vmatprep.subr.bf16.mxu0 0
  %100 = vmatpush1.bf16.msra.mxu0 0
  %101 = vmatprep.subr.bf16.mxu0 0
  %102 = vmatpush1.bf16.msra.mxu0 0
  %103 = vmatprep.subr.bf16.mxu0 0
  %104 = vmatpush1.bf16.msra.mxu0 0
  %105 = vmatprep.mubr.bf16.mxu0 0
  %106 = vmatmul.mubr.bf16.gmra.mrb[0].mxu0 %v71
  %v107 = vpop.f32.mrb[0].mxu0
  %v108 = vadd.f32 %v38, %v107
  %v109 = vpop.f32.mrb[0].mxu0
  %v110 = vpop.f32.mrb[0].mxu0
  %v111 = vadd.f32 %v38, %v110
  %v112 = vpop.f32.mrb[0].mxu0
  %113 = vdwg.mxu0
  %v114 = vpack.c.bf16 %v111, %v108
  %v116 = vunpack.c.l.b16 %v114
  %v117 = vunpack.c.h.b16 %v114
  %v118 = vpack.c.b16 %v116, %v116
  %v119 = vpack.c.b16 %v117, %v117
  %vm122 = vcmask 257024
  %123 = vst.msk [vmem:[%s5] sm:$0xf] %vm122, %v118
  %124 = vst.msk [vmem:[%s5 + $0x4] sm:$0xf] %vm122, %v119
  %v125 = vld [vmem:[%s3] sm:$0xff]
  %v126 = vld [vmem:[%s3 + $0x8] sm:$0xff]
  %vm127 = vcmp.gt.f32.partialorder %v125, 0.5
  %vm128 = vcmp.gt.f32.partialorder %v126, 0.5
  %v129 = vld [vmem:[%s4] sm:$0x1]
  %v130 = vsel %vm127, 1, 0
  %v131 = vsel %vm128, 1, 0
  %132 = vset.pattern.permute.xlu0 0
  %133 = vperm.xlu0 %132, %v130
  %v134 = vpop.permute.xlu0 %133
  %135 = vset.pattern.permute.xlu0 0
  %136 = vperm.xlu0 %135, %v131
  %v137 = vpop.permute.xlu0 %136
  %vm138 = vcmp.eq.s32.totalorder %v134, 1
  %vm139 = vcmp.eq.s32.totalorder %v137, 1
  %v141 = vlaneseq
  %v142 = vshrl.u32 %v141, 7
  %v143 = vsub.s32 0, %v142
  %v144 = vrot.slane %v129, %v143
  %v146 = vsel %vm138, %v144, %v108
  %v147 = vsel %vm139, %v144, %v111
  %v148 = vpack.c.bf16 %v147, %v146
  %v150 = vunpack.c.l.b16 %v148
  %v151 = vunpack.c.h.b16 %v148
  %v152 = vpack.c.b16 %v150, %v150
  %v153 = vpack.c.b16 %v151, %v151
  %156 = vst.msk [vmem:[%s6] sm:$0xf] %vm122, %v152
  %157 = vst.msk [vmem:[%s6 + $0x4] sm:$0xf] %vm122, %v153
  // Predicated region
  $region22: #{_lambda_.9} parent=0 // pred_check
    _
  $region23: #{_lambda_.9} parent=0 // pred_check_branch
    %159 = sbr.rel (0) target = $region25
  $region24: #{_lambda_.9} parent=0 // pred_region
    _
  $region25: #{_lambda_.9} parent=0 // pred_fallthru
    _
  // Predicated region
  $region26: #{_lambda_.9} parent=0 // pred_check
    _
  $region27: #{_lambda_.9} parent=0 // pred_check_branch
    %161 = sbr.rel (0) target = $region29
  $region28: #{_lambda_.9} parent=0 // pred_region
    _
  $region29: #{_lambda_.9} parent=0 // pred_fallthru
    _
  // Predicated region
  $region30: #{_lambda_.9} parent=0 // pred_check
    _
  $region31: #{_lambda_.9} parent=0 // pred_check_branch
    %163 = sbr.rel (0) target = $region33
  $region32: #{_lambda_.9} parent=0 // pred_region
    _
  $region33: #{_lambda_.9} parent=0 // pred_fallthru
    _
  // Predicated region
  $region34: #{_lambda_.9} parent=0 // pred_check
    _
  $region35: #{_lambda_.9} parent=0 // pred_check_branch
    %165 = sbr.rel (0) target = $region37
  $region36: #{_lambda_.9} parent=0 // pred_region
    _
  $region37: #{_lambda_.9} parent=0 // pred_fallthru
    _

// kernel: _lambda_.11
$region0: #{_lambda_.11}
  #allocation0 [shape = 'u32[]', space=smem, size = 0x4, offset = 0x4, fixed_abs, tag = 'smem constant byte address 0x4 - core index']
  #allocation1 [shape = 'u32[144,128]{1,0:T(1,128)}', space=vmem, size = 0x12000, scoped, tag = 'internal scratch']
  %s0 = inlined_call_operand.vmem [shape: bf16[16,64], index: 0, kind: input, shape index: {}]
  %s1 = inlined_call_operand.vmem [shape: bf16[64,32], index: 1, kind: input, shape index: {}]
  %s2 = inlined_call_operand.vmem [shape: f32[1,32], index: 2, kind: input, shape index: {}]
  %s3 = inlined_call_operand.vmem [shape: bf16[16,32], index: 3, kind: input, shape index: {}]
  %s4 = inlined_call_operand.vmem [shape: f32[16,32], index: 4, kind: output, shape index: {}]
  %s5 = sld [smem:[#allocation0]]
  $region26: #{_lambda_.11} parent=0
    _
  %s7 = ssub.s32 1, %s5
  %s8 = scalar_select 0, %s7, %s5
  // Predicated region
  $region2: #{_lambda_.11} parent=0 // pred_check
    _
  $region3: #{_lambda_.11} parent=0 // pred_check_branch
    %10 = sbr.rel (0) target = $region5
  $region4: #{_lambda_.11} parent=0 // pred_region
    _
  $region5: #{_lambda_.11} parent=0 // pred_fallthru
    _
  // Predicated region
  $region6: #{_lambda_.11} parent=0 // pred_check
    _
  $region7: #{_lambda_.11} parent=0 // pred_check_branch
    %12 = sbr.rel (0) target = $region9
  $region8: #{_lambda_.11} parent=0 // pred_region
    _
  $region9: #{_lambda_.11} parent=0 // pred_fallthru
    _
  // Predicated region
  $region10: #{_lambda_.11} parent=0 // pred_check
    _
  $region11: #{_lambda_.11} parent=0 // pred_check_branch
    %14 = sbr.rel (0) target = $region13
  $region12: #{_lambda_.11} parent=0 // pred_region
    _
  $region13: #{_lambda_.11} parent=0 // pred_fallthru
    _
  // Predicated region
  $region14: #{_lambda_.11} parent=0 // pred_check
    _
  $region15: #{_lambda_.11} parent=0 // pred_check_branch
    %16 = sbr.rel (0) target = $region17
  $region16: #{_lambda_.11} parent=0 // pred_region
    _
  $region17: #{_lambda_.11} parent=0 // pred_fallthru
    _
  %v18 = vld [vmem:[%s0] sm:$0xf]
  %v19 = vld [vmem:[%s0 + $0x4] sm:$0xf]
  %v20 = vld [vmem:[%s1] sm:$0xf]
  %v21 = vld [vmem:[%s1 + $0x4] sm:$0xf]
  %v22 = vld [vmem:[%s1 + $0x8] sm:$0xf]
  %v23 = vld [vmem:[%s1 + $0xc] sm:$0xf]
  %v24 = vld [vmem:[%s1 + $0x10] sm:$0xf]
  %v25 = vld [vmem:[%s1 + $0x14] sm:$0xf]
  %v26 = vld [vmem:[%s1 + $0x18] sm:$0xf]
  %v27 = vld [vmem:[%s1 + $0x1c] sm:$0xf]
  %v28 = vld [vmem:[%s2] sm:$0x1]
  %v30 = vlaneseq
  %v31 = vshrl.u32 %v30, 7
  %v32 = vsub.s32 0, %v31
  %v33 = vrot.slane %v28, %v32
  %v37 = vunpack.c.l.b16 %v18
  %v38 = vunpack.c.l.b16 %v19
  %v39 = vpack.c.b16 %v38, %v37
  %v48 = vunpack.c.l.b16 %v20
  %v49 = vunpack.c.l.b16 %v21
  %v50 = vunpack.c.l.b16 %v22
  %v51 = vunpack.c.l.b16 %v23
  %v52 = vunpack.c.l.b16 %v24
  %v53 = vunpack.c.l.b16 %v25
  %v54 = vunpack.c.l.b16 %v26
  %v55 = vunpack.c.l.b16 %v27
  %v56 = vpack.c.b16 %v49, %v48
  %v57 = vpack.c.b16 %v51, %v50
  %v58 = vpack.c.b16 %v53, %v52
  %v59 = vpack.c.b16 %v55, %v54
  %vm64 = vcmask 523264
  %v66 = vsel %vm64, %v39, 0
  %68 = vmatprep.subr.bf16.mxu0 0
  %69 = vmatpush1.bf16.msra.mxu0 %v56
  %70 = vmatprep.subr.bf16.mxu0 0
  %71 = vmatpush1.bf16.msra.mxu0 %v57
  %72 = vmatprep.subr.bf16.mxu0 0
  %73 = vmatpush1.bf16.msra.mxu0 %v58
  %74 = vmatprep.subr.bf16.mxu0 0
  %75 = vmatpush1.bf16.msra.mxu0 %v59
  %76 = vmatprep.subr.bf16.mxu0 0
  %77 = vmatpush1.bf16.msra.mxu0 0
  %78 = vmatprep.subr.bf16.mxu0 0
  %79 = vmatpush1.bf16.msra.mxu0 0
  %80 = vmatprep.subr.bf16.mxu0 0
  %81 = vmatpush1.bf16.msra.mxu0 0
  %82 = vmatprep.subr.bf16.mxu0 0
  %83 = vmatpush1.bf16.msra.mxu0 0
  %84 = vmatprep.subr.bf16.mxu0 0
  %85 = vmatpush1.bf16.msra.mxu0 0
  %86 = vmatprep.subr.bf16.mxu0 0
  %87 = vmatpush1.bf16.msra.mxu0 0
  %88 = vmatprep.subr.bf16.mxu0 0
  %89 = vmatpush1.bf16.msra.mxu0 0
  %90 = vmatprep.subr.bf16.mxu0 0
  %91 = vmatpush1.bf16.msra.mxu0 0
  %92 = vmatprep.subr.bf16.mxu0 0
  %93 = vmatpush1.bf16.msra.mxu0 0
  %94 = vmatprep.subr.bf16.mxu0 0
  %95 = vmatpush1.bf16.msra.mxu0 0
  %96 = vmatprep.subr.bf16.mxu0 0
  %97 = vmatpush1.bf16.msra.mxu0 0
  %98 = vmatprep.subr.bf16.mxu0 0
  %99 = vmatpush1.bf16.msra.mxu0 0
  %100 = vmatprep.mubr.bf16.mxu0 0
  %101 = vmatmul.mubr.bf16.gmra.mrb[0].mxu0 %v66
  %v102 = vpop.f32.mrb[0].mxu0
  %v103 = vadd.f32 %v33, %v102
  %v104 = vpop.f32.mrb[0].mxu0
  %v105 = vpop.f32.mrb[0].mxu0
  %v106 = vadd.f32 %v33, %v105
  %v107 = vpop.f32.mrb[0].mxu0
  %108 = vdwg.mxu0
  %v109 = vld [vmem:[%s3] sm:$0xf]
  %v110 = vld [vmem:[%s3 + $0x4] sm:$0xf]
  %v111 = vunpack.c.l.bf16 %v109
  %v112 = vunpack.c.l.bf16 %v110
  %v113 = vadd.f32 %v103, %v111
  %v114 = vadd.f32 %v106, %v112
  %vm115 = vcmask 261120
  %116 = vst.msk [vmem:[%s4] sm:$0xff] %vm115, %v113
  %117 = vst.msk [vmem:[%s4 + $0x8] sm:$0xff] %vm115, %v114
  // Predicated region
  $region18: #{_lambda_.11} parent=0 // pred_check
    _
  $region19: #{_lambda_.11} parent=0 // pred_check_branch
    %119 = sbr.rel (0) target = $region21
  $region20: #{_lambda_.11} parent=0 // pred_region
    _
  $region21: #{_lambda_.11} parent=0 // pred_fallthru
    _
  // Predicated region
  $region22: #{_lambda_.11} parent=0 // pred_check
    _
  $region23: #{_lambda_.11} parent=0 // pred_check_branch
    %121 = sbr.rel (0) target = $region25
  $region24: #{_lambda_.11} parent=0 // pred_region
    _
  $region25: #{_lambda_.11} parent=0 // pred_fallthru
    _

// kernel: _lambda_.10
$region0: #{_lambda_.10}
  #allocation0 [shape = 'u32[]', space=smem, size = 0x4, offset = 0x4, fixed_abs, tag = 'smem constant byte address 0x4 - core index']
  #allocation1 [shape = 'u32[144,128]{1,0:T(1,128)}', space=vmem, size = 0x12000, scoped, tag = 'internal scratch']
  %s0 = inlined_call_operand.vmem [shape: bf16[16,32], index: 0, kind: input, shape index: {}]
  %s1 = inlined_call_operand.vmem [shape: f32[1,32], index: 1, kind: input, shape index: {}]
  %s2 = inlined_call_operand.vmem [shape: f32[1,32], index: 2, kind: input, shape index: {}]
  %s3 = inlined_call_operand.vmem [shape: bf16[32,64], index: 3, kind: input, shape index: {}]
  %s4 = inlined_call_operand.vmem [shape: f32[1,64], index: 4, kind: input, shape index: {}]
  %s5 = inlined_call_operand.vmem [shape: bf16[16,64], index: 5, kind: output, shape index: {}]
  %s6 = sld [smem:[#allocation0]]
  $region30: #{_lambda_.10} parent=0
    _
  %s8 = ssub.s32 1, %s6
  %s9 = scalar_select 0, %s8, %s6
  // Predicated region
  $region2: #{_lambda_.10} parent=0 // pred_check
    _
  $region3: #{_lambda_.10} parent=0 // pred_check_branch
    %11 = sbr.rel (0) target = $region5
  $region4: #{_lambda_.10} parent=0 // pred_region
    _
  $region5: #{_lambda_.10} parent=0 // pred_fallthru
    _
  // Predicated region
  $region6: #{_lambda_.10} parent=0 // pred_check
    _
  $region7: #{_lambda_.10} parent=0 // pred_check_branch
    %13 = sbr.rel (0) target = $region9
  $region8: #{_lambda_.10} parent=0 // pred_region
    _
  $region9: #{_lambda_.10} parent=0 // pred_fallthru
    _
  // Predicated region
  $region10: #{_lambda_.10} parent=0 // pred_check
    _
  $region11: #{_lambda_.10} parent=0 // pred_check_branch
    %15 = sbr.rel (0) target = $region13
  $region12: #{_lambda_.10} parent=0 // pred_region
    _
  $region13: #{_lambda_.10} parent=0 // pred_fallthru
    _
  // Predicated region
  $region14: #{_lambda_.10} parent=0 // pred_check
    _
  $region15: #{_lambda_.10} parent=0 // pred_check_branch
    %17 = sbr.rel (0) target = $region17
  $region16: #{_lambda_.10} parent=0 // pred_region
    _
  $region17: #{_lambda_.10} parent=0 // pred_fallthru
    _
  // Predicated region
  $region18: #{_lambda_.10} parent=0 // pred_check
    _
  $region19: #{_lambda_.10} parent=0 // pred_check_branch
    %19 = sbr.rel (0) target = $region21
  $region20: #{_lambda_.10} parent=0 // pred_region
    _
  $region21: #{_lambda_.10} parent=0 // pred_fallthru
    _
  %v21 = vld [vmem:[%s0] sm:$0xf]
  %v22 = vld [vmem:[%s0 + $0x4] sm:$0xf]
  %v23 = vunpack.c.l.bf16 %v21
  %v24 = vunpack.c.l.bf16 %v22
  %vm25 = vcmask 261120
  %v26 = vsel %vm25, %v23, 0.0
  %27 = vadd.xlane.f32.xlu0 %v26
  %v28 = vpop.xlane.xlu0 %27
  %v29 = vsel %vm25, %v24, 0.0
  %30 = vadd.xlane.f32.xlu0 %v29
  %v31 = vpop.xlane.xlu0 %30
  %v32 = vrcp.pop 32.0
  %v33 = vmul.f32 %v28, %v32
  %v34 = vmul.f32 %v31, %v32
  %v35 = vsub.f32 %v23, %v33
  %v36 = vsub.f32 %v24, %v34
  %v37 = vmul.f32 %v35, %v35
  %v38 = vmul.f32 %v36, %v36
  %v39 = vsel %vm25, %v37, 0.0
  %40 = vadd.xlane.f32.xlu0 %v39
  %v41 = vpop.xlane.xlu0 %40
  %v42 = vsel %vm25, %v38, 0.0
  %43 = vadd.xlane.f32.xlu0 %v42
  %v44 = vpop.xlane.xlu0 %43
  %v45 = vmul.f32 %v41, %v32
  %v46 = vmul.f32 %v44, %v32
  %v47 = vadd.f32 %v45, 1e-05
  %v48 = vadd.f32 %v46, 1e-05
  %v49 = vrsqrt.pop %v47
  %v50 = vrsqrt.pop %v48
  %v51 = vmul.f32 %v35, %v49
  %v52 = vmul.f32 %v36, %v50
  %v53 = vld [vmem:[%s1] sm:$0x1]
  %v55 = vlaneseq
  %v56 = vshrl.u32 %v55, 7
  %v57 = vsub.s32 0, %v56
  %v58 = vrot.slane %v53, %v57
  %v60 = vmul.f32 %v51, %v58
  %v61 = vmul.f32 %v52, %v58
  %v62 = vld [vmem:[%s2] sm:$0x1]
  %v64 = vlaneseq
  %v65 = vshrl.u32 %v64, 7
  %v66 = vsub.s32 0, %v65
  %v67 = vrot.slane %v62, %v66
  %v69 = vadd.f32 %v60, %v67
  %v70 = vadd.f32 %v61, %v67
  %v71 = vpack.c.bf16 %v70, %v69
  %v72 = vld [vmem:[%s3] sm:$0xf]
  %v73 = vld [vmem:[%s3 + $0x4] sm:$0xf]
  %v74 = vld [vmem:[%s3 + $0x8] sm:$0xf]
  %v75 = vld [vmem:[%s3 + $0xc] sm:$0xf]
  %v76 = vld [vmem:[%s4] sm:$0x1]
  %v78 = vlaneseq
  %v79 = vshrl.u32 %v78, 7
  %v80 = vsub.s32 0, %v79
  %v81 = vrot.slane %v76, %v80
  %v87 = vunpack.c.l.b16 %v72
  %v88 = vunpack.c.l.b16 %v73
  %v89 = vunpack.c.l.b16 %v74
  %v90 = vunpack.c.l.b16 %v75
  %v91 = vpack.c.b16 %v88, %v87
  %v92 = vpack.c.b16 %v90, %v89
  %v96 = vsel %vm25, %v71, 0
  %98 = vmatprep.subr.bf16.mxu0 0
  %99 = vmatpush1.bf16.msra.mxu0 %v91
  %100 = vmatprep.subr.bf16.mxu0 0
  %101 = vmatpush1.bf16.msra.mxu0 %v92
  %102 = vmatprep.subr.bf16.mxu0 0
  %103 = vmatpush1.bf16.msra.mxu0 0
  %104 = vmatprep.subr.bf16.mxu0 0
  %105 = vmatpush1.bf16.msra.mxu0 0
  %106 = vmatprep.subr.bf16.mxu0 0
  %107 = vmatpush1.bf16.msra.mxu0 0
  %108 = vmatprep.subr.bf16.mxu0 0
  %109 = vmatpush1.bf16.msra.mxu0 0
  %110 = vmatprep.subr.bf16.mxu0 0
  %111 = vmatpush1.bf16.msra.mxu0 0
  %112 = vmatprep.subr.bf16.mxu0 0
  %113 = vmatpush1.bf16.msra.mxu0 0
  %114 = vmatprep.subr.bf16.mxu0 0
  %115 = vmatpush1.bf16.msra.mxu0 0
  %116 = vmatprep.subr.bf16.mxu0 0
  %117 = vmatpush1.bf16.msra.mxu0 0
  %118 = vmatprep.subr.bf16.mxu0 0
  %119 = vmatpush1.bf16.msra.mxu0 0
  %120 = vmatprep.subr.bf16.mxu0 0
  %121 = vmatpush1.bf16.msra.mxu0 0
  %122 = vmatprep.subr.bf16.mxu0 0
  %123 = vmatpush1.bf16.msra.mxu0 0
  %124 = vmatprep.subr.bf16.mxu0 0
  %125 = vmatpush1.bf16.msra.mxu0 0
  %126 = vmatprep.subr.bf16.mxu0 0
  %127 = vmatpush1.bf16.msra.mxu0 0
  %128 = vmatprep.subr.bf16.mxu0 0
  %129 = vmatpush1.bf16.msra.mxu0 0
  %130 = vmatprep.mubr.bf16.mxu0 0
  %131 = vmatmul.mubr.bf16.gmra.mrb[0].mxu0 %v96
  %v132 = vpop.f32.mrb[0].mxu0
  %v133 = vadd.f32 %v81, %v132
  %v134 = vpop.f32.mrb[0].mxu0
  %v135 = vpop.f32.mrb[0].mxu0
  %v136 = vadd.f32 %v81, %v135
  %v137 = vpop.f32.mrb[0].mxu0
  %138 = vdwg.mxu0
  %v139 = vmax.f32 %v133, 0.0
  %v140 = vmax.f32 %v136, 0.0
  %v141 = vpack.c.bf16 %v140, %v139
  %v143 = vunpack.c.l.b16 %v141
  %v144 = vunpack.c.h.b16 %v141
  %v145 = vpack.c.b16 %v143, %v143
  %v146 = vpack.c.b16 %v144, %v144
  %vm149 = vcmask 519168
  %150 = vst.msk [vmem:[%s5] sm:$0xf] %vm149, %v145
  %151 = vst.msk [vmem:[%s5 + $0x4] sm:$0xf] %vm149, %v146
  // Predicated region
  $region22: #{_lambda_.10} parent=0 // pred_check
    _
  $region23: #{_lambda_.10} parent=0 // pred_check_branch
    %153 = sbr.rel (0) target = $region25
  $region24: #{_lambda_.10} parent=0 // pred_region
    _
  $region25: #{_lambda_.10} parent=0 // pred_fallthru
    _
  // Predicated region
  $region26: #{_lambda_.10} parent=0 // pred_check
    _
  $region27: #{_lambda_.10} parent=0 // pred_check_branch
    %155 = sbr.rel (0) target = $region29
  $region28: #{_lambda_.10} parent=0 // pred_region
    _
  $region29: #{_lambda_.10} parent=0 // pred_fallthru
    _

// kernel: _lambda_.12
$region0: #{_lambda_.12}
  #allocation0 [shape = 'u32[]', space=smem, size = 0x4, offset = 0x4, fixed_abs, tag = 'smem constant byte address 0x4 - core index']
  #allocation1 [shape = 'u32[144,128]{1,0:T(1,128)}', space=vmem, size = 0x12000, scoped, tag = 'internal scratch']
  %s0 = inlined_call_operand.vmem [shape: f32[16,32], index: 0, kind: input, shape index: {}]
  %s1 = inlined_call_operand.vmem [shape: f32[1,32], index: 1, kind: input, shape index: {}]
  %s2 = inlined_call_operand.vmem [shape: f32[1,32], index: 2, kind: input, shape index: {}]
  %s3 = inlined_call_operand.vmem [shape: bf16[32,64], index: 3, kind: input, shape index: {}]
  %s4 = inlined_call_operand.vmem [shape: f32[1,64], index: 4, kind: input, shape index: {}]
  %s5 = inlined_call_operand.vmem [shape: bf16[16,64], index: 5, kind: output, shape index: {}]
  %s6 = sld [smem:[#allocation0]]
  $region30: #{_lambda_.12} parent=0
    _
  %s8 = ssub.s32 1, %s6
  %s9 = scalar_select 0, %s8, %s6
  // Predicated region
  $region2: #{_lambda_.12} parent=0 // pred_check
    _
  $region3: #{_lambda_.12} parent=0 // pred_check_branch
    %11 = sbr.rel (0) target = $region5
  $region4: #{_lambda_.12} parent=0 // pred_region
    _
  $region5: #{_lambda_.12} parent=0 // pred_fallthru
    _
  // Predicated region
  $region6: #{_lambda_.12} parent=0 // pred_check
    _
  $region7: #{_lambda_.12} parent=0 // pred_check_branch
    %13 = sbr.rel (0) target = $region9
  $region8: #{_lambda_.12} parent=0 // pred_region
    _
  $region9: #{_lambda_.12} parent=0 // pred_fallthru
    _
  // Predicated region
  $region10: #{_lambda_.12} parent=0 // pred_check
    _
  $region11: #{_lambda_.12} parent=0 // pred_check_branch
    %15 = sbr.rel (0) target = $region13
  $region12: #{_lambda_.12} parent=0 // pred_region
    _
  $region13: #{_lambda_.12} parent=0 // pred_fallthru
    _
  // Predicated region
  $region14: #{_lambda_.12} parent=0 // pred_check
    _
  $region15: #{_lambda_.12} parent=0 // pred_check_branch
    %17 = sbr.rel (0) target = $region17
  $region16: #{_lambda_.12} parent=0 // pred_region
    _
  $region17: #{_lambda_.12} parent=0 // pred_fallthru
    _
  // Predicated region
  $region18: #{_lambda_.12} parent=0 // pred_check
    _
  $region19: #{_lambda_.12} parent=0 // pred_check_branch
    %19 = sbr.rel (0) target = $region21
  $region20: #{_lambda_.12} parent=0 // pred_region
    _
  $region21: #{_lambda_.12} parent=0 // pred_fallthru
    _
  %v21 = vld [vmem:[%s0] sm:$0xff]
  %v22 = vld [vmem:[%s0 + $0x8] sm:$0xff]
  %vm23 = vcmask 261120
  %v24 = vsel %vm23, %v21, 0.0
  %25 = vadd.xlane.f32.xlu0 %v24
  %v26 = vpop.xlane.xlu0 %25
  %v27 = vsel %vm23, %v22, 0.0
  %28 = vadd.xlane.f32.xlu0 %v27
  %v29 = vpop.xlane.xlu0 %28
  %v30 = vrcp.pop 32.0
  %v31 = vmul.f32 %v26, %v30
  %v32 = vmul.f32 %v29, %v30
  %v33 = vsub.f32 %v21, %v31
  %v34 = vsub.f32 %v22, %v32
  %v35 = vmul.f32 %v33, %v33
  %v36 = vmul.f32 %v34, %v34
  %v37 = vsel %vm23, %v35, 0.0
  %38 = vadd.xlane.f32.xlu0 %v37
  %v39 = vpop.xlane.xlu0 %38
  %v40 = vsel %vm23, %v36, 0.0
  %41 = vadd.xlane.f32.xlu0 %v40
  %v42 = vpop.xlane.xlu0 %41
  %v43 = vmul.f32 %v39, %v30
  %v44 = vmul.f32 %v42, %v30
  %v45 = vadd.f32 %v43, 1e-05
  %v46 = vadd.f32 %v44, 1e-05
  %v47 = vrsqrt.pop %v45
  %v48 = vrsqrt.pop %v46
  %v49 = vmul.f32 %v33, %v47
  %v50 = vmul.f32 %v34, %v48
  %v51 = vld [vmem:[%s1] sm:$0x1]
  %v53 = vlaneseq
  %v54 = vshrl.u32 %v53, 7
  %v55 = vsub.s32 0, %v54
  %v56 = vrot.slane %v51, %v55
  %v58 = vmul.f32 %v49, %v56
  %v59 = vmul.f32 %v50, %v56
  %v60 = vld [vmem:[%s2] sm:$0x1]
  %v62 = vlaneseq
  %v63 = vshrl.u32 %v62, 7
  %v64 = vsub.s32 0, %v63
  %v65 = vrot.slane %v60, %v64
  %v67 = vadd.f32 %v58, %v65
  %v68 = vadd.f32 %v59, %v65
  %v69 = vpack.c.bf16 %v68, %v67
  %v70 = vld [vmem:[%s3] sm:$0xf]
  %v71 = vld [vmem:[%s3 + $0x4] sm:$0xf]
  %v72 = vld [vmem:[%s3 + $0x8] sm:$0xf]
  %v73 = vld [vmem:[%s3 + $0xc] sm:$0xf]
  %v74 = vld [vmem:[%s4] sm:$0x1]
  %v76 = vlaneseq
  %v77 = vshrl.u32 %v76, 7
  %v78 = vsub.s32 0, %v77
  %v79 = vrot.slane %v74, %v78
  %v85 = vunpack.c.l.b16 %v70
  %v86 = vunpack.c.l.b16 %v71
  %v87 = vunpack.c.l.b16 %v72
  %v88 = vunpack.c.l.b16 %v73
  %v89 = vpack.c.b16 %v86, %v85
  %v90 = vpack.c.b16 %v88, %v87
  %v94 = vsel %vm23, %v69, 0
  %96 = vmatprep.subr.bf16.mxu0 0
  %97 = vmatpush1.bf16.msra.mxu0 %v89
  %98 = vmatprep.subr.bf16.mxu0 0
  %99 = vmatpush1.bf16.msra.mxu0 %v90
  %100 = vmatprep.subr.bf16.mxu0 0
  %101 = vmatpush1.bf16.msra.mxu0 0
  %102 = vmatprep.subr.bf16.mxu0 0
  %103 = vmatpush1.bf16.msra.mxu0 0
  %104 = vmatprep.subr.bf16.mxu0 0
  %105 = vmatpush1.bf16.msra.mxu0 0
  %106 = vmatprep.subr.bf16.mxu0 0
  %107 = vmatpush1.bf16.msra.mxu0 0
  %108 = vmatprep.subr.bf16.mxu0 0
  %109 = vmatpush1.bf16.msra.mxu0 0
  %110 = vmatprep.subr.bf16.mxu0 0
  %111 = vmatpush1.bf16.msra.mxu0 0
  %112 = vmatprep.subr.bf16.mxu0 0
  %113 = vmatpush1.bf16.msra.mxu0 0
  %114 = vmatprep.subr.bf16.mxu0 0
  %115 = vmatpush1.bf16.msra.mxu0 0
  %116 = vmatprep.subr.bf16.mxu0 0
  %117 = vmatpush1.bf16.msra.mxu0 0
  %118 = vmatprep.subr.bf16.mxu0 0
  %119 = vmatpush1.bf16.msra.mxu0 0
  %120 = vmatprep.subr.bf16.mxu0 0
  %121 = vmatpush1.bf16.msra.mxu0 0
  %122 = vmatprep.subr.bf16.mxu0 0
  %123 = vmatpush1.bf16.msra.mxu0 0
  %124 = vmatprep.subr.bf16.mxu0 0
  %125 = vmatpush1.bf16.msra.mxu0 0
  %126 = vmatprep.subr.bf16.mxu0 0
  %127 = vmatpush1.bf16.msra.mxu0 0
  %128 = vmatprep.mubr.bf16.mxu0 0
  %129 = vmatmul.mubr.bf16.gmra.mrb[0].mxu0 %v94
  %v130 = vpop.f32.mrb[0].mxu0
  %v131 = vadd.f32 %v79, %v130
  %v132 = vpop.f32.mrb[0].mxu0
  %v133 = vpop.f32.mrb[0].mxu0
  %v134 = vadd.f32 %v79, %v133
  %v135 = vpop.f32.mrb[0].mxu0
  %136 = vdwg.mxu0
  %v137 = vmax.f32 %v131, 0.0
  %v138 = vmax.f32 %v134, 0.0
  %v139 = vpack.c.bf16 %v138, %v137
  %v141 = vunpack.c.l.b16 %v139
  %v142 = vunpack.c.h.b16 %v139
  %v143 = vpack.c.b16 %v141, %v141
  %v144 = vpack.c.b16 %v142, %v142
  %vm147 = vcmask 519168
  %148 = vst.msk [vmem:[%s5] sm:$0xf] %vm147, %v143
  %149 = vst.msk [vmem:[%s5 + $0x4] sm:$0xf] %vm147, %v144
  // Predicated region
  $region22: #{_lambda_.12} parent=0 // pred_check
    _
  $region23: #{_lambda_.12} parent=0 // pred_check_branch
    %151 = sbr.rel (0) target = $region25
  $region24: #{_lambda_.12} parent=0 // pred_region
    _
  $region25: #{_lambda_.12} parent=0 // pred_fallthru
    _
  // Predicated region
  $region26: #{_lambda_.12} parent=0 // pred_check
    _
  $region27: #{_lambda_.12} parent=0 // pred_check_branch
    %153 = sbr.rel (0) target = $region29
  $region28: #{_lambda_.12} parent=0 // pred_region
    _
  $region29: #{_lambda_.12} parent=0 // pred_fallthru
    _

// kernel: _lambda_.13
$region0: #{_lambda_.13}
  #allocation0 [shape = 'u32[]', space=smem, size = 0x4, offset = 0x4, fixed_abs, tag = 'smem constant byte address 0x4 - core index']
  #allocation1 [shape = 'u32[144,128]{1,0:T(1,128)}', space=vmem, size = 0x12000, scoped, tag = 'internal scratch']
  %s0 = inlined_call_operand.vmem [shape: bf16[16,64], index: 0, kind: input, shape index: {}]
  %s1 = inlined_call_operand.vmem [shape: bf16[64,32], index: 1, kind: input, shape index: {}]
  %s2 = inlined_call_operand.vmem [shape: f32[1,32], index: 2, kind: input, shape index: {}]
  %s3 = inlined_call_operand.vmem [shape: f32[16,32], index: 3, kind: input, shape index: {}]
  %s4 = inlined_call_operand.vmem [shape: f32[16,32], index: 4, kind: output, shape index: {}]
  %s5 = sld [smem:[#allocation0]]
  $region26: #{_lambda_.13} parent=0
    _
  %s7 = ssub.s32 1, %s5
  %s8 = scalar_select 0, %s7, %s5
  // Predicated region
  $region2: #{_lambda_.13} parent=0 // pred_check
    _
  $region3: #{_lambda_.13} parent=0 // pred_check_branch
    %10 = sbr.rel (0) target = $region5
  $region4: #{_lambda_.13} parent=0 // pred_region
    _
  $region5: #{_lambda_.13} parent=0 // pred_fallthru
    _
  // Predicated region
  $region6: #{_lambda_.13} parent=0 // pred_check
    _
  $region7: #{_lambda_.13} parent=0 // pred_check_branch
    %12 = sbr.rel (0) target = $region9
  $region8: #{_lambda_.13} parent=0 // pred_region
    _
  $region9: #{_lambda_.13} parent=0 // pred_fallthru
    _
  // Predicated region
  $region10: #{_lambda_.13} parent=0 // pred_check
    _
  $region11: #{_lambda_.13} parent=0 // pred_check_branch
    %14 = sbr.rel (0) target = $region13
  $region12: #{_lambda_.13} parent=0 // pred_region
    _
  $region13: #{_lambda_.13} parent=0 // pred_fallthru
    _
  // Predicated region
  $region14: #{_lambda_.13} parent=0 // pred_check
    _
  $region15: #{_lambda_.13} parent=0 // pred_check_branch
    %16 = sbr.rel (0) target = $region17
  $region16: #{_lambda_.13} parent=0 // pred_region
    _
  $region17: #{_lambda_.13} parent=0 // pred_fallthru
    _
  %v18 = vld [vmem:[%s0] sm:$0xf]
  %v19 = vld [vmem:[%s0 + $0x4] sm:$0xf]
  %v20 = vld [vmem:[%s1] sm:$0xf]
  %v21 = vld [vmem:[%s1 + $0x4] sm:$0xf]
  %v22 = vld [vmem:[%s1 + $0x8] sm:$0xf]
  %v23 = vld [vmem:[%s1 + $0xc] sm:$0xf]
  %v24 = vld [vmem:[%s1 + $0x10] sm:$0xf]
  %v25 = vld [vmem:[%s1 + $0x14] sm:$0xf]
  %v26 = vld [vmem:[%s1 + $0x18] sm:$0xf]
  %v27 = vld [vmem:[%s1 + $0x1c] sm:$0xf]
  %v28 = vld [vmem:[%s2] sm:$0x1]
  %v30 = vlaneseq
  %v31 = vshrl.u32 %v30, 7
  %v32 = vsub.s32 0, %v31
  %v33 = vrot.slane %v28, %v32
  %v37 = vunpack.c.l.b16 %v18
  %v38 = vunpack.c.l.b16 %v19
  %v39 = vpack.c.b16 %v38, %v37
  %v48 = vunpack.c.l.b16 %v20
  %v49 = vunpack.c.l.b16 %v21
  %v50 = vunpack.c.l.b16 %v22
  %v51 = vunpack.c.l.b16 %v23
  %v52 = vunpack.c.l.b16 %v24
  %v53 = vunpack.c.l.b16 %v25
  %v54 = vunpack.c.l.b16 %v26
  %v55 = vunpack.c.l.b16 %v27
  %v56 = vpack.c.b16 %v49, %v48
  %v57 = vpack.c.b16 %v51, %v50
  %v58 = vpack.c.b16 %v53, %v52
  %v59 = vpack.c.b16 %v55, %v54
  %vm64 = vcmask 523264
  %v66 = vsel %vm64, %v39, 0
  %68 = vmatprep.subr.bf16.mxu0 0
  %69 = vmatpush1.bf16.msra.mxu0 %v56
  %70 = vmatprep.subr.bf16.mxu0 0
  %71 = vmatpush1.bf16.msra.mxu0 %v57
  %72 = vmatprep.subr.bf16.mxu0 0
  %73 = vmatpush1.bf16.msra.mxu0 %v58
  %74 = vmatprep.subr.bf16.mxu0 0
  %75 = vmatpush1.bf16.msra.mxu0 %v59
  %76 = vmatprep.subr.bf16.mxu0 0
  %77 = vmatpush1.bf16.msra.mxu0 0
  %78 = vmatprep.subr.bf16.mxu0 0
  %79 = vmatpush1.bf16.msra.mxu0 0
  %80 = vmatprep.subr.bf16.mxu0 0
  %81 = vmatpush1.bf16.msra.mxu0 0
  %82 = vmatprep.subr.bf16.mxu0 0
  %83 = vmatpush1.bf16.msra.mxu0 0
  %84 = vmatprep.subr.bf16.mxu0 0
  %85 = vmatpush1.bf16.msra.mxu0 0
  %86 = vmatprep.subr.bf16.mxu0 0
  %87 = vmatpush1.bf16.msra.mxu0 0
  %88 = vmatprep.subr.bf16.mxu0 0
  %89 = vmatpush1.bf16.msra.mxu0 0
  %90 = vmatprep.subr.bf16.mxu0 0
  %91 = vmatpush1.bf16.msra.mxu0 0
  %92 = vmatprep.subr.bf16.mxu0 0
  %93 = vmatpush1.bf16.msra.mxu0 0
  %94 = vmatprep.subr.bf16.mxu0 0
  %95 = vmatpush1.bf16.msra.mxu0 0
  %96 = vmatprep.subr.bf16.mxu0 0
  %97 = vmatpush1.bf16.msra.mxu0 0
  %98 = vmatprep.subr.bf16.mxu0 0
  %99 = vmatpush1.bf16.msra.mxu0 0
  %100 = vmatprep.mubr.bf16.mxu0 0
  %101 = vmatmul.mubr.bf16.gmra.mrb[0].mxu0 %v66
  %v102 = vpop.f32.mrb[0].mxu0
  %v103 = vadd.f32 %v33, %v102
  %v104 = vpop.f32.mrb[0].mxu0
  %v105 = vpop.f32.mrb[0].mxu0
  %v106 = vadd.f32 %v33, %v105
  %v107 = vpop.f32.mrb[0].mxu0
  %108 = vdwg.mxu0
  %v109 = vld [vmem:[%s3] sm:$0xff]
  %v110 = vld [vmem:[%s3 + $0x8] sm:$0xff]
  %v111 = vadd.f32 %v103, %v109
  %v112 = vadd.f32 %v106, %v110
  %vm113 = vcmask 261120
  %114 = vst.msk [vmem:[%s4] sm:$0xff] %vm113, %v111
  %115 = vst.msk [vmem:[%s4 + $0x8] sm:$0xff] %vm113, %v112
  // Predicated region
  $region18: #{_lambda_.13} parent=0 // pred_check
    _
  $region19: #{_lambda_.13} parent=0 // pred_check_branch
    %117 = sbr.rel (0) target = $region21
  $region20: #{_lambda_.13} parent=0 // pred_region
    _
  $region21: #{_lambda_.13} parent=0 // pred_fallthru
    _
  // Predicated region
  $region22: #{_lambda_.13} parent=0 // pred_check
    _
  $region23: #{_lambda_.13} parent=0 // pred_check_branch
    %119 = sbr.rel (0) target = $region25
  $region24: #{_lambda_.13} parent=0 // pred_region
    _
  $region25: #{_lambda_.13} parent=0 // pred_fallthru
    _

// kernel: _lambda_.14
$region0: #{_lambda_.14}
  #allocation0 [shape = 'u32[]', space=smem, size = 0x4, offset = 0x4, fixed_abs, tag = 'smem constant byte address 0x4 - core index']
  #allocation1 [shape = 'u32[144,128]{1,0:T(1,128)}', space=vmem, size = 0x12000, scoped, tag = 'internal scratch']
  #allocation2 [shape = 'bf16[8,16]{1,0:T(8,128)(2,1)}', space=vmem, size = 0x800, scoped, tag = 'scratch operand']
  #allocation3 [shape = 'f32[8,1]{1,0:T(8,128)}', space=vmem, size = 0x1000, scoped, tag = 'scratch operand']
  #allocation4 [shape = 's32[8,1]{1,0:T(8,128)}', space=vmem, size = 0x1000, scoped, tag = 'scratch operand']
  %s0 = inlined_call_operand.vmem [shape: bf16[2,8,32], index: 0, kind: input, shape index: {}]
  %s1 = inlined_call_operand.vmem [shape: bf16[2,8,32], index: 1, kind: input, shape index: {}]
  %s2 = inlined_call_operand.vmem [shape: bf16[32,16], index: 2, kind: input, shape index: {}]
  %s3 = inlined_call_operand.vmem [shape: bf16[2,16,128], index: 3, kind: input, shape index: {}]
  %s4 = inlined_call_operand.vmem [shape: f32[2,1,128], index: 4, kind: input, shape index: {}]
  %s5 = inlined_call_operand.vmem [shape: s32[2,2,8,1], index: 5, kind: output, shape index: {}]
  %s6 = sld [smem:[#allocation0]]
  $region61: #{_lambda_.14} parent=0
    _
  %s8 = ssub.s32 1, %s6
  %s9 = scalar_select 0, %s8, %s6
  loop: start=0, step=1, limit=6
  $region2: #{_lambda_.14} parent=0 // loop_pre_header
    _
  $region3: #{_lambda_.14} parent=0 // loop_header
    %s11 = sphi 0, %s15
    %p12 = scmp.ge.s32.totalorder %s11, 6
    %s18 = sphi 0, %s44
    %s19 = sphi 0, %s40
    %s20 = sphi 0, %s36
    %s21 = sphi 0, %s32
    %s22 = sphi 0, %s18
    %s23 = sphi 0, %s19
    %s24 = sphi 0, %s20
    %s25 = sphi 0, %s21
    %s26 = sphi 0, %s22
    %s27 = sphi 0, %s23
    %s28 = sphi 0, %s24
    %s29 = sphi 0, %s25
    %s49 = sphi 0, %s51
    %s52 = sphi 0, %s49
    %s53 = sphi 0, %s52
    %s69 = sphi 0, %s53
    %s77 = sphi 0, %s79
    %s80 = sphi 0, %s77
    %s81 = sphi 0, %s80
    %s97 = sphi 0, %s81
    %s101 = sphi 0, %s101
    %s103 = sphi 0, %s101
    %s104 = sphi 0, %s103
    %s118 = sphi 0, %s104
    %s126 = sphi 0, %s128
    %s129 = sphi 0, %s126
    %s130 = sphi 0, %s129
    %s146 = sphi 0, %s130
    %s154 = sphi 0, %s156
    %s157 = sphi 0, %s154
    %s158 = sphi 0, %s157
    %s174 = sphi 0, %s158
    %s184 = sphi 0, %s186
    %s187 = sphi 0, %s184
    %s188 = sphi 0, %s187
    %s204 = sphi 0, %s188
  $region4: #{_lambda_.14} parent=0 // loop_header_branch
    %14 = sbr.rel (%p12) target = $region8
  $region5: #{_lambda_.14} parent=0 // loop_body
    %s16 = ssub.s32 %s11, 1
    %s17 = ssub.s32 %s11, 2
    %s30 = sadd.s32 1, %s21
    %p31 = scmp.ge.s32.totalorder %s30, 1
    %s32 = scalar_select %p31, 0, %s30
    %s33 = sadd.s32 1, %s20
    %s34 = scalar_select %p31, %s33, %s20
    %p35 = scmp.ge.s32.totalorder %s34, 2
    %s36 = scalar_select %p35, 0, %s34
    %s37 = sadd.s32 1, %s19
    %s38 = scalar_select %p35, %s37, %s19
    %p39 = scmp.ge.s32.totalorder %s38, 1
    %s40 = scalar_select %p39, 0, %s38
    %s41 = sadd.s32 1, %s18
    %s42 = scalar_select %p39, %s41, %s18
    %p43 = scmp.ge.s32.totalorder %s42, 2
    %s44 = scalar_select %p43, 0, %s42
    %s45 = ssub.s32 %s18, %s44
    %s46 = ssub.s32 %s19, %s40
    %s47 = sor.u32 %s45, %s46
    %p48 = scmp.eq.s32.totalorder %s47, 0
    %s50 = sadd.s32 %s49, 1
    %s51 = scalar_select %p48, %s49, %s50
    %p54 = pneg %p48
    %p55 = scmp.eq.s32.totalorder %s11, 3
    %p56 = por %p54, %p55
    %p57 = scmp.ne.s32.totalorder %s49, %s52
    %p58 = scmp.eq.s32.totalorder %s11, 0
    %p59 = por %p57, %p58
    %p60 = scmp.ne.s32.totalorder %s49, %s52
    %p61 = scmp.eq.s32.totalorder %s16, 3
    %p62 = por %p60, %p61
    %p63 = scmp.ne.s32.totalorder %s52, %s53
    %p64 = scmp.eq.s32.totalorder %s16, 0
    %p65 = por %p63, %p64
    %p66 = scmp.ne.s32.totalorder %s52, %s53
    %p67 = scmp.eq.s32.totalorder %s17, 3
    %p68 = por %p66, %p67
    %p70 = scmp.ne.s32.totalorder %s53, %s69
    %p71 = scmp.eq.s32.totalorder %s17, 0
    %p72 = por %p70, %p71
    %s73 = ssub.s32 %s18, %s44
    %s74 = ssub.s32 %s19, %s40
    %s75 = sor.u32 %s73, %s74
    %p76 = scmp.eq.s32.totalorder %s75, 0
    %s78 = sadd.s32 %s77, 1
    %s79 = scalar_select %p76, %s77, %s78
    %p82 = pneg %p76
    %p83 = scmp.eq.s32.totalorder %s11, 3
    %p84 = por %p82, %p83
    %p85 = scmp.ne.s32.totalorder %s77, %s80
    %p86 = scmp.eq.s32.totalorder %s11, 0
    %p87 = por %p85, %p86
    %p88 = scmp.ne.s32.totalorder %s77, %s80
    %p89 = scmp.eq.s32.totalorder %s16, 3
    %p90 = por %p88, %p89
    %p91 = scmp.ne.s32.totalorder %s80, %s81
    %p92 = scmp.eq.s32.totalorder %s16, 0
    %p93 = por %p91, %p92
    %p94 = scmp.ne.s32.totalorder %s80, %s81
    %p95 = scmp.eq.s32.totalorder %s17, 3
    %p96 = por %p94, %p95
    %p98 = scmp.ne.s32.totalorder %s81, %s97
    %p99 = scmp.eq.s32.totalorder %s17, 0
    %p100 = por %p98, %p99
    %s102 = sadd.s32 %s101, 1
    %p105 = scmp.eq.s32.totalorder %s11, 3
    %p106 = scmp.ne.s32.totalorder %s101, %s103
    %p107 = scmp.eq.s32.totalorder %s11, 0
    %p108 = por %p106, %p107
    %p109 = scmp.ne.s32.totalorder %s101, %s103
    %p110 = scmp.eq.s32.totalorder %s16, 3
    %p111 = por %p109, %p110
    %p112 = scmp.ne.s32.totalorder %s103, %s104
    %p113 = scmp.eq.s32.totalorder %s16, 0
    %p114 = por %p112, %p113
    %p115 = scmp.ne.s32.totalorder %s103, %s104
    %p116 = scmp.eq.s32.totalorder %s17, 3
    %p117 = por %p115, %p116
    %p119 = scmp.ne.s32.totalorder %s104, %s118
    %p120 = scmp.eq.s32.totalorder %s17, 0
    %p121 = por %p119, %p120
    %s122 = ssub.s32 %s20, %s36
    %s123 = ssub.s32 %s21, %s32
    %s124 = sor.u32 %s122, %s123
    %p125 = scmp.eq.s32.totalorder %s124, 0
    %s127 = sadd.s32 %s126, 1
    %s128 = scalar_select %p125, %s126, %s127
    %p131 = pneg %p125
    %p132 = scmp.eq.s32.totalorder %s11, 3
    %p133 = por %p131, %p132
    %p134 = scmp.ne.s32.totalorder %s126, %s129
    %p135 = scmp.eq.s32.totalorder %s11, 0
    %p136 = por %p134, %p135
    %p137 = scmp.ne.s32.totalorder %s126, %s129
    %p138 = scmp.eq.s32.totalorder %s16, 3
    %p139 = por %p137, %p138
    %p140 = scmp.ne.s32.totalorder %s129, %s130
    %p141 = scmp.eq.s32.totalorder %s16, 0
    %p142 = por %p140, %p141
    %p143 = scmp.ne.s32.totalorder %s129, %s130
    %p144 = scmp.eq.s32.totalorder %s17, 3
    %p145 = por %p143, %p144
    %p147 = scmp.ne.s32.totalorder %s130, %s146
    %p148 = scmp.eq.s32.totalorder %s17, 0
    %p149 = por %p147, %p148
    %s150 = ssub.s32 %s20, %s36
    %s151 = ssub.s32 %s21, %s32
    %s152 = sor.u32 %s150, %s151
    %p153 = scmp.eq.s32.totalorder %s152, 0
    %s155 = sadd.s32 %s154, 1
    %s156 = scalar_select %p153, %s154, %s155
    %p159 = pneg %p153
    %p160 = scmp.eq.s32.totalorder %s11, 3
    %p161 = por %p159, %p160
    %p162 = scmp.ne.s32.totalorder %s154, %s157
    %p163 = scmp.eq.s32.totalorder %s11, 0
    %p164 = por %p162, %p163
    %p165 = scmp.ne.s32.totalorder %s154, %s157
    %p166 = scmp.eq.s32.totalorder %s16, 3
    %p167 = por %p165, %p166
    %p168 = scmp.ne.s32.totalorder %s157, %s158
    %p169 = scmp.eq.s32.totalorder %s16, 0
    %p170 = por %p168, %p169
    %p171 = scmp.ne.s32.totalorder %s157, %s158
    %p172 = scmp.eq.s32.totalorder %s17, 3
    %p173 = por %p171, %p172
    %p175 = scmp.ne.s32.totalorder %s158, %s174
    %p176 = scmp.eq.s32.totalorder %s17, 0
    %p177 = por %p175, %p176
    %s178 = ssub.s32 %s18, %s44
    %s179 = ssub.s32 %s20, %s36
    %s180 = sor.u32 %s178, %s179
    %s181 = ssub.s32 %s19, %s40
    %s182 = sor.u32 %s180, %s181
    %p183 = scmp.eq.s32.totalorder %s182, 0
    %s185 = sadd.s32 %s184, 1
    %s186 = scalar_select %p183, %s184, %s185
    %p189 = pneg %p183
    %p190 = scmp.eq.s32.totalorder %s11, 3
    %p191 = por %p189, %p190
    %p192 = scmp.ne.s32.totalorder %s184, %s187
    %p193 = scmp.eq.s32.totalorder %s11, 0
    %p194 = por %p192, %p193
    %p195 = scmp.ne.s32.totalorder %s184, %s187
    %p196 = scmp.eq.s32.totalorder %s16, 3
    %p197 = por %p195, %p196
    %p198 = scmp.ne.s32.totalorder %s187, %s188
    %p199 = scmp.eq.s32.totalorder %s16, 0
    %p200 = por %p198, %p199
    %p201 = scmp.ne.s32.totalorder %s187, %s188
    %p202 = scmp.eq.s32.totalorder %s17, 3
    %p203 = por %p201, %p202
    %p205 = scmp.ne.s32.totalorder %s188, %s204
    %p206 = scmp.eq.s32.totalorder %s17, 0
    %p207 = por %p205, %p206
    %p208 = scmp.le.s32.totalorder 1, %s11
    %p209 = scmp.lt.s32.totalorder %s11, 5
    %p210 = pnand %p208, %p209
    %p211 = pneg %p210
    // Predicated region
    $region9: #{_lambda_.14} parent=5 // pred_check
      _
    $region10: #{_lambda_.14} parent=5 // pred_check_branch
      %213 = sbr.rel (%p210) target = $region12
    $region11: #{_lambda_.14} parent=5 // pred_region
      %s214 = ssub.s32 %s11, 1
      // Predicated region
      $region13: #{_lambda_.14} parent=11 // pred_check
        %p215 = pneg %p114
      $region14: #{_lambda_.14} parent=11 // pred_check_branch
        %217 = sbr.rel (%p215) target = $region16
      $region15: #{_lambda_.14} parent=11 // pred_region
        _
      $region16: #{_lambda_.14} parent=11 // pred_fallthru
        _
    $region12: #{_lambda_.14} parent=5 // pred_fallthru
      _
    %p218 = scmp.lt.s32.totalorder %s11, 4
    // Predicated region
    $region17: #{_lambda_.14} parent=5 // pred_check
      %p219 = pneg %p218
    $region18: #{_lambda_.14} parent=5 // pred_check_branch
      %221 = sbr.rel (%p219) target = $region20
    $region19: #{_lambda_.14} parent=5 // pred_region
      // Predicated region
      $region21: #{_lambda_.14} parent=19 // pred_check
        %p222 = pneg %p59
      $region22: #{_lambda_.14} parent=19 // pred_check_branch
        %224 = sbr.rel (%p222) target = $region24
      $region23: #{_lambda_.14} parent=19 // pred_region
        %p225 = scmp.lt.s32.totalorder %s18, 1
        %s226 = scalar_select %p225, %s18, 1
        %p227 = scmp.lt.s32.totalorder %s19, 0
        %s228 = scalar_select %p227, %s19, 0
        %s229 = sadd.s32 %s228, %s226
        %s230 = smul.addr %s229, 4
        %s231 = scalar_lea.vmem %s0, %s230
      $region24: #{_lambda_.14} parent=19 // pred_fallthru
        _
      // Predicated region
      $region25: #{_lambda_.14} parent=19 // pred_check
        %p232 = pneg %p87
      $region26: #{_lambda_.14} parent=19 // pred_check_branch
        %234 = sbr.rel (%p232) target = $region28
      $region27: #{_lambda_.14} parent=19 // pred_region
        %p235 = scmp.lt.s32.totalorder %s18, 1
        %s236 = scalar_select %p235, %s18, 1
        %p237 = scmp.lt.s32.totalorder %s19, 0
        %s238 = scalar_select %p237, %s19, 0
        %s239 = sadd.s32 %s238, %s236
        %s240 = smul.addr %s239, 4
        %s241 = scalar_lea.vmem %s1, %s240
      $region28: #{_lambda_.14} parent=19 // pred_fallthru
        _
      // Predicated region
      $region29: #{_lambda_.14} parent=19 // pred_check
        %p242 = pneg %p136
      $region30: #{_lambda_.14} parent=19 // pred_check_branch
        %244 = sbr.rel (%p242) target = $region32
      $region31: #{_lambda_.14} parent=19 // pred_region
        %p245 = scmp.lt.s32.totalorder %s20, 1
        %s246 = scalar_select %p245, %s20, 1
        %p247 = scmp.lt.s32.totalorder %s21, 0
        %s248 = scalar_select %p247, %s21, 0
        %s249 = smul.addr %s246, 2
        %s250 = sadd.s32 %s248, %s249
        %s251 = smul.addr %s250, 4
        %s252 = scalar_lea.vmem %s3, %s251
      $region32: #{_lambda_.14} parent=19 // pred_fallthru
        _
      // Predicated region
      $region33: #{_lambda_.14} parent=19 // pred_check
        %p253 = pneg %p164
      $region34: #{_lambda_.14} parent=19 // pred_check_branch
        %255 = sbr.rel (%p253) target = $region36
      $region35: #{_lambda_.14} parent=19 // pred_region
        %p256 = scmp.lt.s32.totalorder %s20, 1
        %s257 = scalar_select %p256, %s20, 1
        %p258 = scmp.lt.s32.totalorder %s21, 0
        %s259 = scalar_select %p258, %s21, 0
        %s260 = sadd.s32 %s259, %s257
        %s261 = scalar_lea.vmem %s4, %s260
      $region36: #{_lambda_.14} parent=19 // pred_fallthru
        _
    $region20: #{_lambda_.14} parent=5 // pred_fallthru
      _
    %p262 = scmp.le.s32.totalorder 1, %s11
    %p263 = scmp.lt.s32.totalorder %s11, 5
    %p264 = pnand %p262, %p263
    %p265 = pneg %p264
    // Predicated region
    $region37: #{_lambda_.14} parent=5 // pred_check
      _
    $region38: #{_lambda_.14} parent=5 // pred_check_branch
      %267 = sbr.rel (%p264) target = $region40
    $region39: #{_lambda_.14} parent=5 // pred_region
      %s268 = ssub.s32 %s11, 1
      %p269 = scmp.lt.s32.totalorder %s22, 1
      %s270 = scalar_select %p269, %s22, 1
      %p271 = scmp.lt.s32.totalorder %s23, 0
      %s272 = scalar_select %p271, %s23, 0
      %s273 = sadd.s32 %s272, %s270
      %s274 = smul.addr %s273, 4
      %s275 = scalar_lea.vmem %s0, %s274
      %p276 = pneg %p65
      %p277 = pneg %p62
      %p278 = scmp.lt.s32.totalorder %s22, 1
      %s279 = scalar_select %p278, %s22, 1
      %p280 = scmp.lt.s32.totalorder %s23, 0
      %s281 = scalar_select %p280, %s23, 0
      %s282 = sadd.s32 %s281, %s279
      %s283 = smul.addr %s282, 4
      %s284 = scalar_lea.vmem %s1, %s283
      %p285 = pneg %p93
      %p286 = pneg %p90
      %p287 = pneg %p114
      %p288 = pneg %p111
      %p289 = scmp.lt.s32.totalorder %s24, 1
      %s290 = scalar_select %p289, %s24, 1
      %p291 = scmp.lt.s32.totalorder %s25, 0
      %s292 = scalar_select %p291, %s25, 0
      %s293 = smul.addr %s290, 2
      %s294 = sadd.s32 %s292, %s293
      %s295 = smul.addr %s294, 4
      %s296 = scalar_lea.vmem %s3, %s295
      %p297 = pneg %p142
      %p298 = pneg %p139
      %p299 = scmp.lt.s32.totalorder %s24, 1
      %s300 = scalar_select %p299, %s24, 1
      %p301 = scmp.lt.s32.totalorder %s25, 0
      %s302 = scalar_select %p301, %s25, 0
      %s303 = sadd.s32 %s302, %s300
      %s304 = scalar_lea.vmem %s4, %s303
      %p305 = pneg %p170
      %p306 = pneg %p167
      %p307 = pneg %p200
      %p308 = pneg %p197
      %p309 = scmp.lt.s32.totalorder %s22, 1
      %s310 = scalar_select %p309, %s22, 1
      %p311 = scmp.lt.s32.totalorder %s24, 1
      %s312 = scalar_select %p311, %s24, 1
      %p313 = scmp.lt.s32.totalorder %s23, 0
      %s314 = scalar_select %p313, %s23, 0
      %s315 = sadd.s32 %s314, %s312
      %s316 = smul.addr %s310, 2
      %s317 = sadd.s32 %s315, %s316
      %s318 = smul.addr %s317, 8
      %s319 = scalar_lea.vmem %s5, %s318
      %p320 = scmp.lt.s32.totalorder %s22, 1
      %s321 = scalar_select %p320, %s22, 1
      %p322 = scmp.lt.s32.totalorder %s23, 0
      %s323 = scalar_select %p322, %s23, 0
      %s324 = sadd.s32 %s323, %s321
      %s325 = smul.addr %s324, 4
      %s326 = scalar_lea.vmem %s0, %s325
      %p327 = scmp.lt.s32.totalorder %s22, 1
      %s328 = scalar_select %p327, %s22, 1
      %p329 = scmp.lt.s32.totalorder %s23, 0
      %s330 = scalar_select %p329, %s23, 0
      %s331 = sadd.s32 %s330, %s328
      %s332 = smul.addr %s331, 4
      %s333 = scalar_lea.vmem %s1, %s332
      %p334 = scmp.lt.s32.totalorder %s24, 1
      %s335 = scalar_select %p334, %s24, 1
      %p336 = scmp.lt.s32.totalorder %s25, 0
      %s337 = scalar_select %p336, %s25, 0
      %s338 = smul.addr %s335, 2
      %s339 = sadd.s32 %s337, %s338
      %s340 = smul.addr %s339, 4
      %s341 = scalar_lea.vmem %s3, %s340
      %p342 = scmp.lt.s32.totalorder %s24, 1
      %s343 = scalar_select %p342, %s24, 1
      %p344 = scmp.lt.s32.totalorder %s25, 0
      %s345 = scalar_select %p344, %s25, 0
      %s346 = sadd.s32 %s345, %s343
      %s347 = scalar_lea.vmem %s4, %s346
      %p348 = scmp.lt.s32.totalorder %s22, 1
      %s349 = scalar_select %p348, %s22, 1
      %p350 = scmp.lt.s32.totalorder %s24, 1
      %s351 = scalar_select %p350, %s24, 1
      %p352 = scmp.lt.s32.totalorder %s23, 0
      %s353 = scalar_select %p352, %s23, 0
      %s354 = sadd.s32 %s353, %s351
      %s355 = smul.addr %s349, 2
      %s356 = sadd.s32 %s354, %s355
      %s357 = smul.addr %s356, 8
      %s358 = scalar_lea.vmem %s5, %s357
      %p360 = scmp.eq.s32.totalorder %s25, 0
      // Predicated region
      $region41: #{_lambda_.14} parent=39 // pred_check
        %p361 = pneg %p360
      $region42: #{_lambda_.14} parent=39 // pred_check_branch
        %363 = sbr.rel (%p361) target = $region44
      $region43: #{_lambda_.14} parent=39 // pred_region
        %v364 = vld [vmem:[%s326] sm:$0xf]
        %v365 = vunpack.c.l.bf16 %v364
        %v366 = vld [vmem:[%s333] sm:$0xf]
        %v367 = vunpack.c.l.bf16 %v366
        %v368 = vmul.f32 %v365, %v367
        %v369 = vmul.f32 %v368, 1.1111112
        %v370 = vpack.c.bf16 %v369, %v369
        %v371 = vld [vmem:[%s2] sm:$0xf]
        %v372 = vld [vmem:[%s2 + $0x4] sm:$0xf]
        %v373 = vld [vmem:[%s2 + $0x8] sm:$0xf]
        %v374 = vld [vmem:[%s2 + $0xc] sm:$0xf]
        %v379 = vunpack.c.l.b16 %v371
        %v380 = vunpack.c.l.b16 %v372
        %v381 = vunpack.c.l.b16 %v373
        %v382 = vunpack.c.l.b16 %v374
        %v383 = vpack.c.b16 %v380, %v379
        %v384 = vpack.c.b16 %v382, %v381
        %vm387 = vcmask 261120
        %v389 = vsel %vm387, %v370, 0
        %391 = vmatprep.subr.bf16.mxu0 0
        %392 = vmatpush1.bf16.msra.mxu0 %v383
        %393 = vmatprep.subr.bf16.mxu0 0
        %394 = vmatpush1.bf16.msra.mxu0 %v384
        %395 = vmatprep.subr.bf16.mxu0 0
        %396 = vmatpush1.bf16.msra.mxu0 0
        %397 = vmatprep.subr.bf16.mxu0 0
        %398 = vmatpush1.bf16.msra.mxu0 0
        %399 = vmatprep.subr.bf16.mxu0 0
        %400 = vmatpush1.bf16.msra.mxu0 0
        %401 = vmatprep.subr.bf16.mxu0 0
        %402 = vmatpush1.bf16.msra.mxu0 0
        %403 = vmatprep.subr.bf16.mxu0 0
        %404 = vmatpush1.bf16.msra.mxu0 0
        %405 = vmatprep.subr.bf16.mxu0 0
        %406 = vmatpush1.bf16.msra.mxu0 0
        %407 = vmatprep.subr.bf16.mxu0 0
        %408 = vmatpush1.bf16.msra.mxu0 0
        %409 = vmatprep.subr.bf16.mxu0 0
        %410 = vmatpush1.bf16.msra.mxu0 0
        %411 = vmatprep.subr.bf16.mxu0 0
        %412 = vmatpush1.bf16.msra.mxu0 0
        %413 = vmatprep.subr.bf16.mxu0 0
        %414 = vmatpush1.bf16.msra.mxu0 0
        %415 = vmatprep.subr.bf16.mxu0 0
        %416 = vmatpush1.bf16.msra.mxu0 0
        %417 = vmatprep.subr.bf16.mxu0 0
        %418 = vmatpush1.bf16.msra.mxu0 0
        %419 = vmatprep.subr.bf16.mxu0 0
        %420 = vmatpush1.bf16.msra.mxu0 0
        %421 = vmatprep.subr.bf16.mxu0 0
        %422 = vmatpush1.bf16.msra.mxu0 0
        %423 = vmatprep.mubr.bf16.mxu0 0
        %424 = vmatmul.mubr.bf16.gmra.mrb[0].mxu0 %v389
        %v425 = vpop.f32.mrb[0].mxu0
        %v426 = vadd.f32 0.0, %v425
        %v427 = vpop.f32.mrb[0].mxu0
        %v428 = vpop.f32.mrb[0].mxu0
        %v429 = vpop.f32.mrb[0].mxu0
        %430 = vdwg.mxu0
        %v431 = vpack.c.bf16 %v426, %v426
        %vm432 = vcmask 125952
        %433 = vst.msk [vmem:[#allocation2] sm:$0xf] %vm432, %v431
        %vm434 = vcmask 7168
        %435 = vst.msk [vmem:[#allocation3] sm:$0xff] %vm434, inf
        %436 = vst.msk [vmem:[#allocation4] sm:$0xff] %vm434, 0
      $region44: #{_lambda_.14} parent=39 // pred_fallthru
        _
      %v437 = vld [vmem:[#allocation2] sm:$0xf]
      %v438 = vld [vmem:[%s341] sm:$0xf]
      %v439 = vld [vmem:[%s341 + $0x4] sm:$0xf]
      %v442 = vunpack.c.l.b16 %v438
      %v443 = vunpack.c.l.b16 %v439
      %v444 = vpack.c.b16 %v443, %v442
      %vm446 = vcmask 130048
      %v448 = vsel %vm446, %v437, 0
      %450 = vmatprep.subr.bf16.mxu0 0
      %451 = vmatpush1.bf16.msra.mxu0 %v444
      %452 = vmatprep.subr.bf16.mxu0 0
      %453 = vmatpush1.bf16.msra.mxu0 0
      %454 = vmatprep.subr.bf16.mxu0 0
      %455 = vmatpush1.bf16.msra.mxu0 0
      %456 = vmatprep.subr.bf16.mxu0 0
      %457 = vmatpush1.bf16.msra.mxu0 0
      %458 = vmatprep.subr.bf16.mxu0 0
      %459 = vmatpush1.bf16.msra.mxu0 0
      %460 = vmatprep.subr.bf16.mxu0 0
      %461 = vmatpush1.bf16.msra.mxu0 0
      %462 = vmatprep.subr.bf16.mxu0 0
      %463 = vmatpush1.bf16.msra.mxu0 0
      %464 = vmatprep.subr.bf16.mxu0 0
      %465 = vmatpush1.bf16.msra.mxu0 0
      %466 = vmatprep.subr.bf16.mxu0 0
      %467 = vmatpush1.bf16.msra.mxu0 0
      %468 = vmatprep.subr.bf16.mxu0 0
      %469 = vmatpush1.bf16.msra.mxu0 0
      %470 = vmatprep.subr.bf16.mxu0 0
      %471 = vmatpush1.bf16.msra.mxu0 0
      %472 = vmatprep.subr.bf16.mxu0 0
      %473 = vmatpush1.bf16.msra.mxu0 0
      %474 = vmatprep.subr.bf16.mxu0 0
      %475 = vmatpush1.bf16.msra.mxu0 0
      %476 = vmatprep.subr.bf16.mxu0 0
      %477 = vmatpush1.bf16.msra.mxu0 0
      %478 = vmatprep.subr.bf16.mxu0 0
      %479 = vmatpush1.bf16.msra.mxu0 0
      %480 = vmatprep.subr.bf16.mxu0 0
      %481 = vmatpush1.bf16.msra.mxu0 0
      %482 = vmatprep.mubr.bf16.mxu0 0
      %483 = vmatmul.mubr.bf16.gmra.mrb[0].mxu0 %v448
      %v484 = vpop.f32.mrb[0].mxu0
      %v485 = vadd.f32 0.0, %v484
      %v486 = vpop.f32.mrb[0].mxu0
      %v487 = vpop.f32.mrb[0].mxu0
      %v488 = vpop.f32.mrb[0].mxu0
      %489 = vdwg.mxu0
      %v490 = vld [vmem:[%s347] sm:$0x1]
      %v491 = vmul.f32 %v485, 2.0
      %v493 = vlaneseq
      %v494 = vshrl.u32 %v493, 7
      %v495 = vsub.s32 0, %v494
      %v496 = vrot.slane %v490, %v495
      %v498 = vsub.f32 %v496, %v491
      %v499 = vlaneseq
      %v500 = vand.u32 %v499, 127
      %501 = vmin.xlane.f32.xlu0 %v498
      %v502 = vpop.xlane.xlu0 %501
      %vm503 = vcmp.eq.f32.partialorder %v498, %v502
      %v504 = vsel %vm503, %v500, 128
      %v505 = vand.u32 %v504, 65535
      %v506 = vshra.s32 %v504, 16
      %v507 = vcvt.s32.f32 %v505
      %v508 = vcvt.s32.f32 %v506
      %509 = vmin.xlane.f32.xlu0 %v508
      %v510 = vpop.xlane.xlu0 %509
      %vm511 = vcmp.eq.f32.partialorder %v508, %v510
      %v512 = vsel %vm511, %v507, inf
      %513 = vmin.xlane.f32.xlu0 %v512
      %v514 = vpop.xlane.xlu0 %513
      %v515 = vcvt.f32.s32 %v514
      %v516 = vcvt.f32.s32 %v510
      %v517 = vshll.u32 %v516, 16
      %v518 = vadd.s32 %v517, %v515
      %s519 = smul.u32 %s25, 128
      %v520 = vstv %s519
      %v521 = vadd.s32 %v518, %v520
      %v522 = vld [vmem:[#allocation3] sm:$0xff]
      %vm523 = vcmp.lt.f32.partialorder %v502, %v522
      %v524 = vld [vmem:[#allocation4] sm:$0xff]
      %v525 = vsel %vm523, %v521, %v524
      %vm526 = vcmask 7168
      %527 = vst.msk [vmem:[#allocation4] sm:$0xff] %vm526, %v525
      %v528 = vld [vmem:[#allocation3] sm:$0xff]
      %v529 = vsel %vm523, %v502, %v528
      %530 = vst.msk [vmem:[#allocation3] sm:$0xff] %vm526, %v529
      // Predicated region
      $region45: #{_lambda_.14} parent=39 // pred_check
        %p531 = pneg %p360
      $region46: #{_lambda_.14} parent=39 // pred_check_branch
        %533 = sbr.rel (%p531) target = $region48
      $region47: #{_lambda_.14} parent=39 // pred_region
        %v534 = vld [vmem:[#allocation4] sm:$0xff]
        %535 = vst.msk [vmem:[%s358] sm:$0xff] %vm526, %v534
      $region48: #{_lambda_.14} parent=39 // pred_fallthru
        _
      %p536 = scmp.lt.s32.totalorder %s22, 1
      %s537 = scalar_select %p536, %s22, 1
      %p538 = scmp.lt.s32.totalorder %s24, 1
      %s539 = scalar_select %p538, %s24, 1
      %p540 = scmp.lt.s32.totalorder %s23, 0
      %s541 = scalar_select %p540, %s23, 0
      %s542 = sadd.s32 %s541, %s539
      %s543 = smul.addr %s537, 2
      %s544 = sadd.s32 %s542, %s543
      %s545 = smul.addr %s544, 8
      %s546 = scalar_lea.vmem %s5, %s545
      // Predicated region
      $region49: #{_lambda_.14} parent=39 // pred_check
        %p547 = pneg %p197
      $region50: #{_lambda_.14} parent=39 // pred_check_branch
        %549 = sbr.rel (%p547) target = $region52
      $region51: #{_lambda_.14} parent=39 // pred_region
        _
      $region52: #{_lambda_.14} parent=39 // pred_fallthru
        _
    $region40: #{_lambda_.14} parent=5 // pred_fallthru
      _
    %p550 = scmp.le.s32.totalorder 2, %s11
    // Predicated region
    $region53: #{_lambda_.14} parent=5 // pred_check
      %p551 = pneg %p550
    $region54: #{_lambda_.14} parent=5 // pred_check_branch
      %553 = sbr.rel (%p551) target = $region56
    $region55: #{_lambda_.14} parent=5 // pred_region
      %s554 = ssub.s32 %s11, 2
      // Predicated region
      $region57: #{_lambda_.14} parent=55 // pred_check
        %p555 = pneg %p203
      $region58: #{_lambda_.14} parent=55 // pred_check_branch
        %557 = sbr.rel (%p555) target = $region60
      $region59: #{_lambda_.14} parent=55 // pred_region
        %p558 = scmp.lt.s32.totalorder %s26, 1
        %s559 = scalar_select %p558, %s26, 1
        %p560 = scmp.lt.s32.totalorder %s28, 1
        %s561 = scalar_select %p560, %s28, 1
        %p562 = scmp.lt.s32.totalorder %s27, 0
        %s563 = scalar_select %p562, %s27, 0
        %s564 = sadd.s32 %s563, %s561
        %s565 = smul.addr %s559, 2
        %s566 = sadd.s32 %s564, %s565
        %s567 = smul.addr %s566, 8
        %s568 = scalar_lea.vmem %s5, %s567
      $region60: #{_lambda_.14} parent=55 // pred_fallthru
        _
    $region56: #{_lambda_.14} parent=5 // pred_fallthru
      _
  $region6: #{_lambda_.14} parent=0 // loop_footer
    %s15 = sadd.s32 1, %s11
  $region7: #{_lambda_.14} parent=0 // loop_footer_branch
    %10 = sbr.rel target = $region3
  $region8: #{_lambda_.14} parent=0 // loop_exit
    _

// kernel: _lambda_.15
$region0: #{_lambda_.15}
  #allocation0 [shape = 'u32[]', space=smem, size = 0x4, offset = 0x4, fixed_abs, tag = 'smem constant byte address 0x4 - core index']
  #allocation1 [shape = 'u32[144,128]{1,0:T(1,128)}', space=vmem, size = 0x12000, scoped, tag = 'internal scratch']
  #allocation2 [shape = 'bf16[8,32]{1,0:T(8,128)(2,1)}', space=vmem, size = 0x800, scoped, tag = 'scratch operand']
  #allocation3 [shape = 'f32[8,1]{1,0:T(8,128)}', space=vmem, size = 0x1000, scoped, tag = 'scratch operand']
  #allocation4 [shape = 'f32[8,1]{1,0:T(8,128)}', space=vmem, size = 0x1000, scoped, tag = 'scratch operand']
  #allocation5 [shape = 'f32[8,1]{1,0:T(8,128)}', space=vmem, size = 0x1000, scoped, tag = 'scratch operand']
  #allocation6 [shape = 's32[8,1]{1,0:T(8,128)}', space=vmem, size = 0x1000, scoped, tag = 'scratch operand']
  %s0 = inlined_call_operand.vmem [shape: f32[2,8,32], index: 0, kind: input, shape index: {}]
  %s1 = inlined_call_operand.vmem [shape: f32[1,32], index: 1, kind: input, shape index: {}]
  %s2 = inlined_call_operand.vmem [shape: f32[1,32], index: 2, kind: input, shape index: {}]
  %s3 = inlined_call_operand.vmem [shape: bf16[2,32,128], index: 3, kind: input, shape index: {}]
  %s4 = inlined_call_operand.vmem [shape: s32[2,2,8,1], index: 4, kind: input, shape index: {}]
  %s5 = inlined_call_operand.vmem [shape: f32[2,2,8,1], index: 5, kind: output, shape index: {0}]
  %s6 = inlined_call_operand.vmem [shape: f32[2,2,8,1], index: 6, kind: output, shape index: {1}]
  %7 = xla_tuple %s5, %s6
  %s8 = sld [smem:[#allocation0]]
  $region69: #{_lambda_.15} parent=0
    _
  %s10 = ssub.s32 1, %s8
  %s11 = scalar_select 0, %s10, %s8
  loop: start=0, step=1, limit=6
  $region2: #{_lambda_.15} parent=0 // loop_pre_header
    _
  $region3: #{_lambda_.15} parent=0 // loop_header
    %s13 = sphi 0, %s17
    %p14 = scmp.ge.s32.totalorder %s13, 6
    %s20 = sphi 0, %s46
    %s21 = sphi 0, %s42
    %s22 = sphi 0, %s38
    %s23 = sphi 0, %s34
    %s24 = sphi 0, %s20
    %s25 = sphi 0, %s21
    %s26 = sphi 0, %s22
    %s27 = sphi 0, %s23
    %s28 = sphi 0, %s24
    %s29 = sphi 0, %s25
    %s30 = sphi 0, %s26
    %s31 = sphi 0, %s27
    %s51 = sphi 0, %s53
    %s54 = sphi 0, %s51
    %s55 = sphi 0, %s54
    %s71 = sphi 0, %s55
    %s75 = sphi 0, %s75
    %s77 = sphi 0, %s75
    %s78 = sphi 0, %s77
    %s92 = sphi 0, %s78
    %s96 = sphi 0, %s96
    %s98 = sphi 0, %s96
    %s99 = sphi 0, %s98
    %s113 = sphi 0, %s99
    %s121 = sphi 0, %s123
    %s124 = sphi 0, %s121
    %s125 = sphi 0, %s124
    %s141 = sphi 0, %s125
    %s151 = sphi 0, %s153
    %s154 = sphi 0, %s151
    %s155 = sphi 0, %s154
    %s171 = sphi 0, %s155
    %s181 = sphi 0, %s183
    %s184 = sphi 0, %s181
    %s185 = sphi 0, %s184
    %s201 = sphi 0, %s185
    %s211 = sphi 0, %s213
    %s214 = sphi 0, %s211
    %s215 = sphi 0, %s214
    %s231 = sphi 0, %s215
  $region4: #{_lambda_.15} parent=0 // loop_header_branch
    %16 = sbr.rel (%p14) target = $region8
  $region5: #{_lambda_.15} parent=0 // loop_body
    %s18 = ssub.s32 %s13, 1
    %s19 = ssub.s32 %s13, 2
    %s32 = sadd.s32 1, %s23
    %p33 = scmp.ge.s32.totalorder %s32, 1
    %s34 = scalar_select %p33, 0, %s32
    %s35 = sadd.s32 1, %s22
    %s36 = scalar_select %p33, %s35, %s22
    %p37 = scmp.ge.s32.totalorder %s36, 2
    %s38 = scalar_select %p37, 0, %s36
    %s39 = sadd.s32 1, %s21
    %s40 = scalar_select %p37, %s39, %s21
    %p41 = scmp.ge.s32.totalorder %s40, 1
    %s42 = scalar_select %p41, 0, %s40
    %s43 = sadd.s32 1, %s20
    %s44 = scalar_select %p41, %s43, %s20
    %p45 = scmp.ge.s32.totalorder %s44, 2
    %s46 = scalar_select %p45, 0, %s44
    %s47 = ssub.s32 %s20, %s46
    %s48 = ssub.s32 %s21, %s42
    %s49 = sor.u32 %s47, %s48
    %p50 = scmp.eq.s32.totalorder %s49, 0
    %s52 = sadd.s32 %s51, 1
    %s53 = scalar_select %p50, %s51, %s52
    %p56 = pneg %p50
    %p57 = scmp.eq.s32.totalorder %s13, 3
    %p58 = por %p56, %p57
    %p59 = scmp.ne.s32.totalorder %s51, %s54
    %p60 = scmp.eq.s32.totalorder %s13, 0
    %p61 = por %p59, %p60
    %p62 = scmp.ne.s32.totalorder %s51, %s54
    %p63 = scmp.eq.s32.totalorder %s18, 3
    %p64 = por %p62, %p63
    %p65 = scmp.ne.s32.totalorder %s54, %s55
    %p66 = scmp.eq.s32.totalorder %s18, 0
    %p67 = por %p65, %p66
    %p68 = scmp.ne.s32.totalorder %s54, %s55
    %p69 = scmp.eq.s32.totalorder %s19, 3
    %p70 = por %p68, %p69
    %p72 = scmp.ne.s32.totalorder %s55, %s71
    %p73 = scmp.eq.s32.totalorder %s19, 0
    %p74 = por %p72, %p73
    %s76 = sadd.s32 %s75, 1
    %p79 = scmp.eq.s32.totalorder %s13, 3
    %p80 = scmp.ne.s32.totalorder %s75, %s77
    %p81 = scmp.eq.s32.totalorder %s13, 0
    %p82 = por %p80, %p81
    %p83 = scmp.ne.s32.totalorder %s75, %s77
    %p84 = scmp.eq.s32.totalorder %s18, 3
    %p85 = por %p83, %p84
    %p86 = scmp.ne.s32.totalorder %s77, %s78
    %p87 = scmp.eq.s32.totalorder %s18, 0
    %p88 = por %p86, %p87
    %p89 = scmp.ne.s32.totalorder %s77, %s78
    %p90 = scmp.eq.s32.totalorder %s19, 3
    %p91 = por %p89, %p90
    %p93 = scmp.ne.s32.totalorder %s78, %s92
    %p94 = scmp.eq.s32.totalorder %s19, 0
    %p95 = por %p93, %p94
    %s97 = sadd.s32 %s96, 1
    %p100 = scmp.eq.s32.totalorder %s13, 3
    %p101 = scmp.ne.s32.totalorder %s96, %s98
    %p102 = scmp.eq.s32.totalorder %s13, 0
    %p103 = por %p101, %p102
    %p104 = scmp.ne.s32.totalorder %s96, %s98
    %p105 = scmp.eq.s32.totalorder %s18, 3
    %p106 = por %p104, %p105
    %p107 = scmp.ne.s32.totalorder %s98, %s99
    %p108 = scmp.eq.s32.totalorder %s18, 0
    %p109 = por %p107, %p108
    %p110 = scmp.ne.s32.totalorder %s98, %s99
    %p111 = scmp.eq.s32.totalorder %s19, 3
    %p112 = por %p110, %p111
    %p114 = scmp.ne.s32.totalorder %s99, %s113
    %p115 = scmp.eq.s32.totalorder %s19, 0
    %p116 = por %p114, %p115
    %s117 = ssub.s32 %s22, %s38
    %s118 = ssub.s32 %s23, %s34
    %s119 = sor.u32 %s117, %s118
    %p120 = scmp.eq.s32.totalorder %s119, 0
    %s122 = sadd.s32 %s121, 1
    %s123 = scalar_select %p120, %s121, %s122
    %p126 = pneg %p120
    %p127 = scmp.eq.s32.totalorder %s13, 3
    %p128 = por %p126, %p127
    %p129 = scmp.ne.s32.totalorder %s121, %s124
    %p130 = scmp.eq.s32.totalorder %s13, 0
    %p131 = por %p129, %p130
    %p132 = scmp.ne.s32.totalorder %s121, %s124
    %p133 = scmp.eq.s32.totalorder %s18, 3
    %p134 = por %p132, %p133
    %p135 = scmp.ne.s32.totalorder %s124, %s125
    %p136 = scmp.eq.s32.totalorder %s18, 0
    %p137 = por %p135, %p136
    %p138 = scmp.ne.s32.totalorder %s124, %s125
    %p139 = scmp.eq.s32.totalorder %s19, 3
    %p140 = por %p138, %p139
    %p142 = scmp.ne.s32.totalorder %s125, %s141
    %p143 = scmp.eq.s32.totalorder %s19, 0
    %p144 = por %p142, %p143
    %s145 = ssub.s32 %s20, %s46
    %s146 = ssub.s32 %s22, %s38
    %s147 = sor.u32 %s145, %s146
    %s148 = ssub.s32 %s21, %s42
    %s149 = sor.u32 %s147, %s148
    %p150 = scmp.eq.s32.totalorder %s149, 0
    %s152 = sadd.s32 %s151, 1
    %s153 = scalar_select %p150, %s151, %s152
    %p156 = pneg %p150
    %p157 = scmp.eq.s32.totalorder %s13, 3
    %p158 = por %p156, %p157
    %p159 = scmp.ne.s32.totalorder %s151, %s154
    %p160 = scmp.eq.s32.totalorder %s13, 0
    %p161 = por %p159, %p160
    %p162 = scmp.ne.s32.totalorder %s151, %s154
    %p163 = scmp.eq.s32.totalorder %s18, 3
    %p164 = por %p162, %p163
    %p165 = scmp.ne.s32.totalorder %s154, %s155
    %p166 = scmp.eq.s32.totalorder %s18, 0
    %p167 = por %p165, %p166
    %p168 = scmp.ne.s32.totalorder %s154, %s155
    %p169 = scmp.eq.s32.totalorder %s19, 3
    %p170 = por %p168, %p169
    %p172 = scmp.ne.s32.totalorder %s155, %s171
    %p173 = scmp.eq.s32.totalorder %s19, 0
    %p174 = por %p172, %p173
    %s175 = ssub.s32 %s20, %s46
    %s176 = ssub.s32 %s22, %s38
    %s177 = sor.u32 %s175, %s176
    %s178 = ssub.s32 %s21, %s42
    %s179 = sor.u32 %s177, %s178
    %p180 = scmp.eq.s32.totalorder %s179, 0
    %s182 = sadd.s32 %s181, 1
    %s183 = scalar_select %p180, %s181, %s182
    %p186 = pneg %p180
    %p187 = scmp.eq.s32.totalorder %s13, 3
    %p188 = por %p186, %p187
    %p189 = scmp.ne.s32.totalorder %s181, %s184
    %p190 = scmp.eq.s32.totalorder %s13, 0
    %p191 = por %p189, %p190
    %p192 = scmp.ne.s32.totalorder %s181, %s184
    %p193 = scmp.eq.s32.totalorder %s18, 3
    %p194 = por %p192, %p193
    %p195 = scmp.ne.s32.totalorder %s184, %s185
    %p196 = scmp.eq.s32.totalorder %s18, 0
    %p197 = por %p195, %p196
    %p198 = scmp.ne.s32.totalorder %s184, %s185
    %p199 = scmp.eq.s32.totalorder %s19, 3
    %p200 = por %p198, %p199
    %p202 = scmp.ne.s32.totalorder %s185, %s201
    %p203 = scmp.eq.s32.totalorder %s19, 0
    %p204 = por %p202, %p203
    %s205 = ssub.s32 %s20, %s46
    %s206 = ssub.s32 %s22, %s38
    %s207 = sor.u32 %s205, %s206
    %s208 = ssub.s32 %s21, %s42
    %s209 = sor.u32 %s207, %s208
    %p210 = scmp.eq.s32.totalorder %s209, 0
    %s212 = sadd.s32 %s211, 1
    %s213 = scalar_select %p210, %s211, %s212
    %p216 = pneg %p210
    %p217 = scmp.eq.s32.totalorder %s13, 3
    %p218 = por %p216, %p217
    %p219 = scmp.ne.s32.totalorder %s211, %s214
    %p220 = scmp.eq.s32.totalorder %s13, 0
    %p221 = por %p219, %p220
    %p222 = scmp.ne.s32.totalorder %s211, %s214
    %p223 = scmp.eq.s32.totalorder %s18, 3
    %p224 = por %p222, %p223
    %p225 = scmp.ne.s32.totalorder %s214, %s215
    %p226 = scmp.eq.s32.totalorder %s18, 0
    %p227 = por %p225, %p226
    %p228 = scmp.ne.s32.totalorder %s214, %s215
    %p229 = scmp.eq.s32.totalorder %s19, 3
    %p230 = por %p228, %p229
    %p232 = scmp.ne.s32.totalorder %s215, %s231
    %p233 = scmp.eq.s32.totalorder %s19, 0
    %p234 = por %p232, %p233
    %p235 = scmp.le.s32.totalorder 1, %s13
    %p236 = scmp.lt.s32.totalorder %s13, 5
    %p237 = pnand %p235, %p236
    %p238 = pneg %p237
    // Predicated region
    $region9: #{_lambda_.15} parent=5 // pred_check
      _
    $region10: #{_lambda_.15} parent=5 // pred_check_branch
      %240 = sbr.rel (%p237) target = $region12
    $region11: #{_lambda_.15} parent=5 // pred_region
      %s241 = ssub.s32 %s13, 1
      // Predicated region
      $region13: #{_lambda_.15} parent=11 // pred_check
        %p242 = pneg %p88
      $region14: #{_lambda_.15} parent=11 // pred_check_branch
        %244 = sbr.rel (%p242) target = $region16
      $region15: #{_lambda_.15} parent=11 // pred_region
        _
      $region16: #{_lambda_.15} parent=11 // pred_fallthru
        _
      // Predicated region
      $region17: #{_lambda_.15} parent=11 // pred_check
        %p245 = pneg %p109
      $region18: #{_lambda_.15} parent=11 // pred_check_branch
        %247 = sbr.rel (%p245) target = $region20
      $region19: #{_lambda_.15} parent=11 // pred_region
        _
      $region20: #{_lambda_.15} parent=11 // pred_fallthru
        _
    $region12: #{_lambda_.15} parent=5 // pred_fallthru
      _
    %p248 = scmp.lt.s32.totalorder %s13, 4
    // Predicated region
    $region21: #{_lambda_.15} parent=5 // pred_check
      %p249 = pneg %p248
    $region22: #{_lambda_.15} parent=5 // pred_check_branch
      %251 = sbr.rel (%p249) target = $region24
    $region23: #{_lambda_.15} parent=5 // pred_region
      // Predicated region
      $region25: #{_lambda_.15} parent=23 // pred_check
        %p252 = pneg %p61
      $region26: #{_lambda_.15} parent=23 // pred_check_branch
        %254 = sbr.rel (%p252) target = $region28
      $region27: #{_lambda_.15} parent=23 // pred_region
        %p255 = scmp.lt.s32.totalorder %s20, 1
        %s256 = scalar_select %p255, %s20, 1
        %p257 = scmp.lt.s32.totalorder %s21, 0
        %s258 = scalar_select %p257, %s21, 0
        %s259 = sadd.s32 %s258, %s256
        %s260 = smul.addr %s259, 8
        %s261 = scalar_lea.vmem %s0, %s260
      $region28: #{_lambda_.15} parent=23 // pred_fallthru
        _
      // Predicated region
      $region29: #{_lambda_.15} parent=23 // pred_check
        %p262 = pneg %p131
      $region30: #{_lambda_.15} parent=23 // pred_check_branch
        %264 = sbr.rel (%p262) target = $region32
      $region31: #{_lambda_.15} parent=23 // pred_region
        %p265 = scmp.lt.s32.totalorder %s22, 1
        %s266 = scalar_select %p265, %s22, 1
        %p267 = scmp.lt.s32.totalorder %s23, 0
        %s268 = scalar_select %p267, %s23, 0
        %s269 = smul.addr %s266, 4
        %s270 = sadd.s32 %s268, %s269
        %s271 = smul.addr %s270, 4
        %s272 = scalar_lea.vmem %s3, %s271
      $region32: #{_lambda_.15} parent=23 // pred_fallthru
        _
      // Predicated region
      $region33: #{_lambda_.15} parent=23 // pred_check
        %p273 = pneg %p161
      $region34: #{_lambda_.15} parent=23 // pred_check_branch
        %275 = sbr.rel (%p273) target = $region36
      $region35: #{_lambda_.15} parent=23 // pred_region
        %p276 = scmp.lt.s32.totalorder %s20, 1
        %s277 = scalar_select %p276, %s20, 1
        %p278 = scmp.lt.s32.totalorder %s22, 1
        %s279 = scalar_select %p278, %s22, 1
        %p280 = scmp.lt.s32.totalorder %s21, 0
        %s281 = scalar_select %p280, %s21, 0
        %s282 = sadd.s32 %s281, %s279
        %s283 = smul.addr %s277, 2
        %s284 = sadd.s32 %s282, %s283
        %s285 = smul.addr %s284, 8
        %s286 = scalar_lea.vmem %s4, %s285
      $region36: #{_lambda_.15} parent=23 // pred_fallthru
        _
    $region24: #{_lambda_.15} parent=5 // pred_fallthru
      _
    %p287 = scmp.le.s32.totalorder 1, %s13
    %p288 = scmp.lt.s32.totalorder %s13, 5
    %p289 = pnand %p287, %p288
    %p290 = pneg %p289
    // Predicated region
    $region37: #{_lambda_.15} parent=5 // pred_check
      _
    $region38: #{_lambda_.15} parent=5 // pred_check_branch
      %292 = sbr.rel (%p289) target = $region40
    $region39: #{_lambda_.15} parent=5 // pred_region
      %s293 = ssub.s32 %s13, 1
      %p294 = scmp.lt.s32.totalorder %s24, 1
      %s295 = scalar_select %p294, %s24, 1
      %p296 = scmp.lt.s32.totalorder %s25, 0
      %s297 = scalar_select %p296, %s25, 0
      %s298 = sadd.s32 %s297, %s295
      %s299 = smul.addr %s298, 8
      %s300 = scalar_lea.vmem %s0, %s299
      %p301 = pneg %p67
      %p302 = pneg %p64
      %p303 = pneg %p88
      %p304 = pneg %p85
      %p305 = pneg %p109
      %p306 = pneg %p106
      %p307 = scmp.lt.s32.totalorder %s26, 1
      %s308 = scalar_select %p307, %s26, 1
      %p309 = scmp.lt.s32.totalorder %s27, 0
      %s310 = scalar_select %p309, %s27, 0
      %s311 = smul.addr %s308, 4
      %s312 = sadd.s32 %s310, %s311
      %s313 = smul.addr %s312, 4
      %s314 = scalar_lea.vmem %s3, %s313
      %p315 = pneg %p137
      %p316 = pneg %p134
      %p317 = scmp.lt.s32.totalorder %s24, 1
      %s318 = scalar_select %p317, %s24, 1
      %p319 = scmp.lt.s32.totalorder %s26, 1
      %s320 = scalar_select %p319, %s26, 1
      %p321 = scmp.lt.s32.totalorder %s25, 0
      %s322 = scalar_select %p321, %s25, 0
      %s323 = sadd.s32 %s322, %s320
      %s324 = smul.addr %s318, 2
      %s325 = sadd.s32 %s323, %s324
      %s326 = smul.addr %s325, 8
      %s327 = scalar_lea.vmem %s4, %s326
      %p328 = pneg %p167
      %p329 = pneg %p164
      %p330 = pneg %p197
      %p331 = pneg %p194
      %p332 = scmp.lt.s32.totalorder %s24, 1
      %s333 = scalar_select %p332, %s24, 1
      %p334 = scmp.lt.s32.totalorder %s26, 1
      %s335 = scalar_select %p334, %s26, 1
      %p336 = scmp.lt.s32.totalorder %s25, 0
      %s337 = scalar_select %p336, %s25, 0
      %s338 = sadd.s32 %s337, %s335
      %s339 = smul.addr %s333, 2
      %s340 = sadd.s32 %s338, %s339
      %s341 = smul.addr %s340, 8
      %s342 = scalar_lea.vmem %s5, %s341
      %p343 = pneg %p227
      %p344 = pneg %p224
      %p345 = scmp.lt.s32.totalorder %s24, 1
      %s346 = scalar_select %p345, %s24, 1
      %p347 = scmp.lt.s32.totalorder %s26, 1
      %s348 = scalar_select %p347, %s26, 1
      %p349 = scmp.lt.s32.totalorder %s25, 0
      %s350 = scalar_select %p349, %s25, 0
      %s351 = sadd.s32 %s350, %s348
      %s352 = smul.addr %s346, 2
      %s353 = sadd.s32 %s351, %s352
      %s354 = smul.addr %s353, 8
      %s355 = scalar_lea.vmem %s6, %s354
      %p356 = scmp.lt.s32.totalorder %s24, 1
      %s357 = scalar_select %p356, %s24, 1
      %p358 = scmp.lt.s32.totalorder %s25, 0
      %s359 = scalar_select %p358, %s25, 0
      %s360 = sadd.s32 %s359, %s357
      %s361 = smul.addr %s360, 8
      %s362 = scalar_lea.vmem %s0, %s361
      %p363 = scmp.lt.s32.totalorder %s26, 1
      %s364 = scalar_select %p363, %s26, 1
      %p365 = scmp.lt.s32.totalorder %s27, 0
      %s366 = scalar_select %p365, %s27, 0
      %s367 = smul.addr %s364, 4
      %s368 = sadd.s32 %s366, %s367
      %s369 = smul.addr %s368, 4
      %s370 = scalar_lea.vmem %s3, %s369
      %p371 = scmp.lt.s32.totalorder %s24, 1
      %s372 = scalar_select %p371, %s24, 1
      %p373 = scmp.lt.s32.totalorder %s26, 1
      %s374 = scalar_select %p373, %s26, 1
      %p375 = scmp.lt.s32.totalorder %s25, 0
      %s376 = scalar_select %p375, %s25, 0
      %s377 = sadd.s32 %s376, %s374
      %s378 = smul.addr %s372, 2
      %s379 = sadd.s32 %s377, %s378
      %s380 = smul.addr %s379, 8
      %s381 = scalar_lea.vmem %s4, %s380
      %p382 = scmp.lt.s32.totalorder %s24, 1
      %s383 = scalar_select %p382, %s24, 1
      %p384 = scmp.lt.s32.totalorder %s26, 1
      %s385 = scalar_select %p384, %s26, 1
      %p386 = scmp.lt.s32.totalorder %s25, 0
      %s387 = scalar_select %p386, %s25, 0
      %s388 = sadd.s32 %s387, %s385
      %s389 = smul.addr %s383, 2
      %s390 = sadd.s32 %s388, %s389
      %s391 = smul.addr %s390, 8
      %s392 = scalar_lea.vmem %s5, %s391
      %p393 = scmp.lt.s32.totalorder %s24, 1
      %s394 = scalar_select %p393, %s24, 1
      %p395 = scmp.lt.s32.totalorder %s26, 1
      %s396 = scalar_select %p395, %s26, 1
      %p397 = scmp.lt.s32.totalorder %s25, 0
      %s398 = scalar_select %p397, %s25, 0
      %s399 = sadd.s32 %s398, %s396
      %s400 = smul.addr %s394, 2
      %s401 = sadd.s32 %s399, %s400
      %s402 = smul.addr %s401, 8
      %s403 = scalar_lea.vmem %s6, %s402
      %p405 = scmp.eq.s32.totalorder %s27, 0
      // Predicated region
      $region41: #{_lambda_.15} parent=39 // pred_check
        %p406 = pneg %p405
      $region42: #{_lambda_.15} parent=39 // pred_check_branch
        %408 = sbr.rel (%p406) target = $region44
      $region43: #{_lambda_.15} parent=39 // pred_region
        %v409 = vld [vmem:[%s362] sm:$0xff]
        %vm410 = vcmask 261120
        %v411 = vsel %vm410, %v409, 0.0
        %412 = vadd.xlane.f32.xlu0 %v411
        %v413 = vpop.xlane.xlu0 %412
        %v414 = vrcp.pop 32.0
        %v415 = vmul.f32 %v413, %v414
        %v416 = vsub.f32 %v409, %v415
        %v417 = vmul.f32 %v416, %v416
        %v418 = vsel %vm410, %v417, 0.0
        %419 = vadd.xlane.f32.xlu0 %v418
        %v420 = vpop.xlane.xlu0 %419
        %v421 = vmul.f32 %v420, %v414
        %v422 = vadd.f32 %v421, 1e-05
        %v423 = vrsqrt.pop %v422
        %v424 = vmul.f32 %v416, %v423
        %v425 = vld [vmem:[%s1] sm:$0x1]
        %v427 = vlaneseq
        %v428 = vshrl.u32 %v427, 7
        %v429 = vsub.s32 0, %v428
        %v430 = vrot.slane %v425, %v429
        %v432 = vmul.f32 %v424, %v430
        %v433 = vld [vmem:[%s2] sm:$0x1]
        %v435 = vlaneseq
        %v436 = vshrl.u32 %v435, 7
        %v437 = vsub.s32 0, %v436
        %v438 = vrot.slane %v433, %v437
        %v440 = vadd.f32 %v432, %v438
        %v441 = vpack.c.bf16 %v440, %v440
        %vm442 = vcmask 257024
        %443 = vst.msk [vmem:[#allocation2] sm:$0xf] %vm442, %v441
        %vm444 = vcmask 7168
        %445 = vst.msk [vmem:[#allocation3] sm:$0xff] %vm444, -inf
        %446 = vst.msk [vmem:[#allocation4] sm:$0xff] %vm444, 0.0
        %447 = vst.msk [vmem:[#allocation5] sm:$0xff] %vm444, 0.0
        %448 = vst.msk [vmem:[#allocation6] sm:$0xff] %vm444, 0
      $region44: #{_lambda_.15} parent=39 // pred_fallthru
        _
      %v449 = vld [vmem:[#allocation2] sm:$0xf]
      %v450 = vld [vmem:[%s370] sm:$0xf]
      %v451 = vld [vmem:[%s370 + $0x4] sm:$0xf]
      %v452 = vld [vmem:[%s370 + $0x8] sm:$0xf]
      %v453 = vld [vmem:[%s370 + $0xc] sm:$0xf]
      %v458 = vunpack.c.l.b16 %v450
      %v459 = vunpack.c.l.b16 %v451
      %v460 = vunpack.c.l.b16 %v452
      %v461 = vunpack.c.l.b16 %v453
      %v462 = vpack.c.b16 %v459, %v458
      %v463 = vpack.c.b16 %v461, %v460
      %vm466 = vcmask 261120
      %v468 = vsel %vm466, %v449, 0
      %470 = vmatprep.subr.bf16.mxu0 0
      %471 = vmatpush1.bf16.msra.mxu0 %v462
      %472 = vmatprep.subr.bf16.mxu0 0
      %473 = vmatpush1.bf16.msra.mxu0 %v463
      %474 = vmatprep.subr.bf16.mxu0 0
      %475 = vmatpush1.bf16.msra.mxu0 0
      %476 = vmatprep.subr.bf16.mxu0 0
      %477 = vmatpush1.bf16.msra.mxu0 0
      %478 = vmatprep.subr.bf16.mxu0 0
      %479 = vmatpush1.bf16.msra.mxu0 0
      %480 = vmatprep.subr.bf16.mxu0 0
      %481 = vmatpush1.bf16.msra.mxu0 0
      %482 = vmatprep.subr.bf16.mxu0 0
      %483 = vmatpush1.bf16.msra.mxu0 0
      %484 = vmatprep.subr.bf16.mxu0 0
      %485 = vmatpush1.bf16.msra.mxu0 0
      %486 = vmatprep.subr.bf16.mxu0 0
      %487 = vmatpush1.bf16.msra.mxu0 0
      %488 = vmatprep.subr.bf16.mxu0 0
      %489 = vmatpush1.bf16.msra.mxu0 0
      %490 = vmatprep.subr.bf16.mxu0 0
      %491 = vmatpush1.bf16.msra.mxu0 0
      %492 = vmatprep.subr.bf16.mxu0 0
      %493 = vmatpush1.bf16.msra.mxu0 0
      %494 = vmatprep.subr.bf16.mxu0 0
      %495 = vmatpush1.bf16.msra.mxu0 0
      %496 = vmatprep.subr.bf16.mxu0 0
      %497 = vmatpush1.bf16.msra.mxu0 0
      %498 = vmatprep.subr.bf16.mxu0 0
      %499 = vmatpush1.bf16.msra.mxu0 0
      %500 = vmatprep.subr.bf16.mxu0 0
      %501 = vmatpush1.bf16.msra.mxu0 0
      %502 = vmatprep.mubr.bf16.mxu0 0
      %503 = vmatmul.mubr.bf16.gmra.mrb[0].mxu0 %v468
      %v504 = vpop.f32.mrb[0].mxu0
      %v505 = vadd.f32 0.0, %v504
      %v506 = vpop.f32.mrb[0].mxu0
      %v507 = vpop.f32.mrb[0].mxu0
      %v508 = vpop.f32.mrb[0].mxu0
      %509 = vdwg.mxu0
      %v510 = vld [vmem:[%s381] sm:$0xff]
      %v511 = vlaneseq
      %v512 = vand.u32 %v511, 127
      %s513 = smul.u32 %s27, 128
      %v514 = vstv %s513
      %v515 = vsub.s32 %v510, %v514
      %516 = vmax.xlane.f32.xlu0 %v505
      %v517 = vpop.xlane.xlu0 %516
      %v518 = vld [vmem:[#allocation3] sm:$0xff]
      %vm519 = vcmp.eq.f32.partialorder %v505, %v517
      %v520 = vsel %vm519, %v512, 128
      %v521 = vand.u32 %v520, 65535
      %v522 = vshra.s32 %v520, 16
      %v523 = vcvt.s32.f32 %v521
      %v524 = vcvt.s32.f32 %v522
      %525 = vmin.xlane.f32.xlu0 %v524
      %v526 = vpop.xlane.xlu0 %525
      %vm527 = vcmp.eq.f32.partialorder %v524, %v526
      %v528 = vsel %vm527, %v523, inf
      %529 = vmin.xlane.f32.xlu0 %v528
      %v530 = vpop.xlane.xlu0 %529
      %v531 = vcvt.f32.s32 %v530
      %v532 = vcvt.f32.s32 %v526
      %v533 = vshll.u32 %v532, 16
      %v534 = vadd.s32 %v533, %v531
      %vm535 = vcmp.gt.f32.partialorder %v517, %v518
      %v536 = vadd.s32 %v534, %v514
      %v537 = vld [vmem:[#allocation6] sm:$0xff]
      %v538 = vsel %vm535, %v536, %v537
      %vm539 = vcmask 7168
      %540 = vst.msk [vmem:[#allocation6] sm:$0xff] %vm539, %v538
      %v541 = vmax.f32 %v518, %v517
      %v542 = vld [vmem:[#allocation4] sm:$0xff]
      %v543 = vsub.f32 %v518, %v541
      %v544 = vmul.f32 %v543, 1.442695
      %v545 = vpow.pop %v544
      %v546 = vmul.f32 %v542, %v545
      %548 = vset.pattern.permute.xlu0 0
      %549 = vperm.xlu0 %548, %v541
      %v550 = vpop.permute.xlu0 %549
      %v552 = vsub.f32 %v505, %v550
      %v553 = vmul.f32 %v552, 1.442695
      %v554 = vpow.pop %v553
      %555 = vadd.xlane.f32.xlu0 %v554
      %v556 = vpop.xlane.xlu0 %555
      %v557 = vadd.f32 %v546, %v556
      %558 = vst.msk [vmem:[#allocation4] sm:$0xff] %vm539, %v557
      %559 = vst.msk [vmem:[#allocation3] sm:$0xff] %vm539, %v541
      %v560 = vld [vmem:[#allocation5] sm:$0xff]
      %561 = vset.pattern.permute.xlu0 0
      %562 = vperm.xlu0 %561, %v515
      %v563 = vpop.permute.xlu0 %562
      %vm564 = vcmp.eq.s32.totalorder %v512, %v563
      %v565 = vsel %vm564, %v505, 0.0
      %566 = vadd.xlane.f32.xlu0 %v565
      %v567 = vpop.xlane.xlu0 %566
      %v568 = vadd.f32 %v560, %v567
      %569 = vst.msk [vmem:[#allocation5] sm:$0xff] %vm539, %v568
      // Predicated region
      $region45: #{_lambda_.15} parent=39 // pred_check
        %p570 = pneg %p405
      $region46: #{_lambda_.15} parent=39 // pred_check_branch
        %572 = sbr.rel (%p570) target = $region48
      $region47: #{_lambda_.15} parent=39 // pred_region
        %v573 = vld [vmem:[#allocation3] sm:$0xff]
        %v574 = vld [vmem:[#allocation4] sm:$0xff]
        %v575 = vlog2.pop %v574
        %v576 = vmul.f32 %v575, 0.6931472
        %v577 = vadd.f32 %v573, %v576
        %v578 = vld [vmem:[#allocation5] sm:$0xff]
        %v579 = vsub.f32 %v577, %v578
        %580 = vst.msk [vmem:[%s392] sm:$0xff] %vm539, %v579
        %v581 = vld [vmem:[#allocation6] sm:$0xff]
        %vm582 = vcmp.eq.s32.totalorder %v581, %v510
        %v583 = vsel %vm582, 1, 0
        %v584 = vcvt.s32.f32 %v583
        %585 = vst.msk [vmem:[%s403] sm:$0xff] %vm539, %v584
      $region48: #{_lambda_.15} parent=39 // pred_fallthru
        _
      %p586 = scmp.lt.s32.totalorder %s24, 1
      %s587 = scalar_select %p586, %s24, 1
      %p588 = scmp.lt.s32.totalorder %s26, 1
      %s589 = scalar_select %p588, %s26, 1
      %p590 = scmp.lt.s32.totalorder %s25, 0
      %s591 = scalar_select %p590, %s25, 0
      %s592 = sadd.s32 %s591, %s589
      %s593 = smul.addr %s587, 2
      %s594 = sadd.s32 %s592, %s593
      %s595 = smul.addr %s594, 8
      %s596 = scalar_lea.vmem %s5, %s595
      %p597 = scmp.lt.s32.totalorder %s24, 1
      %s598 = scalar_select %p597, %s24, 1
      %p599 = scmp.lt.s32.totalorder %s26, 1
      %s600 = scalar_select %p599, %s26, 1
      %p601 = scmp.lt.s32.totalorder %s25, 0
      %s602 = scalar_select %p601, %s25, 0
      %s603 = sadd.s32 %s602, %s600
      %s604 = smul.addr %s598, 2
      %s605 = sadd.s32 %s603, %s604
      %s606 = smul.addr %s605, 8
      %s607 = scalar_lea.vmem %s6, %s606
      // Predicated region
      $region49: #{_lambda_.15} parent=39 // pred_check
        %p608 = pneg %p194
      $region50: #{_lambda_.15} parent=39 // pred_check_branch
        %610 = sbr.rel (%p608) target = $region52
      $region51: #{_lambda_.15} parent=39 // pred_region
        _
      $region52: #{_lambda_.15} parent=39 // pred_fallthru
        _
      // Predicated region
      $region53: #{_lambda_.15} parent=39 // pred_check
        %p611 = pneg %p224
      $region54: #{_lambda_.15} parent=39 // pred_check_branch
        %613 = sbr.rel (%p611) target = $region56
      $region55: #{_lambda_.15} parent=39 // pred_region
        _
      $region56: #{_lambda_.15} parent=39 // pred_fallthru
        _
    $region40: #{_lambda_.15} parent=5 // pred_fallthru
      _
    %p614 = scmp.le.s32.totalorder 2, %s13
    // Predicated region
    $region57: #{_lambda_.15} parent=5 // pred_check
      %p615 = pneg %p614
    $region58: #{_lambda_.15} parent=5 // pred_check_branch
      %617 = sbr.rel (%p615) target = $region60
    $region59: #{_lambda_.15} parent=5 // pred_region
      %s618 = ssub.s32 %s13, 2
      // Predicated region
      $region61: #{_lambda_.15} parent=59 // pred_check
        %p619 = pneg %p200
      $region62: #{_lambda_.15} parent=59 // pred_check_branch
        %621 = sbr.rel (%p619) target = $region64
      $region63: #{_lambda_.15} parent=59 // pred_region
        %p622 = scmp.lt.s32.totalorder %s28, 1
        %s623 = scalar_select %p622, %s28, 1
        %p624 = scmp.lt.s32.totalorder %s30, 1
        %s625 = scalar_select %p624, %s30, 1
        %p626 = scmp.lt.s32.totalorder %s29, 0
        %s627 = scalar_select %p626, %s29, 0
        %s628 = sadd.s32 %s627, %s625
        %s629 = smul.addr %s623, 2
        %s630 = sadd.s32 %s628, %s629
        %s631 = smul.addr %s630, 8
        %s632 = scalar_lea.vmem %s5, %s631
      $region64: #{_lambda_.15} parent=59 // pred_fallthru
        _
      // Predicated region
      $region65: #{_lambda_.15} parent=59 // pred_check
        %p633 = pneg %p230
      $region66: #{_lambda_.15} parent=59 // pred_check_branch
        %635 = sbr.rel (%p633) target = $region68
      $region67: #{_lambda_.15} parent=59 // pred_region
        %p636 = scmp.lt.s32.totalorder %s28, 1
        %s637 = scalar_select %p636, %s28, 1
        %p638 = scmp.lt.s32.totalorder %s30, 1
        %s639 = scalar_select %p638, %s30, 1
        %p640 = scmp.lt.s32.totalorder %s29, 0
        %s641 = scalar_select %p640, %s29, 0
        %s642 = sadd.s32 %s641, %s639
        %s643 = smul.addr %s637, 2
        %s644 = sadd.s32 %s642, %s643
        %s645 = smul.addr %s644, 8
        %s646 = scalar_lea.vmem %s6, %s645
      $region68: #{_lambda_.15} parent=59 // pred_fallthru
        _
    $region60: #{_lambda_.15} parent=5 // pred_fallthru
      _
  $region6: #{_lambda_.15} parent=0 // loop_footer
    %s17 = sadd.s32 1, %s13
  $region7: #{_lambda_.15} parent=0 // loop_footer_branch
    %12 = sbr.rel target = $region3
  $region8: #{_lambda_.15} parent=0 // loop_exit
    _

</llo_original>
